<compile_context>
chip_gen: v7x
topology: tpu7x:2x2x1
jax: 0.10.0
libtpu: 0.0.40
codegen_flags: <defaults>
</compile_context>

<pallas_src>
import math

import jax
import jax.numpy as jnp
from jax.experimental import pallas as pl
from jax.experimental.pallas import tpu as pltpu  # noqa: F401  (TPU backend)

# ----------------------------- hyper-parameters --------------------------------
NMOVIES = 64
NPAD = 128            # lane-dense padded logits width
D_MODEL = 32
NHEAD = 4
HEAD_DIM = D_MODEL // NHEAD
D_HID = 64
NLAYERS = 2
SEQ = 8
BATCH = 2
BS = BATCH * SEQ      # batch folded onto the sublane axis
EPS = 1e-5            # nn.LayerNorm default eps
NEG = -1e9            # finite large-negative mask value (NaN-safe)

# ----------------------- packed parameter-slab layout ---------------------------
SLAB_LANES = 128
EMB_R0 = 0                        # [nmovies, d_model]  (pre-scaled by sqrt(d))
PE_R0 = EMB_R0 + NMOVIES          # [B*S, d_model]      (PE tiled over batch)
DECW_R0 = PE_R0 + BS              # [d_model, 128]      (decoder W^T, zero-padded)
DECB_R0 = DECW_R0 + D_MODEL       # [1, 128]
BDIAG_R0 = 120                    # [B*S, B*S]  0 / -1e9 block-diagonal structure
LAYER_R0 = BDIAG_R0 + BS          # start of per-layer blocks (multiple of 8)
LAYER_ROWS = 168                  # rows per encoder layer (multiple of 8)
TOTAL_ROWS = LAYER_R0 + NLAYERS * LAYER_ROWS    # 472

# per-layer relative row offsets inside the slab
W_IN_R, W_OUT_R, W1_R, W2_R = 0, 32, 64, 96
(B_IN_R, B_OUT_R, G1_R, BT1_R,
 B1_R, B2_R, G2_R, BT2_R) = 160, 161, 162, 163, 164, 165, 166, 167


def _layernorm(x, gamma, beta):
    mean = jnp.mean(x, axis=-1, keepdims=True)
    var = jnp.mean((x - mean) ** 2, axis=-1, keepdims=True)
    return (x - mean) * jax.lax.rsqrt(var + EPS) * gamma + beta


# ----------------------------- fused kernel ------------------------------------
def fused_transformer_kernel(tok_ref, src_mask_ref, pad_bias_ref, slab_ref, o_ref):
    # --- embedding gather via one-hot matmul (+ sqrt(d) already folded in) ------
    tok = tok_ref[...]                                           # [B*S, 1] int32
    ids = jax.lax.broadcasted_iota(jnp.int32, (BS, NMOVIES), 1)
    one_hot = (ids == tok).astype(jnp.float32)                   # [B*S, nmovies]
    emb = slab_ref[EMB_R0:EMB_R0 + NMOVIES, 0:D_MODEL]           # [nmovies, d]
    x = jnp.dot(one_hot, emb, preferred_element_type=jnp.float32)
    x = x + slab_ref[PE_R0:PE_R0 + BS, 0:D_MODEL]                # + positional enc

    # --- additive attention mask: block-diag structure + caller mask + padding --
    sm = src_mask_ref[...]                                       # [S, S]
    sm_row = jnp.concatenate([sm] * BATCH, axis=1)               # [S, B*S]
    sm_tiled = jnp.concatenate([sm_row] * BATCH, axis=0)         # [B*S, B*S]
    mask = (slab_ref[BDIAG_R0:BDIAG_R0 + BS, 0:BS]               # 0 / -1e9
            + sm_tiled + pad_bias_ref[...])                      # [B*S, B*S]

    for l in range(NLAYERS):
        base = LAYER_R0 + l * LAYER_ROWS
        w_in  = slab_ref[base + W_IN_R: base + W_IN_R + D_MODEL, 0:3 * D_MODEL]
        w_out = slab_ref[base + W_OUT_R: base + W_OUT_R + D_MODEL, 0:D_MODEL]
        w1    = slab_ref[base + W1_R: base + W1_R + D_MODEL, 0:D_HID]
        w2    = slab_ref[base + W2_R: base + W2_R + D_HID, 0:D_MODEL]
        b_in  = slab_ref[base + B_IN_R: base + B_IN_R + 1, 0:3 * D_MODEL]
        b_out = slab_ref[base + B_OUT_R: base + B_OUT_R + 1, 0:D_MODEL]
        g1    = slab_ref[base + G1_R: base + G1_R + 1, 0:D_MODEL]
        bt1   = slab_ref[base + BT1_R: base + BT1_R + 1, 0:D_MODEL]
        b1    = slab_ref[base + B1_R: base + B1_R + 1, 0:D_HID]
        b2    = slab_ref[base + B2_R: base + B2_R + 1, 0:D_MODEL]
        g2    = slab_ref[base + G2_R: base + G2_R + 1, 0:D_MODEL]
        bt2   = slab_ref[base + BT2_R: base + BT2_R + 1, 0:D_MODEL]

        # --- multi-head self attention (heads batched on a leading axis) --------
        qkv = jnp.dot(x, w_in, preferred_element_type=jnp.float32) + b_in  # [B*S,3D]

        def split_heads(off):
            return jnp.stack(
                [qkv[:, off + h * HEAD_DIM: off + (h + 1) * HEAD_DIM]
                 for h in range(NHEAD)], axis=0)                  # [H, B*S, hd]

        q = split_heads(0)                 # 1/sqrt(hd) pre-folded into w_in/b_in
        k = split_heads(D_MODEL)
        v = split_heads(2 * D_MODEL)

        s = jnp.einsum("hqd,hkd->hqk", q, k,
                       preferred_element_type=jnp.float32) + mask   # [H,B*S,B*S]
        s = s - jnp.max(s, axis=-1, keepdims=True)
        p = jnp.exp(s)
        p = p * pl.reciprocal(jnp.sum(p, axis=-1, keepdims=True), approx=True)
        heads = jnp.einsum("hqk,hkd->hqd", p, v,
                           preferred_element_type=jnp.float32)      # [H,B*S,hd]
        attn = jnp.concatenate([heads[h] for h in range(NHEAD)], axis=1)  # [B*S,D]
        attn = jnp.dot(attn, w_out, preferred_element_type=jnp.float32) + b_out

        # --- residual + norm1, feed-forward + residual + norm2 -------------------
        x1 = _layernorm(x + attn, g1, bt1)
        hid = jnp.maximum(
            jnp.dot(x1, w1, preferred_element_type=jnp.float32) + b1, 0.0)
        ff = jnp.dot(hid, w2, preferred_element_type=jnp.float32) + b2
        x = _layernorm(x1 + ff, g2, bt2)

    # --- decoder Linear(d_model, nmovies), lane-dense 128-wide output -----------
    dec_w = slab_ref[DECW_R0:DECW_R0 + D_MODEL, :]     # [D, 128] zero-padded
    dec_b = slab_ref[DECB_R0:DECB_R0 + 1, :]           # [1, 128]
    o_ref[...] = (jnp.dot(x, dec_w, preferred_element_type=jnp.float32)
                  + dec_b).astype(o_ref.dtype)


# ----------------------------- host-side model glue ----------------------------
def positional_encoding(seq, d_model):
    pos = jnp.arange(seq, dtype=jnp.float32)[:, None]
    div = jnp.exp(jnp.arange(0, d_model, 2, dtype=jnp.float32)
                  * (-math.log(10000.0) / d_model))
    pe = jnp.zeros((seq, d_model), jnp.float32)
    pe = pe.at[:, 0::2].set(jnp.sin(pos * div))
    pe = pe.at[:, 1::2].set(jnp.cos(pos * div))
    return pe


def init_params(key):
    initrange = 0.1
    ks = jax.random.split(key, 2 + NLAYERS)
    emb = jax.random.uniform(ks[0], (NMOVIES, D_MODEL), jnp.float32,
                             -initrange, initrange)
    dec_w = jax.random.uniform(ks[1], (NMOVIES, D_MODEL), jnp.float32,
                               -initrange, initrange)
    dec_b = jnp.zeros((1, NMOVIES), jnp.float32)

    layers = []
    for l in range(NLAYERS):
        lk = jax.random.split(ks[2 + l], 4)
        w_in = jax.random.uniform(lk[0], (3 * D_MODEL, D_MODEL), jnp.float32, -0.1, 0.1)
        b_in = jnp.zeros((1, 3 * D_MODEL), jnp.float32)
        w_out = jax.random.uniform(lk[1], (D_MODEL, D_MODEL), jnp.float32, -0.1, 0.1)
        b_out = jnp.zeros((1, D_MODEL), jnp.float32)
        g1 = jnp.ones((1, D_MODEL), jnp.float32)
        bt1 = jnp.zeros((1, D_MODEL), jnp.float32)
        w1 = jax.random.uniform(lk[2], (D_HID, D_MODEL), jnp.float32, -0.1, 0.1)
        b1 = jnp.zeros((1, D_HID), jnp.float32)
        w2 = jax.random.uniform(lk[3], (D_MODEL, D_HID), jnp.float32, -0.1, 0.1)
        b2 = jnp.zeros((1, D_MODEL), jnp.float32)
        g2 = jnp.ones((1, D_MODEL), jnp.float32)
        bt2 = jnp.zeros((1, D_MODEL), jnp.float32)
        layers.append((w_in, b_in, w_out, b_out, g1, bt1,
                       w1, b1, w2, b2, g2, bt2))
    return emb, dec_w, dec_b, layers


def pack_params(params):
    """One-time packing of every weight/bias/constant into a single lane-aligned
    [TOTAL_ROWS, 128] f32 slab (one DMA into the kernel)."""
    emb, dec_w, dec_b, layers = params
    slab = jnp.zeros((TOTAL_ROWS, SLAB_LANES), jnp.float32)
    slab = slab.at[EMB_R0:EMB_R0 + NMOVIES, :D_MODEL].set(emb * math.sqrt(D_MODEL))
    pe = positional_encoding(SEQ, D_MODEL)
    slab = slab.at[PE_R0:PE_R0 + BS, :D_MODEL].set(jnp.tile(pe, (BATCH, 1)))
    slab = slab.at[DECW_R0:DECW_R0 + D_MODEL, :NMOVIES].set(dec_w.T)
    slab = slab.at[DECB_R0, :NMOVIES].set(dec_b.reshape(-1))
    # block-diagonal structural mask: 0 within a sequence, -1e9 across batches
    r = jnp.arange(BS)
    same = (r[:, None] // SEQ) == (r[None, :] // SEQ)
    slab = slab.at[BDIAG_R0:BDIAG_R0 + BS, :BS].set(jnp.where(same, 0.0, NEG))

    scale = 1.0 / math.sqrt(HEAD_DIM)
    for l, (w_in, b_in, w_out, b_out, g1, bt1,
            w1, b1, w2, b2, g2, bt2) in enumerate(layers):
        base = LAYER_R0 + l * LAYER_ROWS
        w_in_t = w_in.T                             # [D, 3D], x @ W form
        b_in_f = b_in.reshape(-1)
        # fold the 1/sqrt(head_dim) attention scale into the Q projection
        w_in_t = w_in_t.at[:, :D_MODEL].multiply(scale)
        b_in_f = b_in_f.at[:D_MODEL].multiply(scale)
        slab = slab.at[base + W_IN_R: base + W_IN_R + D_MODEL, :3 * D_MODEL].set(w_in_t)
        slab = slab.at[base + W_OUT_R: base + W_OUT_R + D_MODEL, :D_MODEL].set(w_out.T)
        slab = slab.at[base + W1_R: base + W1_R + D_MODEL, :D_HID].set(w1.T)
        slab = slab.at[base + W2_R: base + W2_R + D_HID, :D_MODEL].set(w2.T)
        slab = slab.at[base + B_IN_R, :3 * D_MODEL].set(b_in_f)
        slab = slab.at[base + B_OUT_R, :D_MODEL].set(b_out.reshape(-1))
        slab = slab.at[base + G1_R, :D_MODEL].set(g1.reshape(-1))
        slab = slab.at[base + BT1_R, :D_MODEL].set(bt1.reshape(-1))
        slab = slab.at[base + B1_R, :D_HID].set(b1.reshape(-1))
        slab = slab.at[base + B2_R, :D_MODEL].set(b2.reshape(-1))
        slab = slab.at[base + G2_R, :D_MODEL].set(g2.reshape(-1))
        slab = slab.at[base + BT2_R, :D_MODEL].set(bt2.reshape(-1))
    return slab


def vanilla_transformer_forward(src, src_mask, src_pad_mask, slab):
    """src: int [seq, batch]; src_mask: float additive [seq, seq];
    src_pad_mask: bool [batch, seq] (True = pad).  Returns [seq, batch, nmovies]."""
    S, B = src.shape
    # batch-major token flattening (row r = b*S + s) and key-padding bias
    tok = src.T.reshape(B * S, 1).astype(jnp.int32)
    pad_bias = jnp.where(src_pad_mask, NEG, 0.0).astype(jnp.float32).reshape(1, B * S)

    # NOTE: on v7x a grid=(BATCH,) "parallel" split over sequences would use both
    # TensorCores; kept gridless here so a single call is optimal on v5e/v6e too.
    out = pl.pallas_call(
        fused_transformer_kernel,
        out_shape=jax.ShapeDtypeStruct((B * S, NPAD), jnp.float32),
    )(tok, src_mask.astype(jnp.float32), pad_bias, slab)

    out = out[:, :NMOVIES].reshape(B, S, NMOVIES)                # [batch, seq, nmovies]
    return jnp.transpose(out, (1, 0, 2))                         # [seq, batch, nmovies]


# --------------------------------- main -----------------------------------------
if __name__ == "__main__":
    key = jax.random.PRNGKey(0)
    pkey, skey = jax.random.split(key)
    params = init_params(pkey)
    slab = pack_params(params)            # one-time parameter packing (outside jit)

    src = jax.random.randint(skey, (SEQ, BATCH), 0, NMOVIES, dtype=jnp.int32)
    # causal additive mask (finite large-negative instead of -inf to stay NaN-safe)
    causal = jnp.where(jnp.triu(jnp.ones((SEQ, SEQ), dtype=jnp.bool_), k=1),
                       NEG, 0.0).astype(jnp.float32)
    src_pad_mask = jnp.zeros((BATCH, SEQ), dtype=jnp.bool_).at[1, SEQ - 2:].set(True)

    fwd = jax.jit(vanilla_transformer_forward)
    out = jax.block_until_ready(fwd(src, causal, src_pad_mask, slab))

    assert out.shape == (SEQ, BATCH, NMOVIES), out.shape
    assert bool(jnp.all(jnp.isfinite(out)))
    print("KERNEL_OK")
</pallas_src>

<mosaic_0001>
module attributes {stable_mosaic.version = 11 : i64} {
  func.func @fused_transformer_kernel(%arg0: memref<16x1xi32, #tpu.memory_space<vmem>>, %arg1: memref<8x8xf32, #tpu.memory_space<vmem>>, %arg2: memref<1x16xf32, #tpu.memory_space<vmem>>, %arg3: memref<472x128xf32, #tpu.memory_space<vmem>>, %arg4: memref<16x128xf32, #tpu.memory_space<vmem>>) attributes {dimension_semantics = [], scalar_prefetch = 0 : i64, scratch_operands = 0 : i64, tpu.core_type = #tpu.core_type<tc>} {
    %c0 = arith.constant 0 : index
    %c0_0 = arith.constant 0 : index
    %0 = vector.load %arg0[%c0, %c0_0] : memref<16x1xi32, #tpu.memory_space<vmem>>, vector<16x1xi32>
    %1 = tpu.iota {dimensions = array<i32: 1>} : vector<16x64xi32>
    %2 = vector.broadcast %0 : vector<16x1xi32> to vector<16x64xi32>
    %3 = arith.cmpi eq, %1, %2 : vector<16x64xi32>
    %4 = arith.extui %3 : vector<16x64xi1> to vector<16x64xi32>
    %5 = arith.sitofp %4 : vector<16x64xi32> to vector<16x64xf32>
    %c0_1 = arith.constant 0 : index
    %c0_2 = arith.constant 0 : index
    %6 = vector.load %arg3[%c0_1, %c0_2] : memref<472x128xf32, #tpu.memory_space<vmem>>, vector<64x32xf32>
    %cst = arith.constant dense<0.000000e+00> : vector<16x32xf32>
    %7 = tpu.matmul %5, %6, %cst {dimension_numbers = #tpu.dot_dimension_numbers<[1], [0], [0], [1], [0, 0, 1, 1], [], []>} : vector<16x64xf32>, vector<64x32xf32>, vector<16x32xf32> -> vector<16x32xf32>
    %c64 = arith.constant 64 : index
    %c0_3 = arith.constant 0 : index
    %8 = vector.load %arg3[%c64, %c0_3] : memref<472x128xf32, #tpu.memory_space<vmem>>, vector<16x32xf32>
    %9 = arith.addf %7, %8 : vector<16x32xf32>
    %c0_4 = arith.constant 0 : index
    %c0_5 = arith.constant 0 : index
    %10 = vector.load %arg1[%c0_4, %c0_5] : memref<8x8xf32, #tpu.memory_space<vmem>>, vector<8x8xf32>
    %11 = tpu.concatenate %10, %10 in 1 : vector<8x8xf32>, vector<8x8xf32> -> vector<8x16xf32>
    %12 = tpu.concatenate %11, %11 in 0 : vector<8x16xf32>, vector<8x16xf32> -> vector<16x16xf32>
    %c120 = arith.constant 120 : index
    %c0_6 = arith.constant 0 : index
    %13 = vector.load %arg3[%c120, %c0_6] : memref<472x128xf32, #tpu.memory_space<vmem>>, vector<16x16xf32>
    %14 = arith.addf %13, %12 : vector<16x16xf32>
    %c0_7 = arith.constant 0 : index
    %c0_8 = arith.constant 0 : index
    %15 = vector.load %arg2[%c0_7, %c0_8] : memref<1x16xf32, #tpu.memory_space<vmem>>, vector<1x16xf32>
    %16 = vector.broadcast %15 : vector<1x16xf32> to vector<16x16xf32>
    %17 = arith.addf %14, %16 : vector<16x16xf32>
    %c136 = arith.constant 136 : index
    %c0_9 = arith.constant 0 : index
    %18 = vector.load %arg3[%c136, %c0_9] : memref<472x128xf32, #tpu.memory_space<vmem>>, vector<32x96xf32>
    %c168 = arith.constant 168 : index
    %c0_10 = arith.constant 0 : index
    %19 = vector.load %arg3[%c168, %c0_10] : memref<472x128xf32, #tpu.memory_space<vmem>>, vector<32x32xf32>
    %c200 = arith.constant 200 : index
    %c0_11 = arith.constant 0 : index
    %20 = vector.load %arg3[%c200, %c0_11] : memref<472x128xf32, #tpu.memory_space<vmem>>, vector<32x64xf32>
    %c232 = arith.constant 232 : index
    %c0_12 = arith.constant 0 : index
    %21 = vector.load %arg3[%c232, %c0_12] : memref<472x128xf32, #tpu.memory_space<vmem>>, vector<64x32xf32>
    %c296 = arith.constant 296 : index
    %c0_13 = arith.constant 0 : index
    %22 = vector.load %arg3[%c296, %c0_13] : memref<472x128xf32, #tpu.memory_space<vmem>>, vector<1x96xf32>
    %c297 = arith.constant 297 : index
    %c0_14 = arith.constant 0 : index
    %23 = vector.load %arg3[%c297, %c0_14] : memref<472x128xf32, #tpu.memory_space<vmem>>, vector<1x32xf32>
    %c298 = arith.constant 298 : index
    %c0_15 = arith.constant 0 : index
    %24 = vector.load %arg3[%c298, %c0_15] : memref<472x128xf32, #tpu.memory_space<vmem>>, vector<1x32xf32>
    %c299 = arith.constant 299 : index
    %c0_16 = arith.constant 0 : index
    %25 = vector.load %arg3[%c299, %c0_16] : memref<472x128xf32, #tpu.memory_space<vmem>>, vector<1x32xf32>
    %c300 = arith.constant 300 : index
    %c0_17 = arith.constant 0 : index
    %26 = vector.load %arg3[%c300, %c0_17] : memref<472x128xf32, #tpu.memory_space<vmem>>, vector<1x64xf32>
    %c301 = arith.constant 301 : index
    %c0_18 = arith.constant 0 : index
    %27 = vector.load %arg3[%c301, %c0_18] : memref<472x128xf32, #tpu.memory_space<vmem>>, vector<1x32xf32>
    %c302 = arith.constant 302 : index
    %c0_19 = arith.constant 0 : index
    %28 = vector.load %arg3[%c302, %c0_19] : memref<472x128xf32, #tpu.memory_space<vmem>>, vector<1x32xf32>
    %c303 = arith.constant 303 : index
    %c0_20 = arith.constant 0 : index
    %29 = vector.load %arg3[%c303, %c0_20] : memref<472x128xf32, #tpu.memory_space<vmem>>, vector<1x32xf32>
    %cst_21 = arith.constant dense<0.000000e+00> : vector<16x96xf32>
    %30 = tpu.matmul %9, %18, %cst_21 {dimension_numbers = #tpu.dot_dimension_numbers<[1], [0], [0], [1], [0, 0, 1, 1], [], []>} : vector<16x32xf32>, vector<32x96xf32>, vector<16x96xf32> -> vector<16x96xf32>
    %31 = vector.broadcast %22 : vector<1x96xf32> to vector<16x96xf32>
    %32 = arith.addf %30, %31 : vector<16x96xf32>
    %33 = vector.extract_strided_slice %32 {offsets = [0, 0], sizes = [16, 8], strides = [1, 1]} : vector<16x96xf32> to vector<16x8xf32>
    %34 = vector.extract_strided_slice %32 {offsets = [0, 8], sizes = [16, 8], strides = [1, 1]} : vector<16x96xf32> to vector<16x8xf32>
    %35 = vector.extract_strided_slice %32 {offsets = [0, 16], sizes = [16, 8], strides = [1, 1]} : vector<16x96xf32> to vector<16x8xf32>
    %36 = vector.extract_strided_slice %32 {offsets = [0, 24], sizes = [16, 8], strides = [1, 1]} : vector<16x96xf32> to vector<16x8xf32>
    %37 = vector.shape_cast %33 : vector<16x8xf32> to vector<1x16x8xf32>
    %38 = vector.shape_cast %34 : vector<16x8xf32> to vector<1x16x8xf32>
    %39 = vector.shape_cast %35 : vector<16x8xf32> to vector<1x16x8xf32>
    %40 = vector.shape_cast %36 : vector<16x8xf32> to vector<1x16x8xf32>
    %41 = tpu.concatenate %37, %38, %39, %40 in 0 : vector<1x16x8xf32>, vector<1x16x8xf32>, vector<1x16x8xf32>, vector<1x16x8xf32> -> vector<4x16x8xf32>
    %42 = vector.extract_strided_slice %32 {offsets = [0, 32], sizes = [16, 8], strides = [1, 1]} : vector<16x96xf32> to vector<16x8xf32>
    %43 = vector.extract_strided_slice %32 {offsets = [0, 40], sizes = [16, 8], strides = [1, 1]} : vector<16x96xf32> to vector<16x8xf32>
    %44 = vector.extract_strided_slice %32 {offsets = [0, 48], sizes = [16, 8], strides = [1, 1]} : vector<16x96xf32> to vector<16x8xf32>
    %45 = vector.extract_strided_slice %32 {offsets = [0, 56], sizes = [16, 8], strides = [1, 1]} : vector<16x96xf32> to vector<16x8xf32>
    %46 = vector.shape_cast %42 : vector<16x8xf32> to vector<1x16x8xf32>
    %47 = vector.shape_cast %43 : vector<16x8xf32> to vector<1x16x8xf32>
    %48 = vector.shape_cast %44 : vector<16x8xf32> to vector<1x16x8xf32>
    %49 = vector.shape_cast %45 : vector<16x8xf32> to vector<1x16x8xf32>
    %50 = tpu.concatenate %46, %47, %48, %49 in 0 : vector<1x16x8xf32>, vector<1x16x8xf32>, vector<1x16x8xf32>, vector<1x16x8xf32> -> vector<4x16x8xf32>
    %51 = vector.extract_strided_slice %32 {offsets = [0, 64], sizes = [16, 8], strides = [1, 1]} : vector<16x96xf32> to vector<16x8xf32>
    %52 = vector.extract_strided_slice %32 {offsets = [0, 72], sizes = [16, 8], strides = [1, 1]} : vector<16x96xf32> to vector<16x8xf32>
    %53 = vector.extract_strided_slice %32 {offsets = [0, 80], sizes = [16, 8], strides = [1, 1]} : vector<16x96xf32> to vector<16x8xf32>
    %54 = vector.extract_strided_slice %32 {offsets = [0, 88], sizes = [16, 8], strides = [1, 1]} : vector<16x96xf32> to vector<16x8xf32>
    %55 = vector.shape_cast %51 : vector<16x8xf32> to vector<1x16x8xf32>
    %56 = vector.shape_cast %52 : vector<16x8xf32> to vector<1x16x8xf32>
    %57 = vector.shape_cast %53 : vector<16x8xf32> to vector<1x16x8xf32>
    %58 = vector.shape_cast %54 : vector<16x8xf32> to vector<1x16x8xf32>
    %59 = tpu.concatenate %55, %56, %57, %58 in 0 : vector<1x16x8xf32>, vector<1x16x8xf32>, vector<1x16x8xf32>, vector<1x16x8xf32> -> vector<4x16x8xf32>
    "tpu.trace_start"() <{level = 10 : i32, message = "hqd,hkd->hqk"}> : () -> ()
    %cst_22 = arith.constant dense<0.000000e+00> : vector<4x16x16xf32>
    %60 = tpu.matmul %41, %50, %cst_22 {dimension_numbers = #tpu.dot_dimension_numbers<[2], [2], [1], [1], [0, 0, 0, 1, 1, 1], [0], [0]>} : vector<4x16x8xf32>, vector<4x16x8xf32>, vector<4x16x16xf32> -> vector<4x16x16xf32>
    "tpu.trace_stop"() : () -> ()
    %61 = vector.shape_cast %17 : vector<16x16xf32> to vector<1x16x16xf32>
    %62 = vector.broadcast %61 : vector<1x16x16xf32> to vector<4x16x16xf32>
    %63 = arith.addf %60, %62 : vector<4x16x16xf32>
    %cst_23 = arith.constant dense<0xFF800000> : vector<4x16xf32>
    %64 = vector.multi_reduction <maximumf>, %63, %cst_23 [2] : vector<4x16x16xf32> to vector<4x16xf32>
    %65 = vector.shape_cast %64 : vector<4x16xf32> to vector<4x16x1xf32>
    %66 = vector.broadcast %65 : vector<4x16x1xf32> to vector<4x16x16xf32>
    %67 = arith.subf %63, %66 : vector<4x16x16xf32>
    %68 = math.exp %67 : vector<4x16x16xf32>
    %cst_24 = arith.constant dense<0.000000e+00> : vector<4x16xf32>
    %69 = vector.multi_reduction <add>, %68, %cst_24 [2] : vector<4x16x16xf32> to vector<4x16xf32>
    %70 = vector.shape_cast %69 : vector<4x16xf32> to vector<4x16x1xf32>
    %71 = tpu.reciprocal %70 {approx = true} : vector<4x16x1xf32> -> vector<4x16x1xf32>
    %72 = vector.broadcast %71 : vector<4x16x1xf32> to vector<4x16x16xf32>
    %73 = arith.mulf %68, %72 : vector<4x16x16xf32>
    "tpu.trace_start"() <{level = 10 : i32, message = "hqk,hkd->hqd"}> : () -> ()
    %cst_25 = arith.constant dense<0.000000e+00> : vector<4x16x8xf32>
    %74 = tpu.matmul %73, %59, %cst_25 {dimension_numbers = #tpu.dot_dimension_numbers<[2], [1], [1], [2], [0, 0, 0, 1, 1, 2], [0], [0]>} : vector<4x16x16xf32>, vector<4x16x8xf32>, vector<4x16x8xf32> -> vector<4x16x8xf32>
    "tpu.trace_stop"() : () -> ()
    %75 = vector.extract_strided_slice %74 {offsets = [0, 0, 0], sizes = [1, 16, 8], strides = [1, 1, 1]} : vector<4x16x8xf32> to vector<1x16x8xf32>
    %76 = vector.shape_cast %75 : vector<1x16x8xf32> to vector<16x8xf32>
    %77 = vector.extract_strided_slice %74 {offsets = [1, 0, 0], sizes = [1, 16, 8], strides = [1, 1, 1]} : vector<4x16x8xf32> to vector<1x16x8xf32>
    %78 = vector.shape_cast %77 : vector<1x16x8xf32> to vector<16x8xf32>
    %79 = vector.extract_strided_slice %74 {offsets = [2, 0, 0], sizes = [1, 16, 8], strides = [1, 1, 1]} : vector<4x16x8xf32> to vector<1x16x8xf32>
    %80 = vector.shape_cast %79 : vector<1x16x8xf32> to vector<16x8xf32>
    %81 = vector.extract_strided_slice %74 {offsets = [3, 0, 0], sizes = [1, 16, 8], strides = [1, 1, 1]} : vector<4x16x8xf32> to vector<1x16x8xf32>
    %82 = vector.shape_cast %81 : vector<1x16x8xf32> to vector<16x8xf32>
    %83 = tpu.concatenate %76, %78, %80, %82 in 1 : vector<16x8xf32>, vector<16x8xf32>, vector<16x8xf32>, vector<16x8xf32> -> vector<16x32xf32>
    %cst_26 = arith.constant dense<0.000000e+00> : vector<16x32xf32>
    %84 = tpu.matmul %83, %19, %cst_26 {dimension_numbers = #tpu.dot_dimension_numbers<[1], [0], [0], [1], [0, 0, 1, 1], [], []>} : vector<16x32xf32>, vector<32x32xf32>, vector<16x32xf32> -> vector<16x32xf32>
    %85 = vector.broadcast %23 : vector<1x32xf32> to vector<16x32xf32>
    %86 = arith.addf %84, %85 : vector<16x32xf32>
    %87 = arith.addf %9, %86 : vector<16x32xf32>
    %cst_27 = arith.constant dense<0.000000e+00> : vector<16xf32>
    %88 = vector.multi_reduction <add>, %87, %cst_27 [1] : vector<16x32xf32> to vector<16xf32>
    %89 = vector.shape_cast %88 : vector<16xf32> to vector<16x1xf32>
    %cst_28 = arith.constant 3.200000e+01 : f32
    %90 = vector.broadcast %cst_28 : f32 to vector<16x1xf32>
    %91 = arith.divf %89, %90 : vector<16x1xf32>
    %92 = vector.broadcast %91 : vector<16x1xf32> to vector<16x32xf32>
    %93 = arith.subf %87, %92 : vector<16x32xf32>
    %94 = arith.mulf %93, %93 : vector<16x32xf32>
    %cst_29 = arith.constant dense<0.000000e+00> : vector<16xf32>
    %95 = vector.multi_reduction <add>, %94, %cst_29 [1] : vector<16x32xf32> to vector<16xf32>
    %96 = vector.shape_cast %95 : vector<16xf32> to vector<16x1xf32>
    %cst_30 = arith.constant 3.200000e+01 : f32
    %97 = vector.broadcast %cst_30 : f32 to vector<16x1xf32>
    %98 = arith.divf %96, %97 : vector<16x1xf32>
    %99 = vector.broadcast %91 : vector<16x1xf32> to vector<16x32xf32>
    %100 = arith.subf %87, %99 : vector<16x32xf32>
    %cst_31 = arith.constant 9.99999974E-6 : f32
    %101 = vector.broadcast %cst_31 : f32 to vector<16x1xf32>
    %102 = arith.addf %98, %101 : vector<16x1xf32>
    %103 = math.rsqrt %102 : vector<16x1xf32>
    %104 = vector.broadcast %103 : vector<16x1xf32> to vector<16x32xf32>
    %105 = arith.mulf %100, %104 : vector<16x32xf32>
    %106 = vector.broadcast %24 : vector<1x32xf32> to vector<16x32xf32>
    %107 = arith.mulf %105, %106 : vector<16x32xf32>
    %108 = vector.broadcast %25 : vector<1x32xf32> to vector<16x32xf32>
    %109 = arith.addf %107, %108 : vector<16x32xf32>
    %cst_32 = arith.constant dense<0.000000e+00> : vector<16x64xf32>
    %110 = tpu.matmul %109, %20, %cst_32 {dimension_numbers = #tpu.dot_dimension_numbers<[1], [0], [0], [1], [0, 0, 1, 1], [], []>} : vector<16x32xf32>, vector<32x64xf32>, vector<16x64xf32> -> vector<16x64xf32>
    %111 = vector.broadcast %26 : vector<1x64xf32> to vector<16x64xf32>
    %112 = arith.addf %110, %111 : vector<16x64xf32>
    %cst_33 = arith.constant 0.000000e+00 : f32
    %113 = vector.broadcast %cst_33 : f32 to vector<16x64xf32>
    %114 = arith.maximumf %112, %113 : vector<16x64xf32>
    %cst_34 = arith.constant dense<0.000000e+00> : vector<16x32xf32>
    %115 = tpu.matmul %114, %21, %cst_34 {dimension_numbers = #tpu.dot_dimension_numbers<[1], [0], [0], [1], [0, 0, 1, 1], [], []>} : vector<16x64xf32>, vector<64x32xf32>, vector<16x32xf32> -> vector<16x32xf32>
    %116 = vector.broadcast %27 : vector<1x32xf32> to vector<16x32xf32>
    %117 = arith.addf %115, %116 : vector<16x32xf32>
    %118 = arith.addf %109, %117 : vector<16x32xf32>
    %cst_35 = arith.constant dense<0.000000e+00> : vector<16xf32>
    %119 = vector.multi_reduction <add>, %118, %cst_35 [1] : vector<16x32xf32> to vector<16xf32>
    %120 = vector.shape_cast %119 : vector<16xf32> to vector<16x1xf32>
    %cst_36 = arith.constant 3.200000e+01 : f32
    %121 = vector.broadcast %cst_36 : f32 to vector<16x1xf32>
    %122 = arith.divf %120, %121 : vector<16x1xf32>
    %123 = vector.broadcast %122 : vector<16x1xf32> to vector<16x32xf32>
    %124 = arith.subf %118, %123 : vector<16x32xf32>
    %125 = arith.mulf %124, %124 : vector<16x32xf32>
    %cst_37 = arith.constant dense<0.000000e+00> : vector<16xf32>
    %126 = vector.multi_reduction <add>, %125, %cst_37 [1] : vector<16x32xf32> to vector<16xf32>
    %127 = vector.shape_cast %126 : vector<16xf32> to vector<16x1xf32>
    %cst_38 = arith.constant 3.200000e+01 : f32
    %128 = vector.broadcast %cst_38 : f32 to vector<16x1xf32>
    %129 = arith.divf %127, %128 : vector<16x1xf32>
    %130 = vector.broadcast %122 : vector<16x1xf32> to vector<16x32xf32>
    %131 = arith.subf %118, %130 : vector<16x32xf32>
    %cst_39 = arith.constant 9.99999974E-6 : f32
    %132 = vector.broadcast %cst_39 : f32 to vector<16x1xf32>
    %133 = arith.addf %129, %132 : vector<16x1xf32>
    %134 = math.rsqrt %133 : vector<16x1xf32>
    %135 = vector.broadcast %134 : vector<16x1xf32> to vector<16x32xf32>
    %136 = arith.mulf %131, %135 : vector<16x32xf32>
    %137 = vector.broadcast %28 : vector<1x32xf32> to vector<16x32xf32>
    %138 = arith.mulf %136, %137 : vector<16x32xf32>
    %139 = vector.broadcast %29 : vector<1x32xf32> to vector<16x32xf32>
    %140 = arith.addf %138, %139 : vector<16x32xf32>
    %c304 = arith.constant 304 : index
    %c0_40 = arith.constant 0 : index
    %141 = vector.load %arg3[%c304, %c0_40] : memref<472x128xf32, #tpu.memory_space<vmem>>, vector<32x96xf32>
    %c336 = arith.constant 336 : index
    %c0_41 = arith.constant 0 : index
    %142 = vector.load %arg3[%c336, %c0_41] : memref<472x128xf32, #tpu.memory_space<vmem>>, vector<32x32xf32>
    %c368 = arith.constant 368 : index
    %c0_42 = arith.constant 0 : index
    %143 = vector.load %arg3[%c368, %c0_42] : memref<472x128xf32, #tpu.memory_space<vmem>>, vector<32x64xf32>
    %c400 = arith.constant 400 : index
    %c0_43 = arith.constant 0 : index
    %144 = vector.load %arg3[%c400, %c0_43] : memref<472x128xf32, #tpu.memory_space<vmem>>, vector<64x32xf32>
    %c464 = arith.constant 464 : index
    %c0_44 = arith.constant 0 : index
    %145 = vector.load %arg3[%c464, %c0_44] : memref<472x128xf32, #tpu.memory_space<vmem>>, vector<1x96xf32>
    %c465 = arith.constant 465 : index
    %c0_45 = arith.constant 0 : index
    %146 = vector.load %arg3[%c465, %c0_45] : memref<472x128xf32, #tpu.memory_space<vmem>>, vector<1x32xf32>
    %c466 = arith.constant 466 : index
    %c0_46 = arith.constant 0 : index
    %147 = vector.load %arg3[%c466, %c0_46] : memref<472x128xf32, #tpu.memory_space<vmem>>, vector<1x32xf32>
    %c467 = arith.constant 467 : index
    %c0_47 = arith.constant 0 : index
    %148 = vector.load %arg3[%c467, %c0_47] : memref<472x128xf32, #tpu.memory_space<vmem>>, vector<1x32xf32>
    %c468 = arith.constant 468 : index
    %c0_48 = arith.constant 0 : index
    %149 = vector.load %arg3[%c468, %c0_48] : memref<472x128xf32, #tpu.memory_space<vmem>>, vector<1x64xf32>
    %c469 = arith.constant 469 : index
    %c0_49 = arith.constant 0 : index
    %150 = vector.load %arg3[%c469, %c0_49] : memref<472x128xf32, #tpu.memory_space<vmem>>, vector<1x32xf32>
    %c470 = arith.constant 470 : index
    %c0_50 = arith.constant 0 : index
    %151 = vector.load %arg3[%c470, %c0_50] : memref<472x128xf32, #tpu.memory_space<vmem>>, vector<1x32xf32>
    %c471 = arith.constant 471 : index
    %c0_51 = arith.constant 0 : index
    %152 = vector.load %arg3[%c471, %c0_51] : memref<472x128xf32, #tpu.memory_space<vmem>>, vector<1x32xf32>
    %cst_52 = arith.constant dense<0.000000e+00> : vector<16x96xf32>
    %153 = tpu.matmul %140, %141, %cst_52 {dimension_numbers = #tpu.dot_dimension_numbers<[1], [0], [0], [1], [0, 0, 1, 1], [], []>} : vector<16x32xf32>, vector<32x96xf32>, vector<16x96xf32> -> vector<16x96xf32>
    %154 = vector.broadcast %145 : vector<1x96xf32> to vector<16x96xf32>
    %155 = arith.addf %153, %154 : vector<16x96xf32>
    %156 = vector.extract_strided_slice %155 {offsets = [0, 0], sizes = [16, 8], strides = [1, 1]} : vector<16x96xf32> to vector<16x8xf32>
    %157 = vector.extract_strided_slice %155 {offsets = [0, 8], sizes = [16, 8], strides = [1, 1]} : vector<16x96xf32> to vector<16x8xf32>
    %158 = vector.extract_strided_slice %155 {offsets = [0, 16], sizes = [16, 8], strides = [1, 1]} : vector<16x96xf32> to vector<16x8xf32>
    %159 = vector.extract_strided_slice %155 {offsets = [0, 24], sizes = [16, 8], strides = [1, 1]} : vector<16x96xf32> to vector<16x8xf32>
    %160 = vector.shape_cast %156 : vector<16x8xf32> to vector<1x16x8xf32>
    %161 = vector.shape_cast %157 : vector<16x8xf32> to vector<1x16x8xf32>
    %162 = vector.shape_cast %158 : vector<16x8xf32> to vector<1x16x8xf32>
    %163 = vector.shape_cast %159 : vector<16x8xf32> to vector<1x16x8xf32>
    %164 = tpu.concatenate %160, %161, %162, %163 in 0 : vector<1x16x8xf32>, vector<1x16x8xf32>, vector<1x16x8xf32>, vector<1x16x8xf32> -> vector<4x16x8xf32>
    %165 = vector.extract_strided_slice %155 {offsets = [0, 32], sizes = [16, 8], strides = [1, 1]} : vector<16x96xf32> to vector<16x8xf32>
    %166 = vector.extract_strided_slice %155 {offsets = [0, 40], sizes = [16, 8], strides = [1, 1]} : vector<16x96xf32> to vector<16x8xf32>
    %167 = vector.extract_strided_slice %155 {offsets = [0, 48], sizes = [16, 8], strides = [1, 1]} : vector<16x96xf32> to vector<16x8xf32>
    %168 = vector.extract_strided_slice %155 {offsets = [0, 56], sizes = [16, 8], strides = [1, 1]} : vector<16x96xf32> to vector<16x8xf32>
    %169 = vector.shape_cast %165 : vector<16x8xf32> to vector<1x16x8xf32>
    %170 = vector.shape_cast %166 : vector<16x8xf32> to vector<1x16x8xf32>
    %171 = vector.shape_cast %167 : vector<16x8xf32> to vector<1x16x8xf32>
    %172 = vector.shape_cast %168 : vector<16x8xf32> to vector<1x16x8xf32>
    %173 = tpu.concatenate %169, %170, %171, %172 in 0 : vector<1x16x8xf32>, vector<1x16x8xf32>, vector<1x16x8xf32>, vector<1x16x8xf32> -> vector<4x16x8xf32>
    %174 = vector.extract_strided_slice %155 {offsets = [0, 64], sizes = [16, 8], strides = [1, 1]} : vector<16x96xf32> to vector<16x8xf32>
    %175 = vector.extract_strided_slice %155 {offsets = [0, 72], sizes = [16, 8], strides = [1, 1]} : vector<16x96xf32> to vector<16x8xf32>
    %176 = vector.extract_strided_slice %155 {offsets = [0, 80], sizes = [16, 8], strides = [1, 1]} : vector<16x96xf32> to vector<16x8xf32>
    %177 = vector.extract_strided_slice %155 {offsets = [0, 88], sizes = [16, 8], strides = [1, 1]} : vector<16x96xf32> to vector<16x8xf32>
    %178 = vector.shape_cast %174 : vector<16x8xf32> to vector<1x16x8xf32>
    %179 = vector.shape_cast %175 : vector<16x8xf32> to vector<1x16x8xf32>
    %180 = vector.shape_cast %176 : vector<16x8xf32> to vector<1x16x8xf32>
    %181 = vector.shape_cast %177 : vector<16x8xf32> to vector<1x16x8xf32>
    %182 = tpu.concatenate %178, %179, %180, %181 in 0 : vector<1x16x8xf32>, vector<1x16x8xf32>, vector<1x16x8xf32>, vector<1x16x8xf32> -> vector<4x16x8xf32>
    "tpu.trace_start"() <{level = 10 : i32, message = "hqd,hkd->hqk"}> : () -> ()
    %cst_53 = arith.constant dense<0.000000e+00> : vector<4x16x16xf32>
    %183 = tpu.matmul %164, %173, %cst_53 {dimension_numbers = #tpu.dot_dimension_numbers<[2], [2], [1], [1], [0, 0, 0, 1, 1, 1], [0], [0]>} : vector<4x16x8xf32>, vector<4x16x8xf32>, vector<4x16x16xf32> -> vector<4x16x16xf32>
    "tpu.trace_stop"() : () -> ()
    %184 = vector.shape_cast %17 : vector<16x16xf32> to vector<1x16x16xf32>
    %185 = vector.broadcast %184 : vector<1x16x16xf32> to vector<4x16x16xf32>
    %186 = arith.addf %183, %185 : vector<4x16x16xf32>
    %cst_54 = arith.constant dense<0xFF800000> : vector<4x16xf32>
    %187 = vector.multi_reduction <maximumf>, %186, %cst_54 [2] : vector<4x16x16xf32> to vector<4x16xf32>
    %188 = vector.shape_cast %187 : vector<4x16xf32> to vector<4x16x1xf32>
    %189 = vector.broadcast %188 : vector<4x16x1xf32> to vector<4x16x16xf32>
    %190 = arith.subf %186, %189 : vector<4x16x16xf32>
    %191 = math.exp %190 : vector<4x16x16xf32>
    %cst_55 = arith.constant dense<0.000000e+00> : vector<4x16xf32>
    %192 = vector.multi_reduction <add>, %191, %cst_55 [2] : vector<4x16x16xf32> to vector<4x16xf32>
    %193 = vector.shape_cast %192 : vector<4x16xf32> to vector<4x16x1xf32>
    %194 = tpu.reciprocal %193 {approx = true} : vector<4x16x1xf32> -> vector<4x16x1xf32>
    %195 = vector.broadcast %194 : vector<4x16x1xf32> to vector<4x16x16xf32>
    %196 = arith.mulf %191, %195 : vector<4x16x16xf32>
    "tpu.trace_start"() <{level = 10 : i32, message = "hqk,hkd->hqd"}> : () -> ()
    %cst_56 = arith.constant dense<0.000000e+00> : vector<4x16x8xf32>
    %197 = tpu.matmul %196, %182, %cst_56 {dimension_numbers = #tpu.dot_dimension_numbers<[2], [1], [1], [2], [0, 0, 0, 1, 1, 2], [0], [0]>} : vector<4x16x16xf32>, vector<4x16x8xf32>, vector<4x16x8xf32> -> vector<4x16x8xf32>
    "tpu.trace_stop"() : () -> ()
    %198 = vector.extract_strided_slice %197 {offsets = [0, 0, 0], sizes = [1, 16, 8], strides = [1, 1, 1]} : vector<4x16x8xf32> to vector<1x16x8xf32>
    %199 = vector.shape_cast %198 : vector<1x16x8xf32> to vector<16x8xf32>
    %200 = vector.extract_strided_slice %197 {offsets = [1, 0, 0], sizes = [1, 16, 8], strides = [1, 1, 1]} : vector<4x16x8xf32> to vector<1x16x8xf32>
    %201 = vector.shape_cast %200 : vector<1x16x8xf32> to vector<16x8xf32>
    %202 = vector.extract_strided_slice %197 {offsets = [2, 0, 0], sizes = [1, 16, 8], strides = [1, 1, 1]} : vector<4x16x8xf32> to vector<1x16x8xf32>
    %203 = vector.shape_cast %202 : vector<1x16x8xf32> to vector<16x8xf32>
    %204 = vector.extract_strided_slice %197 {offsets = [3, 0, 0], sizes = [1, 16, 8], strides = [1, 1, 1]} : vector<4x16x8xf32> to vector<1x16x8xf32>
    %205 = vector.shape_cast %204 : vector<1x16x8xf32> to vector<16x8xf32>
    %206 = tpu.concatenate %199, %201, %203, %205 in 1 : vector<16x8xf32>, vector<16x8xf32>, vector<16x8xf32>, vector<16x8xf32> -> vector<16x32xf32>
    %cst_57 = arith.constant dense<0.000000e+00> : vector<16x32xf32>
    %207 = tpu.matmul %206, %142, %cst_57 {dimension_numbers = #tpu.dot_dimension_numbers<[1], [0], [0], [1], [0, 0, 1, 1], [], []>} : vector<16x32xf32>, vector<32x32xf32>, vector<16x32xf32> -> vector<16x32xf32>
    %208 = vector.broadcast %146 : vector<1x32xf32> to vector<16x32xf32>
    %209 = arith.addf %207, %208 : vector<16x32xf32>
    %210 = arith.addf %140, %209 : vector<16x32xf32>
    %cst_58 = arith.constant dense<0.000000e+00> : vector<16xf32>
    %211 = vector.multi_reduction <add>, %210, %cst_58 [1] : vector<16x32xf32> to vector<16xf32>
    %212 = vector.shape_cast %211 : vector<16xf32> to vector<16x1xf32>
    %cst_59 = arith.constant 3.200000e+01 : f32
    %213 = vector.broadcast %cst_59 : f32 to vector<16x1xf32>
    %214 = arith.divf %212, %213 : vector<16x1xf32>
    %215 = vector.broadcast %214 : vector<16x1xf32> to vector<16x32xf32>
    %216 = arith.subf %210, %215 : vector<16x32xf32>
    %217 = arith.mulf %216, %216 : vector<16x32xf32>
    %cst_60 = arith.constant dense<0.000000e+00> : vector<16xf32>
    %218 = vector.multi_reduction <add>, %217, %cst_60 [1] : vector<16x32xf32> to vector<16xf32>
    %219 = vector.shape_cast %218 : vector<16xf32> to vector<16x1xf32>
    %cst_61 = arith.constant 3.200000e+01 : f32
    %220 = vector.broadcast %cst_61 : f32 to vector<16x1xf32>
    %221 = arith.divf %219, %220 : vector<16x1xf32>
    %222 = vector.broadcast %214 : vector<16x1xf32> to vector<16x32xf32>
    %223 = arith.subf %210, %222 : vector<16x32xf32>
    %cst_62 = arith.constant 9.99999974E-6 : f32
    %224 = vector.broadcast %cst_62 : f32 to vector<16x1xf32>
    %225 = arith.addf %221, %224 : vector<16x1xf32>
    %226 = math.rsqrt %225 : vector<16x1xf32>
    %227 = vector.broadcast %226 : vector<16x1xf32> to vector<16x32xf32>
    %228 = arith.mulf %223, %227 : vector<16x32xf32>
    %229 = vector.broadcast %147 : vector<1x32xf32> to vector<16x32xf32>
    %230 = arith.mulf %228, %229 : vector<16x32xf32>
    %231 = vector.broadcast %148 : vector<1x32xf32> to vector<16x32xf32>
    %232 = arith.addf %230, %231 : vector<16x32xf32>
    %cst_63 = arith.constant dense<0.000000e+00> : vector<16x64xf32>
    %233 = tpu.matmul %232, %143, %cst_63 {dimension_numbers = #tpu.dot_dimension_numbers<[1], [0], [0], [1], [0, 0, 1, 1], [], []>} : vector<16x32xf32>, vector<32x64xf32>, vector<16x64xf32> -> vector<16x64xf32>
    %234 = vector.broadcast %149 : vector<1x64xf32> to vector<16x64xf32>
    %235 = arith.addf %233, %234 : vector<16x64xf32>
    %cst_64 = arith.constant 0.000000e+00 : f32
    %236 = vector.broadcast %cst_64 : f32 to vector<16x64xf32>
    %237 = arith.maximumf %235, %236 : vector<16x64xf32>
    %cst_65 = arith.constant dense<0.000000e+00> : vector<16x32xf32>
    %238 = tpu.matmul %237, %144, %cst_65 {dimension_numbers = #tpu.dot_dimension_numbers<[1], [0], [0], [1], [0, 0, 1, 1], [], []>} : vector<16x64xf32>, vector<64x32xf32>, vector<16x32xf32> -> vector<16x32xf32>
    %239 = vector.broadcast %150 : vector<1x32xf32> to vector<16x32xf32>
    %240 = arith.addf %238, %239 : vector<16x32xf32>
    %241 = arith.addf %232, %240 : vector<16x32xf32>
    %cst_66 = arith.constant dense<0.000000e+00> : vector<16xf32>
    %242 = vector.multi_reduction <add>, %241, %cst_66 [1] : vector<16x32xf32> to vector<16xf32>
    %243 = vector.shape_cast %242 : vector<16xf32> to vector<16x1xf32>
    %cst_67 = arith.constant 3.200000e+01 : f32
    %244 = vector.broadcast %cst_67 : f32 to vector<16x1xf32>
    %245 = arith.divf %243, %244 : vector<16x1xf32>
    %246 = vector.broadcast %245 : vector<16x1xf32> to vector<16x32xf32>
    %247 = arith.subf %241, %246 : vector<16x32xf32>
    %248 = arith.mulf %247, %247 : vector<16x32xf32>
    %cst_68 = arith.constant dense<0.000000e+00> : vector<16xf32>
    %249 = vector.multi_reduction <add>, %248, %cst_68 [1] : vector<16x32xf32> to vector<16xf32>
    %250 = vector.shape_cast %249 : vector<16xf32> to vector<16x1xf32>
    %cst_69 = arith.constant 3.200000e+01 : f32
    %251 = vector.broadcast %cst_69 : f32 to vector<16x1xf32>
    %252 = arith.divf %250, %251 : vector<16x1xf32>
    %253 = vector.broadcast %245 : vector<16x1xf32> to vector<16x32xf32>
    %254 = arith.subf %241, %253 : vector<16x32xf32>
    %cst_70 = arith.constant 9.99999974E-6 : f32
    %255 = vector.broadcast %cst_70 : f32 to vector<16x1xf32>
    %256 = arith.addf %252, %255 : vector<16x1xf32>
    %257 = math.rsqrt %256 : vector<16x1xf32>
    %258 = vector.broadcast %257 : vector<16x1xf32> to vector<16x32xf32>
    %259 = arith.mulf %254, %258 : vector<16x32xf32>
    %260 = vector.broadcast %151 : vector<1x32xf32> to vector<16x32xf32>
    %261 = arith.mulf %259, %260 : vector<16x32xf32>
    %262 = vector.broadcast %152 : vector<1x32xf32> to vector<16x32xf32>
    %263 = arith.addf %261, %262 : vector<16x32xf32>
    %c80 = arith.constant 80 : index
    %c0_71 = arith.constant 0 : index
    %264 = vector.load %arg3[%c80, %c0_71] : memref<472x128xf32, #tpu.memory_space<vmem>>, vector<32x128xf32>
    %c112 = arith.constant 112 : index
    %c0_72 = arith.constant 0 : index
    %265 = vector.load %arg3[%c112, %c0_72] : memref<472x128xf32, #tpu.memory_space<vmem>>, vector<1x128xf32>
    %cst_73 = arith.constant dense<0.000000e+00> : vector<16x128xf32>
    %266 = tpu.matmul %263, %264, %cst_73 {dimension_numbers = #tpu.dot_dimension_numbers<[1], [0], [0], [1], [0, 0, 1, 1], [], []>} : vector<16x32xf32>, vector<32x128xf32>, vector<16x128xf32> -> vector<16x128xf32>
    %267 = vector.broadcast %265 : vector<1x128xf32> to vector<16x128xf32>
    %268 = arith.addf %266, %267 : vector<16x128xf32>
    %c0_74 = arith.constant 0 : index
    %c0_75 = arith.constant 0 : index
    %269 = vector.load %arg4[%c0_74, %c0_75] : memref<16x128xf32, #tpu.memory_space<vmem>>, vector<16x128xf32>
    tpu.vector_store %arg4[%c0_74, %c0_75], %268 {strides = array<i32>} : memref<16x128xf32, #tpu.memory_space<vmem>>, vector<16x128xf32>,
    return
  }
}

</mosaic_0001>

<llo_original>
// kernel: vanilla_transformer_forward.1
$region0: #{vanilla_transformer_forward.1}
  #allocation0 [shape = 'u32[]', space=smem, size = 0x4, offset = 0x4, fixed_abs, tag = 'smem constant byte address 0x4 - core index']
  #allocation1 [shape = 'u32[144,128]{1,0:T(1,128)}', space=vmem, size = 0x12000, scoped, tag = 'internal scratch']
  %s0 = inlined_call_operand.vmem [shape: s32[16,1], index: 0, kind: input, shape index: {}]
  %s1 = inlined_call_operand.vmem [shape: f32[8,8], index: 1, kind: input, shape index: {}]
  %s2 = inlined_call_operand.vmem [shape: f32[1,16], index: 2, kind: input, shape index: {}]
  %s3 = inlined_call_operand.hbm [shape: f32[472,128], index: 3, kind: input, shape index: {}]
  %s4 = inlined_call_operand.vmem [shape: f32[16,128], index: 4, kind: output, shape index: {}]
  %s5 = sld [smem:[#allocation0]]
  $region30: #{vanilla_transformer_forward.1} parent=0
    _
  %s7 = ssub.s32 1, %s5
  %s8 = scalar_select 0, %s7, %s5
  $region1: #{vanilla_transformer_forward.1} parent=0
    #allocation2 [shape = 'u8[241664]{0}', space=vmem, size = 0x3b000, scoped, tag = 'input window, operand 3, single buffered']
    #allocation3 [shape = 's32[1]{0}', space=sflag, size = 0x4, scoped, tag = 'scoped memory for vanilla_transformer_forward.1']
    %9 = vsyncpa [#allocation3], 0
    // Predicated region
    $region2: #{vanilla_transformer_forward.1} parent=1 // pred_check
      _
    $region3: #{vanilla_transformer_forward.1} parent=1 // pred_check_branch
      %11 = sbr.rel (0) target = $region5
    $region4: #{vanilla_transformer_forward.1} parent=1 // pred_region
      _
    $region5: #{vanilla_transformer_forward.1} parent=1 // pred_fallthru
      _
    // Predicated region
    $region6: #{vanilla_transformer_forward.1} parent=1 // pred_check
      _
    $region7: #{vanilla_transformer_forward.1} parent=1 // pred_check_branch
      %13 = sbr.rel (0) target = $region9
    $region8: #{vanilla_transformer_forward.1} parent=1 // pred_region
      _
    $region9: #{vanilla_transformer_forward.1} parent=1 // pred_fallthru
      _
    // Predicated region
    $region10: #{vanilla_transformer_forward.1} parent=1 // pred_check
      _
    $region11: #{vanilla_transformer_forward.1} parent=1 // pred_check_branch
      %15 = sbr.rel (0) target = $region13
    $region12: #{vanilla_transformer_forward.1} parent=1 // pred_region
      _
    $region13: #{vanilla_transformer_forward.1} parent=1 // pred_fallthru
      _
    // Predicated region
    $region14: #{vanilla_transformer_forward.1} parent=1 // pred_check
      _
    $region15: #{vanilla_transformer_forward.1} parent=1 // pred_check_branch
      %17 = sbr.rel (0) target = $region17
    $region16: #{vanilla_transformer_forward.1} parent=1 // pred_region
      %s19 = ssub.s32 7552, 7552
      %20 = vsyncadd [#allocation3], %s19
      %s21 = sshll.u32 [#allocation2], 4
      %s22 = int_to_ptr.vmem [resolvable:$true] %s21
      %27 = dma.hbm_to_vmem [thread:$0]  %s3, 7552, %s22, [#allocation3], 128, 128, 8
    $region17: #{vanilla_transformer_forward.1} parent=1 // pred_fallthru
      _
    // Predicated region
    $region18: #{vanilla_transformer_forward.1} parent=1 // pred_check
      _
    $region19: #{vanilla_transformer_forward.1} parent=1 // pred_check_branch
      %29 = sbr.rel (0) target = $region21
    $region20: #{vanilla_transformer_forward.1} parent=1 // pred_region
      %30 = dma.done [#allocation3], 7552
    $region21: #{vanilla_transformer_forward.1} parent=1 // pred_fallthru
      _
    %v31 = vld [vmem:[%s0] sm:$0xff]
    %v32 = vld [vmem:[%s0 + $0x8] sm:$0xff]
    %v33 = vlaneseq
    %v34 = vand.u32 %v33, 127
    %35 = vset.pattern.permute.xlu0 0
    %36 = vperm.xlu0 %35, %v31
    %v37 = vpop.permute.xlu0 %36
    %38 = vset.pattern.permute.xlu0 0
    %39 = vperm.xlu0 %38, %v32
    %v40 = vpop.permute.xlu0 %39
    %vm41 = vcmp.eq.s32.totalorder %v34, %v37
    %vm42 = vcmp.eq.s32.totalorder %v34, %v40
    %v43 = vsel %vm41, 1, 0
    %v44 = vsel %vm42, 1, 0
    %v45 = vcvt.s32.f32 %v43
    %v46 = vcvt.s32.f32 %v44
    %v47 = vld [vmem:[#allocation2] sm:$0xff]
    %v48 = vld [vmem:[#allocation2 + $0x8] sm:$0xff]
    %v49 = vld [vmem:[#allocation2 + $0x10] sm:$0xff]
    %v50 = vld [vmem:[#allocation2 + $0x18] sm:$0xff]
    %v51 = vld [vmem:[#allocation2 + $0x20] sm:$0xff]
    %v52 = vld [vmem:[#allocation2 + $0x28] sm:$0xff]
    %v53 = vld [vmem:[#allocation2 + $0x30] sm:$0xff]
    %v54 = vld [vmem:[#allocation2 + $0x38] sm:$0xff]
    %v55 = vld [vmem:[#allocation2 + $0x40] sm:$0xff]
    %v56 = vld [vmem:[#allocation2 + $0x48] sm:$0xff]
    %vm57 = vcmask 523264
    %v59 = vsel %vm57, %v45, 0
    %v62 = vsel %vm57, %v46, 0
    %64 = vmatprep.subr.mxu0 0.0
    %65 = vmatpush1.msra.mxu0 %v47
    %66 = vmatprep.subr.mxu0 0.0
    %67 = vmatpush1.msra.mxu0 %v48
    %68 = vmatprep.subr.mxu0 0.0
    %69 = vmatpush1.msra.mxu0 %v49
    %70 = vmatprep.subr.mxu0 0.0
    %71 = vmatpush1.msra.mxu0 %v50
    %72 = vmatprep.subr.mxu0 0.0
    %73 = vmatpush1.msra.mxu0 %v51
    %74 = vmatprep.subr.mxu0 0.0
    %75 = vmatpush1.msra.mxu0 %v52
    %76 = vmatprep.subr.mxu0 0.0
    %77 = vmatpush1.msra.mxu0 %v53
    %78 = vmatprep.subr.mxu0 0.0
    %79 = vmatpush1.msra.mxu0 %v54
    %80 = vmatprep.subr.mxu0 0.0
    %81 = vmatpush1.msra.mxu0 0.0
    %82 = vmatprep.subr.mxu0 0.0
    %83 = vmatpush1.msra.mxu0 0.0
    %84 = vmatprep.subr.mxu0 0.0
    %85 = vmatpush1.msra.mxu0 0.0
    %86 = vmatprep.subr.mxu0 0.0
    %87 = vmatpush1.msra.mxu0 0.0
    %88 = vmatprep.subr.mxu0 0.0
    %89 = vmatpush1.msra.mxu0 0.0
    %90 = vmatprep.subr.mxu0 0.0
    %91 = vmatpush1.msra.mxu0 0.0
    %92 = vmatprep.subr.mxu0 0.0
    %93 = vmatpush1.msra.mxu0 0.0
    %94 = vmatprep.subr.mxu0 0.0
    %95 = vmatpush1.msra.mxu0 0.0
    %96 = vmatprep.subr.mxu0 0.0
    %97 = vmatpush1.msra.mxu0 0.0
    %98 = vmatprep.subr.mxu0 0.0
    %99 = vmatpush1.msra.mxu0 0.0
    %100 = vmatprep.subr.mxu0 0.0
    %101 = vmatpush1.msra.mxu0 0.0
    %102 = vmatprep.subr.mxu0 0.0
    %103 = vmatpush1.msra.mxu0 0.0
    %104 = vmatprep.subr.mxu0 0.0
    %105 = vmatpush1.msra.mxu0 0.0
    %106 = vmatprep.subr.mxu0 0.0
    %107 = vmatpush1.msra.mxu0 0.0
    %108 = vmatprep.subr.mxu0 0.0
    %109 = vmatpush1.msra.mxu0 0.0
    %110 = vmatprep.subr.mxu0 0.0
    %111 = vmatpush1.msra.mxu0 0.0
    %112 = vmatprep.subr.mxu0 0.0
    %113 = vmatpush1.msra.mxu0 0.0
    %114 = vmatprep.subr.mxu0 0.0
    %115 = vmatpush1.msra.mxu0 0.0
    %116 = vmatprep.subr.mxu0 0.0
    %117 = vmatpush1.msra.mxu0 0.0
    %118 = vmatprep.subr.mxu0 0.0
    %119 = vmatpush1.msra.mxu0 0.0
    %120 = vmatprep.subr.mxu0 0.0
    %121 = vmatpush1.msra.mxu0 0.0
    %122 = vmatprep.subr.mxu0 0.0
    %123 = vmatpush1.msra.mxu0 0.0
    %124 = vmatprep.subr.mxu0 0.0
    %125 = vmatpush1.msra.mxu0 0.0
    %126 = vmatprep.subr.mxu0 0.0
    %127 = vmatpush1.msra.mxu0 0.0
    %128 = vmatprep.mubr.f32.mxu0 0.0
    %129 = vmatmul.mubr.f32.gmra.mrb[0].mxu0 %v59
    %v130 = vpop.f32.mrb[0].mxu0
    %v131 = vadd.f32 %v55, %v130
    %v132 = vpop.f32.mrb[0].mxu0
    %133 = vmatprep.mubr.f32.mxu0 0.0
    %134 = vmatmul.mubr.f32.gmra.mrb[0].mxu0 %v62
    %v135 = vpop.f32.mrb[0].mxu0
    %v136 = vadd.f32 %v56, %v135
    %v137 = vpop.f32.mrb[0].mxu0
    %138 = vdwg.mxu0
    %v139 = vld [vmem:[%s1] sm:$0xff]
    %141 = vrot.lane.b32.xlu0 %v139, 8
    %v142 = vpop.permute.xlu0 %141
    %vm144 = vcmask 64512
    %v145 = vsel %vm144, %v139, %v142
    %v146 = vld [vmem:[#allocation2 + $0x78] sm:$0xff]
    %v147 = vld [vmem:[#allocation2 + $0x80] sm:$0xff]
    %v148 = vadd.f32 %v146, %v145
    %v149 = vadd.f32 %v147, %v145
    %v150 = vld [vmem:[%s2] sm:$0x1]
    %v152 = vlaneseq
    %v153 = vshrl.u32 %v152, 7
    %v154 = vsub.s32 0, %v153
    %v155 = vrot.slane %v150, %v154
    %v157 = vadd.f32 %v148, %v155
    %v158 = vadd.f32 %v149, %v155
    %v159 = vld [vmem:[#allocation2 + $0x88] sm:$0xff]
    %v160 = vld [vmem:[#allocation2 + $0x90] sm:$0xff]
    %v161 = vld [vmem:[#allocation2 + $0x98] sm:$0xff]
    %v162 = vld [vmem:[#allocation2 + $0xa0] sm:$0xff]
    %v163 = vld [vmem:[#allocation2 + $0xa8] sm:$0xff]
    %v164 = vld [vmem:[#allocation2 + $0xb0] sm:$0xff]
    %v165 = vld [vmem:[#allocation2 + $0xb8] sm:$0xff]
    %v166 = vld [vmem:[#allocation2 + $0xc0] sm:$0xff]
    %v167 = vld [vmem:[#allocation2 + $0xc8] sm:$0xff]
    %v168 = vld [vmem:[#allocation2 + $0xd0] sm:$0xff]
    %v169 = vld [vmem:[#allocation2 + $0xd8] sm:$0xff]
    %v170 = vld [vmem:[#allocation2 + $0xe0] sm:$0xff]
    %v171 = vld [vmem:[#allocation2 + $0xe8] sm:$0xff]
    %v172 = vld [vmem:[#allocation2 + $0xf0] sm:$0xff]
    %v173 = vld [vmem:[#allocation2 + $0xf8] sm:$0xff]
    %v174 = vld [vmem:[#allocation2 + $0x100] sm:$0xff]
    %v175 = vld [vmem:[#allocation2 + $0x108] sm:$0xff]
    %v176 = vld [vmem:[#allocation2 + $0x110] sm:$0xff]
    %v177 = vld [vmem:[#allocation2 + $0x118] sm:$0xff]
    %v178 = vld [vmem:[#allocation2 + $0x120] sm:$0xff]
    %v179 = vld [vmem:[#allocation2 + $0x128] sm:$0x1]
    %v180 = vld [vmem:[#allocation2 + $0x129] sm:$0x1]
    %v181 = vld [vmem:[#allocation2 + $0x12a] sm:$0x1]
    %v182 = vld [vmem:[#allocation2 + $0x12b] sm:$0x1]
    %v183 = vld [vmem:[#allocation2 + $0x12c] sm:$0x1]
    %v184 = vld [vmem:[#allocation2 + $0x12d] sm:$0x1]
    %v185 = vld [vmem:[#allocation2 + $0x12e] sm:$0x1]
    %v186 = vld [vmem:[#allocation2 + $0x12f] sm:$0x1]
    %v187 = vlaneseq
    %v188 = vshrl.u32 %v187, 7
    %v189 = vsub.s32 0, %v188
    %v190 = vrot.slane %v179, %v189
    %vm191 = vcmask 261120
    %v193 = vsel %vm191, %v131, 0
    %v196 = vsel %vm191, %v136, 0
    %198 = vmatprep.subr.mxu0 0.0
    %199 = vmatpush1.msra.mxu0 %v159
    %200 = vmatprep.subr.mxu0 0.0
    %201 = vmatpush1.msra.mxu0 %v160
    %202 = vmatprep.subr.mxu0 0.0
    %203 = vmatpush1.msra.mxu0 %v161
    %204 = vmatprep.subr.mxu0 0.0
    %205 = vmatpush1.msra.mxu0 %v162
    %206 = vmatprep.subr.mxu0 0.0
    %207 = vmatpush1.msra.mxu0 0.0
    %208 = vmatprep.subr.mxu0 0.0
    %209 = vmatpush1.msra.mxu0 0.0
    %210 = vmatprep.subr.mxu0 0.0
    %211 = vmatpush1.msra.mxu0 0.0
    %212 = vmatprep.subr.mxu0 0.0
    %213 = vmatpush1.msra.mxu0 0.0
    %214 = vmatprep.subr.mxu0 0.0
    %215 = vmatpush1.msra.mxu0 0.0
    %216 = vmatprep.subr.mxu0 0.0
    %217 = vmatpush1.msra.mxu0 0.0
    %218 = vmatprep.subr.mxu0 0.0
    %219 = vmatpush1.msra.mxu0 0.0
    %220 = vmatprep.subr.mxu0 0.0
    %221 = vmatpush1.msra.mxu0 0.0
    %222 = vmatprep.subr.mxu0 0.0
    %223 = vmatpush1.msra.mxu0 0.0
    %224 = vmatprep.subr.mxu0 0.0
    %225 = vmatpush1.msra.mxu0 0.0
    %226 = vmatprep.subr.mxu0 0.0
    %227 = vmatpush1.msra.mxu0 0.0
    %228 = vmatprep.subr.mxu0 0.0
    %229 = vmatpush1.msra.mxu0 0.0
    %230 = vmatprep.subr.mxu0 0.0
    %231 = vmatpush1.msra.mxu0 0.0
    %232 = vmatprep.subr.mxu0 0.0
    %233 = vmatpush1.msra.mxu0 0.0
    %234 = vmatprep.subr.mxu0 0.0
    %235 = vmatpush1.msra.mxu0 0.0
    %236 = vmatprep.subr.mxu0 0.0
    %237 = vmatpush1.msra.mxu0 0.0
    %238 = vmatprep.subr.mxu0 0.0
    %239 = vmatpush1.msra.mxu0 0.0
    %240 = vmatprep.subr.mxu0 0.0
    %241 = vmatpush1.msra.mxu0 0.0
    %242 = vmatprep.subr.mxu0 0.0
    %243 = vmatpush1.msra.mxu0 0.0
    %244 = vmatprep.subr.mxu0 0.0
    %245 = vmatpush1.msra.mxu0 0.0
    %246 = vmatprep.subr.mxu0 0.0
    %247 = vmatpush1.msra.mxu0 0.0
    %248 = vmatprep.subr.mxu0 0.0
    %249 = vmatpush1.msra.mxu0 0.0
    %250 = vmatprep.subr.mxu0 0.0
    %251 = vmatpush1.msra.mxu0 0.0
    %252 = vmatprep.subr.mxu0 0.0
    %253 = vmatpush1.msra.mxu0 0.0
    %254 = vmatprep.subr.mxu0 0.0
    %255 = vmatpush1.msra.mxu0 0.0
    %256 = vmatprep.subr.mxu0 0.0
    %257 = vmatpush1.msra.mxu0 0.0
    %258 = vmatprep.subr.mxu0 0.0
    %259 = vmatpush1.msra.mxu0 0.0
    %260 = vmatprep.subr.mxu0 0.0
    %261 = vmatpush1.msra.mxu0 0.0
    %262 = vmatprep.mubr.f32.mxu0 0.0
    %263 = vmatmul.mubr.f32.gmra.mrb[0].mxu0 %v193
    %v264 = vpop.f32.mrb[0].mxu0
    %v265 = vadd.f32 %v190, %v264
    %v266 = vpop.f32.mrb[0].mxu0
    %267 = vmatprep.mubr.f32.mxu0 0.0
    %268 = vmatmul.mubr.f32.gmra.mrb[0].mxu0 %v196
    %v269 = vpop.f32.mrb[0].mxu0
    %v270 = vadd.f32 %v190, %v269
    %v271 = vpop.f32.mrb[0].mxu0
    %272 = vdwg.mxu0
    %275 = vrot.lane.b32.xlu0 %v265, 120
    %v276 = vpop.permute.xlu0 %275
    %277 = vrot.lane.b32.xlu0 %v270, 120
    %v278 = vpop.permute.xlu0 %277
    %279 = vrot.lane.b32.xlu0 %v265, 112
    %v280 = vpop.permute.xlu0 %279
    %281 = vrot.lane.b32.xlu0 %v270, 112
    %v282 = vpop.permute.xlu0 %281
    %283 = vrot.lane.b32.xlu0 %v265, 104
    %v284 = vpop.permute.xlu0 %283
    %285 = vrot.lane.b32.xlu0 %v270, 104
    %v286 = vpop.permute.xlu0 %285
    %287 = vrot.lane.b32.xlu0 %v265, 96
    %v288 = vpop.permute.xlu0 %287
    %289 = vrot.lane.b32.xlu0 %v270, 96
    %v290 = vpop.permute.xlu0 %289
    %v291 = vsel %vm144, %v265, 0
    %v293 = vsel %vm144, %v270, 0
    %v295 = vsel %vm144, %v288, 0
    %v297 = vsel %vm144, %v290, 0
    %299 = vmatprep.subr.mxu0 0.0
    %300 = vmatpush1.xpose.msra.mxu0 %v295
    %301 = vmatprep.subr.mxu0 0.0
    %302 = vmatpush1.xpose.msra.mxu0 %v297
    %303 = vmatprep.subr.mxu0 0.0
    %304 = vmatpush1.xpose.msra.mxu0 0.0
    %305 = vmatprep.subr.mxu0 0.0
    %306 = vmatpush1.xpose.msra.mxu0 0.0
    %307 = vmatprep.subr.mxu0 0.0
    %308 = vmatpush1.xpose.msra.mxu0 0.0
    %309 = vmatprep.subr.mxu0 0.0
    %310 = vmatpush1.xpose.msra.mxu0 0.0
    %311 = vmatprep.subr.mxu0 0.0
    %312 = vmatpush1.xpose.msra.mxu0 0.0
    %313 = vmatprep.subr.mxu0 0.0
    %314 = vmatpush1.xpose.msra.mxu0 0.0
    %315 = vmatprep.subr.mxu0 0.0
    %316 = vmatpush1.xpose.msra.mxu0 0.0
    %317 = vmatprep.subr.mxu0 0.0
    %318 = vmatpush1.xpose.msra.mxu0 0.0
    %319 = vmatprep.subr.mxu0 0.0
    %320 = vmatpush1.xpose.msra.mxu0 0.0
    %321 = vmatprep.subr.mxu0 0.0
    %322 = vmatpush1.xpose.msra.mxu0 0.0
    %323 = vmatprep.subr.mxu0 0.0
    %324 = vmatpush1.xpose.msra.mxu0 0.0
    %325 = vmatprep.subr.mxu0 0.0
    %326 = vmatpush1.xpose.msra.mxu0 0.0
    %327 = vmatprep.subr.mxu0 0.0
    %328 = vmatpush1.xpose.msra.mxu0 0.0
    %329 = vmatprep.subr.mxu0 0.0
    %330 = vmatpush1.xpose.msra.mxu0 0.0
    %331 = vmatprep.subr.mxu0 0.0
    %332 = vmatpush1.xpose.msra.mxu0 0.0
    %333 = vmatprep.subr.mxu0 0.0
    %334 = vmatpush1.xpose.msra.mxu0 0.0
    %335 = vmatprep.subr.mxu0 0.0
    %336 = vmatpush1.xpose.msra.mxu0 0.0
    %337 = vmatprep.subr.mxu0 0.0
    %338 = vmatpush1.xpose.msra.mxu0 0.0
    %339 = vmatprep.subr.mxu0 0.0
    %340 = vmatpush1.xpose.msra.mxu0 0.0
    %341 = vmatprep.subr.mxu0 0.0
    %342 = vmatpush1.xpose.msra.mxu0 0.0
    %343 = vmatprep.subr.mxu0 0.0
    %344 = vmatpush1.xpose.msra.mxu0 0.0
    %345 = vmatprep.subr.mxu0 0.0
    %346 = vmatpush1.xpose.msra.mxu0 0.0
    %347 = vmatprep.subr.mxu0 0.0
    %348 = vmatpush1.xpose.msra.mxu0 0.0
    %349 = vmatprep.subr.mxu0 0.0
    %350 = vmatpush1.xpose.msra.mxu0 0.0
    %351 = vmatprep.subr.mxu0 0.0
    %352 = vmatpush1.xpose.msra.mxu0 0.0
    %353 = vmatprep.subr.mxu0 0.0
    %354 = vmatpush1.xpose.msra.mxu0 0.0
    %355 = vmatprep.subr.mxu0 0.0
    %356 = vmatpush1.xpose.msra.mxu0 0.0
    %357 = vmatprep.subr.mxu0 0.0
    %358 = vmatpush1.xpose.msra.mxu0 0.0
    %359 = vmatprep.subr.mxu0 0.0
    %360 = vmatpush1.xpose.msra.mxu0 0.0
    %361 = vmatprep.subr.mxu0 0.0
    %362 = vmatpush1.xpose.msra.mxu0 0.0
    %363 = vmatprep.mubr.f32.mxu0 0.0
    %364 = vmatmul.mubr.f32.gmra.mrb[0].mxu0 %v291
    %v365 = vpop.f32.mrb[0].mxu0
    %v366 = vadd.f32 %v157, %v365
    %v367 = vpop.f32.mrb[0].mxu0
    %368 = vmatprep.mubr.f32.mxu0 0.0
    %369 = vmatmul.mubr.f32.gmra.mrb[0].mxu0 %v293
    %v370 = vpop.f32.mrb[0].mxu0
    %v371 = vadd.f32 %v158, %v370
    %v372 = vpop.f32.mrb[0].mxu0
    %373 = vdwg.mxu0
    %374 = vrot.lane.b32.xlu0 %v276, 96
    %v375 = vpop.permute.xlu0 %374
    %376 = vrot.lane.b32.xlu0 %v278, 96
    %v377 = vpop.permute.xlu0 %376
    %v378 = vsel %vm144, %v276, 0
    %v380 = vsel %vm144, %v278, 0
    %v382 = vsel %vm144, %v375, 0
    %v384 = vsel %vm144, %v377, 0
    %386 = vmatprep.subr.mxu0 0.0
    %387 = vmatpush1.xpose.msra.mxu0 %v382
    %388 = vmatprep.subr.mxu0 0.0
    %389 = vmatpush1.xpose.msra.mxu0 %v384
    %390 = vmatprep.subr.mxu0 0.0
    %391 = vmatpush1.xpose.msra.mxu0 0.0
    %392 = vmatprep.subr.mxu0 0.0
    %393 = vmatpush1.xpose.msra.mxu0 0.0
    %394 = vmatprep.subr.mxu0 0.0
    %395 = vmatpush1.xpose.msra.mxu0 0.0
    %396 = vmatprep.subr.mxu0 0.0
    %397 = vmatpush1.xpose.msra.mxu0 0.0
    %398 = vmatprep.subr.mxu0 0.0
    %399 = vmatpush1.xpose.msra.mxu0 0.0
    %400 = vmatprep.subr.mxu0 0.0
    %401 = vmatpush1.xpose.msra.mxu0 0.0
    %402 = vmatprep.subr.mxu0 0.0
    %403 = vmatpush1.xpose.msra.mxu0 0.0
    %404 = vmatprep.subr.mxu0 0.0
    %405 = vmatpush1.xpose.msra.mxu0 0.0
    %406 = vmatprep.subr.mxu0 0.0
    %407 = vmatpush1.xpose.msra.mxu0 0.0
    %408 = vmatprep.subr.mxu0 0.0
    %409 = vmatpush1.xpose.msra.mxu0 0.0
    %410 = vmatprep.subr.mxu0 0.0
    %411 = vmatpush1.xpose.msra.mxu0 0.0
    %412 = vmatprep.subr.mxu0 0.0
    %413 = vmatpush1.xpose.msra.mxu0 0.0
    %414 = vmatprep.subr.mxu0 0.0
    %415 = vmatpush1.xpose.msra.mxu0 0.0
    %416 = vmatprep.subr.mxu0 0.0
    %417 = vmatpush1.xpose.msra.mxu0 0.0
    %418 = vmatprep.subr.mxu0 0.0
    %419 = vmatpush1.xpose.msra.mxu0 0.0
    %420 = vmatprep.subr.mxu0 0.0
    %421 = vmatpush1.xpose.msra.mxu0 0.0
    %422 = vmatprep.subr.mxu0 0.0
    %423 = vmatpush1.xpose.msra.mxu0 0.0
    %424 = vmatprep.subr.mxu0 0.0
    %425 = vmatpush1.xpose.msra.mxu0 0.0
    %426 = vmatprep.subr.mxu0 0.0
    %427 = vmatpush1.xpose.msra.mxu0 0.0
    %428 = vmatprep.subr.mxu0 0.0
    %429 = vmatpush1.xpose.msra.mxu0 0.0
    %430 = vmatprep.subr.mxu0 0.0
    %431 = vmatpush1.xpose.msra.mxu0 0.0
    %432 = vmatprep.subr.mxu0 0.0
    %433 = vmatpush1.xpose.msra.mxu0 0.0
    %434 = vmatprep.subr.mxu0 0.0
    %435 = vmatpush1.xpose.msra.mxu0 0.0
    %436 = vmatprep.subr.mxu0 0.0
    %437 = vmatpush1.xpose.msra.mxu0 0.0
    %438 = vmatprep.subr.mxu0 0.0
    %439 = vmatpush1.xpose.msra.mxu0 0.0
    %440 = vmatprep.subr.mxu0 0.0
    %441 = vmatpush1.xpose.msra.mxu0 0.0
    %442 = vmatprep.subr.mxu0 0.0
    %443 = vmatpush1.xpose.msra.mxu0 0.0
    %444 = vmatprep.subr.mxu0 0.0
    %445 = vmatpush1.xpose.msra.mxu0 0.0
    %446 = vmatprep.subr.mxu0 0.0
    %447 = vmatpush1.xpose.msra.mxu0 0.0
    %448 = vmatprep.subr.mxu0 0.0
    %449 = vmatpush1.xpose.msra.mxu0 0.0
    %450 = vmatprep.mubr.f32.mxu0 0.0
    %451 = vmatmul.mubr.f32.gmra.mrb[0].mxu0 %v378
    %v452 = vpop.f32.mrb[0].mxu0
    %v453 = vadd.f32 %v157, %v452
    %v454 = vpop.f32.mrb[0].mxu0
    %455 = vmatprep.mubr.f32.mxu0 0.0
    %456 = vmatmul.mubr.f32.gmra.mrb[0].mxu0 %v380
    %v457 = vpop.f32.mrb[0].mxu0
    %v458 = vadd.f32 %v158, %v457
    %v459 = vpop.f32.mrb[0].mxu0
    %460 = vdwg.mxu0
    %461 = vrot.lane.b32.xlu0 %v280, 96
    %v462 = vpop.permute.xlu0 %461
    %463 = vrot.lane.b32.xlu0 %v282, 96
    %v464 = vpop.permute.xlu0 %463
    %v465 = vsel %vm144, %v280, 0
    %v467 = vsel %vm144, %v282, 0
    %v469 = vsel %vm144, %v462, 0
    %v471 = vsel %vm144, %v464, 0
    %473 = vmatprep.subr.mxu0 0.0
    %474 = vmatpush1.xpose.msra.mxu0 %v469
    %475 = vmatprep.subr.mxu0 0.0
    %476 = vmatpush1.xpose.msra.mxu0 %v471
    %477 = vmatprep.subr.mxu0 0.0
    %478 = vmatpush1.xpose.msra.mxu0 0.0
    %479 = vmatprep.subr.mxu0 0.0
    %480 = vmatpush1.xpose.msra.mxu0 0.0
    %481 = vmatprep.subr.mxu0 0.0
    %482 = vmatpush1.xpose.msra.mxu0 0.0
    %483 = vmatprep.subr.mxu0 0.0
    %484 = vmatpush1.xpose.msra.mxu0 0.0
    %485 = vmatprep.subr.mxu0 0.0
    %486 = vmatpush1.xpose.msra.mxu0 0.0
    %487 = vmatprep.subr.mxu0 0.0
    %488 = vmatpush1.xpose.msra.mxu0 0.0
    %489 = vmatprep.subr.mxu0 0.0
    %490 = vmatpush1.xpose.msra.mxu0 0.0
    %491 = vmatprep.subr.mxu0 0.0
    %492 = vmatpush1.xpose.msra.mxu0 0.0
    %493 = vmatprep.subr.mxu0 0.0
    %494 = vmatpush1.xpose.msra.mxu0 0.0
    %495 = vmatprep.subr.mxu0 0.0
    %496 = vmatpush1.xpose.msra.mxu0 0.0
    %497 = vmatprep.subr.mxu0 0.0
    %498 = vmatpush1.xpose.msra.mxu0 0.0
    %499 = vmatprep.subr.mxu0 0.0
    %500 = vmatpush1.xpose.msra.mxu0 0.0
    %501 = vmatprep.subr.mxu0 0.0
    %502 = vmatpush1.xpose.msra.mxu0 0.0
    %503 = vmatprep.subr.mxu0 0.0
    %504 = vmatpush1.xpose.msra.mxu0 0.0
    %505 = vmatprep.subr.mxu0 0.0
    %506 = vmatpush1.xpose.msra.mxu0 0.0
    %507 = vmatprep.subr.mxu0 0.0
    %508 = vmatpush1.xpose.msra.mxu0 0.0
    %509 = vmatprep.subr.mxu0 0.0
    %510 = vmatpush1.xpose.msra.mxu0 0.0
    %511 = vmatprep.subr.mxu0 0.0
    %512 = vmatpush1.xpose.msra.mxu0 0.0
    %513 = vmatprep.subr.mxu0 0.0
    %514 = vmatpush1.xpose.msra.mxu0 0.0
    %515 = vmatprep.subr.mxu0 0.0
    %516 = vmatpush1.xpose.msra.mxu0 0.0
    %517 = vmatprep.subr.mxu0 0.0
    %518 = vmatpush1.xpose.msra.mxu0 0.0
    %519 = vmatprep.subr.mxu0 0.0
    %520 = vmatpush1.xpose.msra.mxu0 0.0
    %521 = vmatprep.subr.mxu0 0.0
    %522 = vmatpush1.xpose.msra.mxu0 0.0
    %523 = vmatprep.subr.mxu0 0.0
    %524 = vmatpush1.xpose.msra.mxu0 0.0
    %525 = vmatprep.subr.mxu0 0.0
    %526 = vmatpush1.xpose.msra.mxu0 0.0
    %527 = vmatprep.subr.mxu0 0.0
    %528 = vmatpush1.xpose.msra.mxu0 0.0
    %529 = vmatprep.subr.mxu0 0.0
    %530 = vmatpush1.xpose.msra.mxu0 0.0
    %531 = vmatprep.subr.mxu0 0.0
    %532 = vmatpush1.xpose.msra.mxu0 0.0
    %533 = vmatprep.subr.mxu0 0.0
    %534 = vmatpush1.xpose.msra.mxu0 0.0
    %535 = vmatprep.subr.mxu0 0.0
    %536 = vmatpush1.xpose.msra.mxu0 0.0
    %537 = vmatprep.mubr.f32.mxu0 0.0
    %538 = vmatmul.mubr.f32.gmra.mrb[0].mxu0 %v465
    %v539 = vpop.f32.mrb[0].mxu0
    %v540 = vadd.f32 %v157, %v539
    %v541 = vpop.f32.mrb[0].mxu0
    %542 = vmatprep.mubr.f32.mxu0 0.0
    %543 = vmatmul.mubr.f32.gmra.mrb[0].mxu0 %v467
    %v544 = vpop.f32.mrb[0].mxu0
    %v545 = vadd.f32 %v158, %v544
    %v546 = vpop.f32.mrb[0].mxu0
    %547 = vdwg.mxu0
    %548 = vrot.lane.b32.xlu0 %v284, 96
    %v549 = vpop.permute.xlu0 %548
    %550 = vrot.lane.b32.xlu0 %v286, 96
    %v551 = vpop.permute.xlu0 %550
    %v552 = vsel %vm144, %v284, 0
    %v554 = vsel %vm144, %v286, 0
    %v556 = vsel %vm144, %v549, 0
    %v558 = vsel %vm144, %v551, 0
    %560 = vmatprep.subr.mxu0 0.0
    %561 = vmatpush1.xpose.msra.mxu0 %v556
    %562 = vmatprep.subr.mxu0 0.0
    %563 = vmatpush1.xpose.msra.mxu0 %v558
    %564 = vmatprep.subr.mxu0 0.0
    %565 = vmatpush1.xpose.msra.mxu0 0.0
    %566 = vmatprep.subr.mxu0 0.0
    %567 = vmatpush1.xpose.msra.mxu0 0.0
    %568 = vmatprep.subr.mxu0 0.0
    %569 = vmatpush1.xpose.msra.mxu0 0.0
    %570 = vmatprep.subr.mxu0 0.0
    %571 = vmatpush1.xpose.msra.mxu0 0.0
    %572 = vmatprep.subr.mxu0 0.0
    %573 = vmatpush1.xpose.msra.mxu0 0.0
    %574 = vmatprep.subr.mxu0 0.0
    %575 = vmatpush1.xpose.msra.mxu0 0.0
    %576 = vmatprep.subr.mxu0 0.0
    %577 = vmatpush1.xpose.msra.mxu0 0.0
    %578 = vmatprep.subr.mxu0 0.0
    %579 = vmatpush1.xpose.msra.mxu0 0.0
    %580 = vmatprep.subr.mxu0 0.0
    %581 = vmatpush1.xpose.msra.mxu0 0.0
    %582 = vmatprep.subr.mxu0 0.0
    %583 = vmatpush1.xpose.msra.mxu0 0.0
    %584 = vmatprep.subr.mxu0 0.0
    %585 = vmatpush1.xpose.msra.mxu0 0.0
    %586 = vmatprep.subr.mxu0 0.0
    %587 = vmatpush1.xpose.msra.mxu0 0.0
    %588 = vmatprep.subr.mxu0 0.0
    %589 = vmatpush1.xpose.msra.mxu0 0.0
    %590 = vmatprep.subr.mxu0 0.0
    %591 = vmatpush1.xpose.msra.mxu0 0.0
    %592 = vmatprep.subr.mxu0 0.0
    %593 = vmatpush1.xpose.msra.mxu0 0.0
    %594 = vmatprep.subr.mxu0 0.0
    %595 = vmatpush1.xpose.msra.mxu0 0.0
    %596 = vmatprep.subr.mxu0 0.0
    %597 = vmatpush1.xpose.msra.mxu0 0.0
    %598 = vmatprep.subr.mxu0 0.0
    %599 = vmatpush1.xpose.msra.mxu0 0.0
    %600 = vmatprep.subr.mxu0 0.0
    %601 = vmatpush1.xpose.msra.mxu0 0.0
    %602 = vmatprep.subr.mxu0 0.0
    %603 = vmatpush1.xpose.msra.mxu0 0.0
    %604 = vmatprep.subr.mxu0 0.0
    %605 = vmatpush1.xpose.msra.mxu0 0.0
    %606 = vmatprep.subr.mxu0 0.0
    %607 = vmatpush1.xpose.msra.mxu0 0.0
    %608 = vmatprep.subr.mxu0 0.0
    %609 = vmatpush1.xpose.msra.mxu0 0.0
    %610 = vmatprep.subr.mxu0 0.0
    %611 = vmatpush1.xpose.msra.mxu0 0.0
    %612 = vmatprep.subr.mxu0 0.0
    %613 = vmatpush1.xpose.msra.mxu0 0.0
    %614 = vmatprep.subr.mxu0 0.0
    %615 = vmatpush1.xpose.msra.mxu0 0.0
    %616 = vmatprep.subr.mxu0 0.0
    %617 = vmatpush1.xpose.msra.mxu0 0.0
    %618 = vmatprep.subr.mxu0 0.0
    %619 = vmatpush1.xpose.msra.mxu0 0.0
    %620 = vmatprep.subr.mxu0 0.0
    %621 = vmatpush1.xpose.msra.mxu0 0.0
    %622 = vmatprep.subr.mxu0 0.0
    %623 = vmatpush1.xpose.msra.mxu0 0.0
    %624 = vmatprep.mubr.f32.mxu0 0.0
    %625 = vmatmul.mubr.f32.gmra.mrb[0].mxu0 %v552
    %v626 = vpop.f32.mrb[0].mxu0
    %v627 = vadd.f32 %v157, %v626
    %v628 = vpop.f32.mrb[0].mxu0
    %629 = vmatprep.mubr.f32.mxu0 0.0
    %630 = vmatmul.mubr.f32.gmra.mrb[0].mxu0 %v554
    %v631 = vpop.f32.mrb[0].mxu0
    %v632 = vadd.f32 %v158, %v631
    %v633 = vpop.f32.mrb[0].mxu0
    %634 = vdwg.mxu0
    %vm635 = vcmask 130048
    %v636 = vsel %vm635, %v366, -inf
    %637 = vmax.xlane.f32.xlu0 %v636
    %v638 = vpop.xlane.xlu0 %637
    %v639 = vsel %vm635, %v371, -inf
    %640 = vmax.xlane.f32.xlu0 %v639
    %v641 = vpop.xlane.xlu0 %640
    %v642 = vsel %vm635, %v453, -inf
    %643 = vmax.xlane.f32.xlu0 %v642
    %v644 = vpop.xlane.xlu0 %643
    %v645 = vsel %vm635, %v458, -inf
    %646 = vmax.xlane.f32.xlu0 %v645
    %v647 = vpop.xlane.xlu0 %646
    %v648 = vsel %vm635, %v540, -inf
    %649 = vmax.xlane.f32.xlu0 %v648
    %v650 = vpop.xlane.xlu0 %649
    %v651 = vsel %vm635, %v545, -inf
    %652 = vmax.xlane.f32.xlu0 %v651
    %v653 = vpop.xlane.xlu0 %652
    %v654 = vsel %vm635, %v627, -inf
    %655 = vmax.xlane.f32.xlu0 %v654
    %v656 = vpop.xlane.xlu0 %655
    %v657 = vsel %vm635, %v632, -inf
    %658 = vmax.xlane.f32.xlu0 %v657
    %v659 = vpop.xlane.xlu0 %658
    %v660 = vsub.f32 %v366, %v638
    %v661 = vsub.f32 %v371, %v641
    %v662 = vsub.f32 %v453, %v644
    %v663 = vsub.f32 %v458, %v647
    %v664 = vsub.f32 %v540, %v650
    %v665 = vsub.f32 %v545, %v653
    %v666 = vsub.f32 %v627, %v656
    %v667 = vsub.f32 %v632, %v659
    %v668 = vmul.f32 %v660, 1.442695
    %v669 = vpow.pop %v668
    %v670 = vmul.f32 %v661, 1.442695
    %v671 = vpow.pop %v670
    %v672 = vmul.f32 %v662, 1.442695
    %v673 = vpow.pop %v672
    %v674 = vmul.f32 %v663, 1.442695
    %v675 = vpow.pop %v674
    %v676 = vmul.f32 %v664, 1.442695
    %v677 = vpow.pop %v676
    %v678 = vmul.f32 %v665, 1.442695
    %v679 = vpow.pop %v678
    %v680 = vmul.f32 %v666, 1.442695
    %v681 = vpow.pop %v680
    %v682 = vmul.f32 %v667, 1.442695
    %v683 = vpow.pop %v682
    %v684 = vsel %vm635, %v669, 0.0
    %685 = vadd.xlane.f32.xlu0 %v684
    %v686 = vpop.xlane.xlu0 %685
    %v687 = vsel %vm635, %v671, 0.0
    %688 = vadd.xlane.f32.xlu0 %v687
    %v689 = vpop.xlane.xlu0 %688
    %v690 = vsel %vm635, %v673, 0.0
    %691 = vadd.xlane.f32.xlu0 %v690
    %v692 = vpop.xlane.xlu0 %691
    %v693 = vsel %vm635, %v675, 0.0
    %694 = vadd.xlane.f32.xlu0 %v693
    %v695 = vpop.xlane.xlu0 %694
    %v696 = vsel %vm635, %v677, 0.0
    %697 = vadd.xlane.f32.xlu0 %v696
    %v698 = vpop.xlane.xlu0 %697
    %v699 = vsel %vm635, %v679, 0.0
    %700 = vadd.xlane.f32.xlu0 %v699
    %v701 = vpop.xlane.xlu0 %700
    %v702 = vsel %vm635, %v681, 0.0
    %703 = vadd.xlane.f32.xlu0 %v702
    %v704 = vpop.xlane.xlu0 %703
    %v705 = vsel %vm635, %v683, 0.0
    %706 = vadd.xlane.f32.xlu0 %v705
    %v707 = vpop.xlane.xlu0 %706
    %v708 = vrcp.pop %v686
    %v709 = vrcp.pop %v689
    %v710 = vrcp.pop %v692
    %v711 = vrcp.pop %v695
    %v712 = vrcp.pop %v698
    %v713 = vrcp.pop %v701
    %v714 = vrcp.pop %v704
    %v715 = vrcp.pop %v707
    %v716 = vmul.f32 %v669, %v708
    %v717 = vmul.f32 %v671, %v709
    %v718 = vmul.f32 %v673, %v710
    %v719 = vmul.f32 %v675, %v711
    %v720 = vmul.f32 %v677, %v712
    %v721 = vmul.f32 %v679, %v713
    %v722 = vmul.f32 %v681, %v714
    %v723 = vmul.f32 %v683, %v715
    %724 = vrot.lane.b32.xlu0 %v265, 64
    %v725 = vpop.permute.xlu0 %724
    %726 = vrot.lane.b32.xlu0 %v270, 64
    %v727 = vpop.permute.xlu0 %726
    %v731 = vsel %vm635, %v716, 0
    %v734 = vsel %vm635, %v717, 0
    %736 = vmatprep.subr.mxu0 0.0
    %737 = vmatpush1.msra.mxu0 %v725
    %738 = vmatprep.subr.mxu0 0.0
    %739 = vmatpush1.msra.mxu0 %v727
    %740 = vmatprep.subr.mxu0 0.0
    %741 = vmatpush1.msra.mxu0 0.0
    %742 = vmatprep.subr.mxu0 0.0
    %743 = vmatpush1.msra.mxu0 0.0
    %744 = vmatprep.subr.mxu0 0.0
    %745 = vmatpush1.msra.mxu0 0.0
    %746 = vmatprep.subr.mxu0 0.0
    %747 = vmatpush1.msra.mxu0 0.0
    %748 = vmatprep.subr.mxu0 0.0
    %749 = vmatpush1.msra.mxu0 0.0
    %750 = vmatprep.subr.mxu0 0.0
    %751 = vmatpush1.msra.mxu0 0.0
    %752 = vmatprep.subr.mxu0 0.0
    %753 = vmatpush1.msra.mxu0 0.0
    %754 = vmatprep.subr.mxu0 0.0
    %755 = vmatpush1.msra.mxu0 0.0
    %756 = vmatprep.subr.mxu0 0.0
    %757 = vmatpush1.msra.mxu0 0.0
    %758 = vmatprep.subr.mxu0 0.0
    %759 = vmatpush1.msra.mxu0 0.0
    %760 = vmatprep.subr.mxu0 0.0
    %761 = vmatpush1.msra.mxu0 0.0
    %762 = vmatprep.subr.mxu0 0.0
    %763 = vmatpush1.msra.mxu0 0.0
    %764 = vmatprep.subr.mxu0 0.0
    %765 = vmatpush1.msra.mxu0 0.0
    %766 = vmatprep.subr.mxu0 0.0
    %767 = vmatpush1.msra.mxu0 0.0
    %768 = vmatprep.subr.mxu0 0.0
    %769 = vmatpush1.msra.mxu0 0.0
    %770 = vmatprep.subr.mxu0 0.0
    %771 = vmatpush1.msra.mxu0 0.0
    %772 = vmatprep.subr.mxu0 0.0
    %773 = vmatpush1.msra.mxu0 0.0
    %774 = vmatprep.subr.mxu0 0.0
    %775 = vmatpush1.msra.mxu0 0.0
    %776 = vmatprep.subr.mxu0 0.0
    %777 = vmatpush1.msra.mxu0 0.0
    %778 = vmatprep.subr.mxu0 0.0
    %779 = vmatpush1.msra.mxu0 0.0
    %780 = vmatprep.subr.mxu0 0.0
    %781 = vmatpush1.msra.mxu0 0.0
    %782 = vmatprep.subr.mxu0 0.0
    %783 = vmatpush1.msra.mxu0 0.0
    %784 = vmatprep.subr.mxu0 0.0
    %785 = vmatpush1.msra.mxu0 0.0
    %786 = vmatprep.subr.mxu0 0.0
    %787 = vmatpush1.msra.mxu0 0.0
    %788 = vmatprep.subr.mxu0 0.0
    %789 = vmatpush1.msra.mxu0 0.0
    %790 = vmatprep.subr.mxu0 0.0
    %791 = vmatpush1.msra.mxu0 0.0
    %792 = vmatprep.subr.mxu0 0.0
    %793 = vmatpush1.msra.mxu0 0.0
    %794 = vmatprep.subr.mxu0 0.0
    %795 = vmatpush1.msra.mxu0 0.0
    %796 = vmatprep.subr.mxu0 0.0
    %797 = vmatpush1.msra.mxu0 0.0
    %798 = vmatprep.subr.mxu0 0.0
    %799 = vmatpush1.msra.mxu0 0.0
    %800 = vmatprep.mubr.f32.mxu0 0.0
    %801 = vmatmul.mubr.f32.gmra.mrb[0].mxu0 %v731
    %v802 = vpop.f32.mrb[0].mxu0
    %v803 = vadd.f32 0.0, %v802
    %v804 = vpop.f32.mrb[0].mxu0
    %805 = vmatprep.mubr.f32.mxu0 0.0
    %806 = vmatmul.mubr.f32.gmra.mrb[0].mxu0 %v734
    %v807 = vpop.f32.mrb[0].mxu0
    %v808 = vadd.f32 0.0, %v807
    %v809 = vpop.f32.mrb[0].mxu0
    %810 = vdwg.mxu0
    %811 = vrot.lane.b32.xlu0 %v276, 64
    %v812 = vpop.permute.xlu0 %811
    %813 = vrot.lane.b32.xlu0 %v278, 64
    %v814 = vpop.permute.xlu0 %813
    %v818 = vsel %vm635, %v718, 0
    %v821 = vsel %vm635, %v719, 0
    %823 = vmatprep.subr.mxu0 0.0
    %824 = vmatpush1.msra.mxu0 %v812
    %825 = vmatprep.subr.mxu0 0.0
    %826 = vmatpush1.msra.mxu0 %v814
    %827 = vmatprep.subr.mxu0 0.0
    %828 = vmatpush1.msra.mxu0 0.0
    %829 = vmatprep.subr.mxu0 0.0
    %830 = vmatpush1.msra.mxu0 0.0
    %831 = vmatprep.subr.mxu0 0.0
    %832 = vmatpush1.msra.mxu0 0.0
    %833 = vmatprep.subr.mxu0 0.0
    %834 = vmatpush1.msra.mxu0 0.0
    %835 = vmatprep.subr.mxu0 0.0
    %836 = vmatpush1.msra.mxu0 0.0
    %837 = vmatprep.subr.mxu0 0.0
    %838 = vmatpush1.msra.mxu0 0.0
    %839 = vmatprep.subr.mxu0 0.0
    %840 = vmatpush1.msra.mxu0 0.0
    %841 = vmatprep.subr.mxu0 0.0
    %842 = vmatpush1.msra.mxu0 0.0
    %843 = vmatprep.subr.mxu0 0.0
    %844 = vmatpush1.msra.mxu0 0.0
    %845 = vmatprep.subr.mxu0 0.0
    %846 = vmatpush1.msra.mxu0 0.0
    %847 = vmatprep.subr.mxu0 0.0
    %848 = vmatpush1.msra.mxu0 0.0
    %849 = vmatprep.subr.mxu0 0.0
    %850 = vmatpush1.msra.mxu0 0.0
    %851 = vmatprep.subr.mxu0 0.0
    %852 = vmatpush1.msra.mxu0 0.0
    %853 = vmatprep.subr.mxu0 0.0
    %854 = vmatpush1.msra.mxu0 0.0
    %855 = vmatprep.subr.mxu0 0.0
    %856 = vmatpush1.msra.mxu0 0.0
    %857 = vmatprep.subr.mxu0 0.0
    %858 = vmatpush1.msra.mxu0 0.0
    %859 = vmatprep.subr.mxu0 0.0
    %860 = vmatpush1.msra.mxu0 0.0
    %861 = vmatprep.subr.mxu0 0.0
    %862 = vmatpush1.msra.mxu0 0.0
    %863 = vmatprep.subr.mxu0 0.0
    %864 = vmatpush1.msra.mxu0 0.0
    %865 = vmatprep.subr.mxu0 0.0
    %866 = vmatpush1.msra.mxu0 0.0
    %867 = vmatprep.subr.mxu0 0.0
    %868 = vmatpush1.msra.mxu0 0.0
    %869 = vmatprep.subr.mxu0 0.0
    %870 = vmatpush1.msra.mxu0 0.0
    %871 = vmatprep.subr.mxu0 0.0
    %872 = vmatpush1.msra.mxu0 0.0
    %873 = vmatprep.subr.mxu0 0.0
    %874 = vmatpush1.msra.mxu0 0.0
    %875 = vmatprep.subr.mxu0 0.0
    %876 = vmatpush1.msra.mxu0 0.0
    %877 = vmatprep.subr.mxu0 0.0
    %878 = vmatpush1.msra.mxu0 0.0
    %879 = vmatprep.subr.mxu0 0.0
    %880 = vmatpush1.msra.mxu0 0.0
    %881 = vmatprep.subr.mxu0 0.0
    %882 = vmatpush1.msra.mxu0 0.0
    %883 = vmatprep.subr.mxu0 0.0
    %884 = vmatpush1.msra.mxu0 0.0
    %885 = vmatprep.subr.mxu0 0.0
    %886 = vmatpush1.msra.mxu0 0.0
    %887 = vmatprep.mubr.f32.mxu0 0.0
    %888 = vmatmul.mubr.f32.gmra.mrb[0].mxu0 %v818
    %v889 = vpop.f32.mrb[0].mxu0
    %v890 = vadd.f32 0.0, %v889
    %v891 = vpop.f32.mrb[0].mxu0
    %892 = vmatprep.mubr.f32.mxu0 0.0
    %893 = vmatmul.mubr.f32.gmra.mrb[0].mxu0 %v821
    %v894 = vpop.f32.mrb[0].mxu0
    %v895 = vadd.f32 0.0, %v894
    %v896 = vpop.f32.mrb[0].mxu0
    %897 = vdwg.mxu0
    %898 = vrot.lane.b32.xlu0 %v280, 64
    %v899 = vpop.permute.xlu0 %898
    %900 = vrot.lane.b32.xlu0 %v282, 64
    %v901 = vpop.permute.xlu0 %900
    %v905 = vsel %vm635, %v720, 0
    %v908 = vsel %vm635, %v721, 0
    %910 = vmatprep.subr.mxu0 0.0
    %911 = vmatpush1.msra.mxu0 %v899
    %912 = vmatprep.subr.mxu0 0.0
    %913 = vmatpush1.msra.mxu0 %v901
    %914 = vmatprep.subr.mxu0 0.0
    %915 = vmatpush1.msra.mxu0 0.0
    %916 = vmatprep.subr.mxu0 0.0
    %917 = vmatpush1.msra.mxu0 0.0
    %918 = vmatprep.subr.mxu0 0.0
    %919 = vmatpush1.msra.mxu0 0.0
    %920 = vmatprep.subr.mxu0 0.0
    %921 = vmatpush1.msra.mxu0 0.0
    %922 = vmatprep.subr.mxu0 0.0
    %923 = vmatpush1.msra.mxu0 0.0
    %924 = vmatprep.subr.mxu0 0.0
    %925 = vmatpush1.msra.mxu0 0.0
    %926 = vmatprep.subr.mxu0 0.0
    %927 = vmatpush1.msra.mxu0 0.0
    %928 = vmatprep.subr.mxu0 0.0
    %929 = vmatpush1.msra.mxu0 0.0
    %930 = vmatprep.subr.mxu0 0.0
    %931 = vmatpush1.msra.mxu0 0.0
    %932 = vmatprep.subr.mxu0 0.0
    %933 = vmatpush1.msra.mxu0 0.0
    %934 = vmatprep.subr.mxu0 0.0
    %935 = vmatpush1.msra.mxu0 0.0
    %936 = vmatprep.subr.mxu0 0.0
    %937 = vmatpush1.msra.mxu0 0.0
    %938 = vmatprep.subr.mxu0 0.0
    %939 = vmatpush1.msra.mxu0 0.0
    %940 = vmatprep.subr.mxu0 0.0
    %941 = vmatpush1.msra.mxu0 0.0
    %942 = vmatprep.subr.mxu0 0.0
    %943 = vmatpush1.msra.mxu0 0.0
    %944 = vmatprep.subr.mxu0 0.0
    %945 = vmatpush1.msra.mxu0 0.0
    %946 = vmatprep.subr.mxu0 0.0
    %947 = vmatpush1.msra.mxu0 0.0
    %948 = vmatprep.subr.mxu0 0.0
    %949 = vmatpush1.msra.mxu0 0.0
    %950 = vmatprep.subr.mxu0 0.0
    %951 = vmatpush1.msra.mxu0 0.0
    %952 = vmatprep.subr.mxu0 0.0
    %953 = vmatpush1.msra.mxu0 0.0
    %954 = vmatprep.subr.mxu0 0.0
    %955 = vmatpush1.msra.mxu0 0.0
    %956 = vmatprep.subr.mxu0 0.0
    %957 = vmatpush1.msra.mxu0 0.0
    %958 = vmatprep.subr.mxu0 0.0
    %959 = vmatpush1.msra.mxu0 0.0
    %960 = vmatprep.subr.mxu0 0.0
    %961 = vmatpush1.msra.mxu0 0.0
    %962 = vmatprep.subr.mxu0 0.0
    %963 = vmatpush1.msra.mxu0 0.0
    %964 = vmatprep.subr.mxu0 0.0
    %965 = vmatpush1.msra.mxu0 0.0
    %966 = vmatprep.subr.mxu0 0.0
    %967 = vmatpush1.msra.mxu0 0.0
    %968 = vmatprep.subr.mxu0 0.0
    %969 = vmatpush1.msra.mxu0 0.0
    %970 = vmatprep.subr.mxu0 0.0
    %971 = vmatpush1.msra.mxu0 0.0
    %972 = vmatprep.subr.mxu0 0.0
    %973 = vmatpush1.msra.mxu0 0.0
    %974 = vmatprep.mubr.f32.mxu0 0.0
    %975 = vmatmul.mubr.f32.gmra.mrb[0].mxu0 %v905
    %v976 = vpop.f32.mrb[0].mxu0
    %v977 = vadd.f32 0.0, %v976
    %v978 = vpop.f32.mrb[0].mxu0
    %979 = vmatprep.mubr.f32.mxu0 0.0
    %980 = vmatmul.mubr.f32.gmra.mrb[0].mxu0 %v908
    %v981 = vpop.f32.mrb[0].mxu0
    %v982 = vadd.f32 0.0, %v981
    %v983 = vpop.f32.mrb[0].mxu0
    %984 = vdwg.mxu0
    %985 = vrot.lane.b32.xlu0 %v284, 64
    %v986 = vpop.permute.xlu0 %985
    %987 = vrot.lane.b32.xlu0 %v286, 64
    %v988 = vpop.permute.xlu0 %987
    %v992 = vsel %vm635, %v722, 0
    %v995 = vsel %vm635, %v723, 0
    %997 = vmatprep.subr.mxu0 0.0
    %998 = vmatpush1.msra.mxu0 %v986
    %999 = vmatprep.subr.mxu0 0.0
    %1000 = vmatpush1.msra.mxu0 %v988
    %1001 = vmatprep.subr.mxu0 0.0
    %1002 = vmatpush1.msra.mxu0 0.0
    %1003 = vmatprep.subr.mxu0 0.0
    %1004 = vmatpush1.msra.mxu0 0.0
    %1005 = vmatprep.subr.mxu0 0.0
    %1006 = vmatpush1.msra.mxu0 0.0
    %1007 = vmatprep.subr.mxu0 0.0
    %1008 = vmatpush1.msra.mxu0 0.0
    %1009 = vmatprep.subr.mxu0 0.0
    %1010 = vmatpush1.msra.mxu0 0.0
    %1011 = vmatprep.subr.mxu0 0.0
    %1012 = vmatpush1.msra.mxu0 0.0
    %1013 = vmatprep.subr.mxu0 0.0
    %1014 = vmatpush1.msra.mxu0 0.0
    %1015 = vmatprep.subr.mxu0 0.0
    %1016 = vmatpush1.msra.mxu0 0.0
    %1017 = vmatprep.subr.mxu0 0.0
    %1018 = vmatpush1.msra.mxu0 0.0
    %1019 = vmatprep.subr.mxu0 0.0
    %1020 = vmatpush1.msra.mxu0 0.0
    %1021 = vmatprep.subr.mxu0 0.0
    %1022 = vmatpush1.msra.mxu0 0.0
    %1023 = vmatprep.subr.mxu0 0.0
    %1024 = vmatpush1.msra.mxu0 0.0
    %1025 = vmatprep.subr.mxu0 0.0
    %1026 = vmatpush1.msra.mxu0 0.0
    %1027 = vmatprep.subr.mxu0 0.0
    %1028 = vmatpush1.msra.mxu0 0.0
    %1029 = vmatprep.subr.mxu0 0.0
    %1030 = vmatpush1.msra.mxu0 0.0
    %1031 = vmatprep.subr.mxu0 0.0
    %1032 = vmatpush1.msra.mxu0 0.0
    %1033 = vmatprep.subr.mxu0 0.0
    %1034 = vmatpush1.msra.mxu0 0.0
    %1035 = vmatprep.subr.mxu0 0.0
    %1036 = vmatpush1.msra.mxu0 0.0
    %1037 = vmatprep.subr.mxu0 0.0
    %1038 = vmatpush1.msra.mxu0 0.0
    %1039 = vmatprep.subr.mxu0 0.0
    %1040 = vmatpush1.msra.mxu0 0.0
    %1041 = vmatprep.subr.mxu0 0.0
    %1042 = vmatpush1.msra.mxu0 0.0
    %1043 = vmatprep.subr.mxu0 0.0
    %1044 = vmatpush1.msra.mxu0 0.0
    %1045 = vmatprep.subr.mxu0 0.0
    %1046 = vmatpush1.msra.mxu0 0.0
    %1047 = vmatprep.subr.mxu0 0.0
    %1048 = vmatpush1.msra.mxu0 0.0
    %1049 = vmatprep.subr.mxu0 0.0
    %1050 = vmatpush1.msra.mxu0 0.0
    %1051 = vmatprep.subr.mxu0 0.0
    %1052 = vmatpush1.msra.mxu0 0.0
    %1053 = vmatprep.subr.mxu0 0.0
    %1054 = vmatpush1.msra.mxu0 0.0
    %1055 = vmatprep.subr.mxu0 0.0
    %1056 = vmatpush1.msra.mxu0 0.0
    %1057 = vmatprep.subr.mxu0 0.0
    %1058 = vmatpush1.msra.mxu0 0.0
    %1059 = vmatprep.subr.mxu0 0.0
    %1060 = vmatpush1.msra.mxu0 0.0
    %1061 = vmatprep.mubr.f32.mxu0 0.0
    %1062 = vmatmul.mubr.f32.gmra.mrb[0].mxu0 %v992
    %v1063 = vpop.f32.mrb[0].mxu0
    %v1064 = vadd.f32 0.0, %v1063
    %v1065 = vpop.f32.mrb[0].mxu0
    %1066 = vmatprep.mubr.f32.mxu0 0.0
    %1067 = vmatmul.mubr.f32.gmra.mrb[0].mxu0 %v995
    %v1068 = vpop.f32.mrb[0].mxu0
    %v1069 = vadd.f32 0.0, %v1068
    %v1070 = vpop.f32.mrb[0].mxu0
    %1071 = vdwg.mxu0
    %1074 = vrot.lane.b32.xlu0 %v890, 8
    %v1075 = vpop.permute.xlu0 %1074
    %1076 = vrot.lane.b32.xlu0 %v895, 8
    %v1077 = vpop.permute.xlu0 %1076
    %1082 = vrot.lane.b32.xlu0 %v977, 16
    %v1083 = vpop.permute.xlu0 %1082
    %1084 = vrot.lane.b32.xlu0 %v982, 16
    %v1085 = vpop.permute.xlu0 %1084
    %1090 = vrot.lane.b32.xlu0 %v1064, 24
    %v1091 = vpop.permute.xlu0 %1090
    %1092 = vrot.lane.b32.xlu0 %v1069, 24
    %v1093 = vpop.permute.xlu0 %1092
    %v1096 = vsel %vm144, %v803, %v1075
    %v1097 = vsel %vm144, %v808, %v1077
    %v1098 = vsel %vm635, %v1096, %v1083
    %v1099 = vsel %vm635, %v1097, %v1085
    %vm1100 = vcmask 195584
    %v1101 = vsel %vm1100, %v1098, %v1091
    %v1102 = vsel %vm1100, %v1099, %v1093
    %v1103 = vlaneseq
    %v1104 = vshrl.u32 %v1103, 7
    %v1105 = vsub.s32 0, %v1104
    %v1106 = vrot.slane %v180, %v1105
    %v1108 = vsel %vm191, %v1101, 0
    %v1111 = vsel %vm191, %v1102, 0
    %1113 = vmatprep.subr.mxu0 0.0
    %1114 = vmatpush1.msra.mxu0 %v163
    %1115 = vmatprep.subr.mxu0 0.0
    %1116 = vmatpush1.msra.mxu0 %v164
    %1117 = vmatprep.subr.mxu0 0.0
    %1118 = vmatpush1.msra.mxu0 %v165
    %1119 = vmatprep.subr.mxu0 0.0
    %1120 = vmatpush1.msra.mxu0 %v166
    %1121 = vmatprep.subr.mxu0 0.0
    %1122 = vmatpush1.msra.mxu0 0.0
    %1123 = vmatprep.subr.mxu0 0.0
    %1124 = vmatpush1.msra.mxu0 0.0
    %1125 = vmatprep.subr.mxu0 0.0
    %1126 = vmatpush1.msra.mxu0 0.0
    %1127 = vmatprep.subr.mxu0 0.0
    %1128 = vmatpush1.msra.mxu0 0.0
    %1129 = vmatprep.subr.mxu0 0.0
    %1130 = vmatpush1.msra.mxu0 0.0
    %1131 = vmatprep.subr.mxu0 0.0
    %1132 = vmatpush1.msra.mxu0 0.0
    %1133 = vmatprep.subr.mxu0 0.0
    %1134 = vmatpush1.msra.mxu0 0.0
    %1135 = vmatprep.subr.mxu0 0.0
    %1136 = vmatpush1.msra.mxu0 0.0
    %1137 = vmatprep.subr.mxu0 0.0
    %1138 = vmatpush1.msra.mxu0 0.0
    %1139 = vmatprep.subr.mxu0 0.0
    %1140 = vmatpush1.msra.mxu0 0.0
    %1141 = vmatprep.subr.mxu0 0.0
    %1142 = vmatpush1.msra.mxu0 0.0
    %1143 = vmatprep.subr.mxu0 0.0
    %1144 = vmatpush1.msra.mxu0 0.0
    %1145 = vmatprep.subr.mxu0 0.0
    %1146 = vmatpush1.msra.mxu0 0.0
    %1147 = vmatprep.subr.mxu0 0.0
    %1148 = vmatpush1.msra.mxu0 0.0
    %1149 = vmatprep.subr.mxu0 0.0
    %1150 = vmatpush1.msra.mxu0 0.0
    %1151 = vmatprep.subr.mxu0 0.0
    %1152 = vmatpush1.msra.mxu0 0.0
    %1153 = vmatprep.subr.mxu0 0.0
    %1154 = vmatpush1.msra.mxu0 0.0
    %1155 = vmatprep.subr.mxu0 0.0
    %1156 = vmatpush1.msra.mxu0 0.0
    %1157 = vmatprep.subr.mxu0 0.0
    %1158 = vmatpush1.msra.mxu0 0.0
    %1159 = vmatprep.subr.mxu0 0.0
    %1160 = vmatpush1.msra.mxu0 0.0
    %1161 = vmatprep.subr.mxu0 0.0
    %1162 = vmatpush1.msra.mxu0 0.0
    %1163 = vmatprep.subr.mxu0 0.0
    %1164 = vmatpush1.msra.mxu0 0.0
    %1165 = vmatprep.subr.mxu0 0.0
    %1166 = vmatpush1.msra.mxu0 0.0
    %1167 = vmatprep.subr.mxu0 0.0
    %1168 = vmatpush1.msra.mxu0 0.0
    %1169 = vmatprep.subr.mxu0 0.0
    %1170 = vmatpush1.msra.mxu0 0.0
    %1171 = vmatprep.subr.mxu0 0.0
    %1172 = vmatpush1.msra.mxu0 0.0
    %1173 = vmatprep.subr.mxu0 0.0
    %1174 = vmatpush1.msra.mxu0 0.0
    %1175 = vmatprep.subr.mxu0 0.0
    %1176 = vmatpush1.msra.mxu0 0.0
    %1177 = vmatprep.mubr.f32.mxu0 0.0
    %1178 = vmatmul.mubr.f32.gmra.mrb[0].mxu0 %v1108
    %v1179 = vpop.f32.mrb[0].mxu0
    %v1180 = vadd.f32 %v1106, %v1179
    %v1181 = vpop.f32.mrb[0].mxu0
    %1182 = vmatprep.mubr.f32.mxu0 0.0
    %1183 = vmatmul.mubr.f32.gmra.mrb[0].mxu0 %v1111
    %v1184 = vpop.f32.mrb[0].mxu0
    %v1185 = vadd.f32 %v1106, %v1184
    %v1186 = vpop.f32.mrb[0].mxu0
    %1187 = vdwg.mxu0
    %v1188 = vadd.f32 %v131, %v1180
    %v1189 = vadd.f32 %v136, %v1185
    %v1190 = vsel %vm191, %v1188, 0.0
    %1191 = vadd.xlane.f32.xlu0 %v1190
    %v1192 = vpop.xlane.xlu0 %1191
    %v1193 = vsel %vm191, %v1189, 0.0
    %1194 = vadd.xlane.f32.xlu0 %v1193
    %v1195 = vpop.xlane.xlu0 %1194
    %v1196 = vrcp.pop 32.0
    %v1197 = vmul.f32 %v1192, %v1196
    %v1198 = vmul.f32 %v1195, %v1196
    %v1199 = vsub.f32 %v1188, %v1197
    %v1200 = vsub.f32 %v1189, %v1198
    %v1201 = vmul.f32 %v1199, %v1199
    %v1202 = vmul.f32 %v1200, %v1200
    %v1203 = vsel %vm191, %v1201, 0.0
    %1204 = vadd.xlane.f32.xlu0 %v1203
    %v1205 = vpop.xlane.xlu0 %1204
    %v1206 = vsel %vm191, %v1202, 0.0
    %1207 = vadd.xlane.f32.xlu0 %v1206
    %v1208 = vpop.xlane.xlu0 %1207
    %v1209 = vmul.f32 %v1205, %v1196
    %v1210 = vmul.f32 %v1208, %v1196
    %v1211 = vadd.f32 %v1209, 1e-05
    %v1212 = vadd.f32 %v1210, 1e-05
    %v1213 = vrsqrt.pop %v1211
    %v1214 = vrsqrt.pop %v1212
    %v1215 = vmul.f32 %v1199, %v1213
    %v1216 = vmul.f32 %v1200, %v1214
    %v1217 = vlaneseq
    %v1218 = vshrl.u32 %v1217, 7
    %v1219 = vsub.s32 0, %v1218
    %v1220 = vrot.slane %v181, %v1219
    %v1221 = vmul.f32 %v1215, %v1220
    %v1222 = vmul.f32 %v1216, %v1220
    %v1223 = vlaneseq
    %v1224 = vshrl.u32 %v1223, 7
    %v1225 = vsub.s32 0, %v1224
    %v1226 = vrot.slane %v182, %v1225
    %v1227 = vadd.f32 %v1221, %v1226
    %v1228 = vadd.f32 %v1222, %v1226
    %v1229 = vlaneseq
    %v1230 = vshrl.u32 %v1229, 7
    %v1231 = vsub.s32 0, %v1230
    %v1232 = vrot.slane %v183, %v1231
    %v1234 = vsel %vm191, %v1227, 0
    %v1237 = vsel %vm191, %v1228, 0
    %1239 = vmatprep.subr.mxu0 0.0
    %1240 = vmatpush1.msra.mxu0 %v167
    %1241 = vmatprep.subr.mxu0 0.0
    %1242 = vmatpush1.msra.mxu0 %v168
    %1243 = vmatprep.subr.mxu0 0.0
    %1244 = vmatpush1.msra.mxu0 %v169
    %1245 = vmatprep.subr.mxu0 0.0
    %1246 = vmatpush1.msra.mxu0 %v170
    %1247 = vmatprep.subr.mxu0 0.0
    %1248 = vmatpush1.msra.mxu0 0.0
    %1249 = vmatprep.subr.mxu0 0.0
    %1250 = vmatpush1.msra.mxu0 0.0
    %1251 = vmatprep.subr.mxu0 0.0
    %1252 = vmatpush1.msra.mxu0 0.0
    %1253 = vmatprep.subr.mxu0 0.0
    %1254 = vmatpush1.msra.mxu0 0.0
    %1255 = vmatprep.subr.mxu0 0.0
    %1256 = vmatpush1.msra.mxu0 0.0
    %1257 = vmatprep.subr.mxu0 0.0
    %1258 = vmatpush1.msra.mxu0 0.0
    %1259 = vmatprep.subr.mxu0 0.0
    %1260 = vmatpush1.msra.mxu0 0.0
    %1261 = vmatprep.subr.mxu0 0.0
    %1262 = vmatpush1.msra.mxu0 0.0
    %1263 = vmatprep.subr.mxu0 0.0
    %1264 = vmatpush1.msra.mxu0 0.0
    %1265 = vmatprep.subr.mxu0 0.0
    %1266 = vmatpush1.msra.mxu0 0.0
    %1267 = vmatprep.subr.mxu0 0.0
    %1268 = vmatpush1.msra.mxu0 0.0
    %1269 = vmatprep.subr.mxu0 0.0
    %1270 = vmatpush1.msra.mxu0 0.0
    %1271 = vmatprep.subr.mxu0 0.0
    %1272 = vmatpush1.msra.mxu0 0.0
    %1273 = vmatprep.subr.mxu0 0.0
    %1274 = vmatpush1.msra.mxu0 0.0
    %1275 = vmatprep.subr.mxu0 0.0
    %1276 = vmatpush1.msra.mxu0 0.0
    %1277 = vmatprep.subr.mxu0 0.0
    %1278 = vmatpush1.msra.mxu0 0.0
    %1279 = vmatprep.subr.mxu0 0.0
    %1280 = vmatpush1.msra.mxu0 0.0
    %1281 = vmatprep.subr.mxu0 0.0
    %1282 = vmatpush1.msra.mxu0 0.0
    %1283 = vmatprep.subr.mxu0 0.0
    %1284 = vmatpush1.msra.mxu0 0.0
    %1285 = vmatprep.subr.mxu0 0.0
    %1286 = vmatpush1.msra.mxu0 0.0
    %1287 = vmatprep.subr.mxu0 0.0
    %1288 = vmatpush1.msra.mxu0 0.0
    %1289 = vmatprep.subr.mxu0 0.0
    %1290 = vmatpush1.msra.mxu0 0.0
    %1291 = vmatprep.subr.mxu0 0.0
    %1292 = vmatpush1.msra.mxu0 0.0
    %1293 = vmatprep.subr.mxu0 0.0
    %1294 = vmatpush1.msra.mxu0 0.0
    %1295 = vmatprep.subr.mxu0 0.0
    %1296 = vmatpush1.msra.mxu0 0.0
    %1297 = vmatprep.subr.mxu0 0.0
    %1298 = vmatpush1.msra.mxu0 0.0
    %1299 = vmatprep.subr.mxu0 0.0
    %1300 = vmatpush1.msra.mxu0 0.0
    %1301 = vmatprep.subr.mxu0 0.0
    %1302 = vmatpush1.msra.mxu0 0.0
    %1303 = vmatprep.mubr.f32.mxu0 0.0
    %1304 = vmatmul.mubr.f32.gmra.mrb[0].mxu0 %v1234
    %v1305 = vpop.f32.mrb[0].mxu0
    %v1306 = vadd.f32 %v1232, %v1305
    %v1307 = vpop.f32.mrb[0].mxu0
    %1308 = vmatprep.mubr.f32.mxu0 0.0
    %1309 = vmatmul.mubr.f32.gmra.mrb[0].mxu0 %v1237
    %v1310 = vpop.f32.mrb[0].mxu0
    %v1311 = vadd.f32 %v1232, %v1310
    %v1312 = vpop.f32.mrb[0].mxu0
    %1313 = vdwg.mxu0
    %v1314 = vmax.f32 %v1306, 0.0
    %v1315 = vmax.f32 %v1311, 0.0
    %v1316 = vlaneseq
    %v1317 = vshrl.u32 %v1316, 7
    %v1318 = vsub.s32 0, %v1317
    %v1319 = vrot.slane %v184, %v1318
    %v1321 = vsel %vm57, %v1314, 0
    %v1324 = vsel %vm57, %v1315, 0
    %1326 = vmatprep.subr.mxu0 0.0
    %1327 = vmatpush1.msra.mxu0 %v171
    %1328 = vmatprep.subr.mxu0 0.0
    %1329 = vmatpush1.msra.mxu0 %v172
    %1330 = vmatprep.subr.mxu0 0.0
    %1331 = vmatpush1.msra.mxu0 %v173
    %1332 = vmatprep.subr.mxu0 0.0
    %1333 = vmatpush1.msra.mxu0 %v174
    %1334 = vmatprep.subr.mxu0 0.0
    %1335 = vmatpush1.msra.mxu0 %v175
    %1336 = vmatprep.subr.mxu0 0.0
    %1337 = vmatpush1.msra.mxu0 %v176
    %1338 = vmatprep.subr.mxu0 0.0
    %1339 = vmatpush1.msra.mxu0 %v177
    %1340 = vmatprep.subr.mxu0 0.0
    %1341 = vmatpush1.msra.mxu0 %v178
    %1342 = vmatprep.subr.mxu0 0.0
    %1343 = vmatpush1.msra.mxu0 0.0
    %1344 = vmatprep.subr.mxu0 0.0
    %1345 = vmatpush1.msra.mxu0 0.0
    %1346 = vmatprep.subr.mxu0 0.0
    %1347 = vmatpush1.msra.mxu0 0.0
    %1348 = vmatprep.subr.mxu0 0.0
    %1349 = vmatpush1.msra.mxu0 0.0
    %1350 = vmatprep.subr.mxu0 0.0
    %1351 = vmatpush1.msra.mxu0 0.0
    %1352 = vmatprep.subr.mxu0 0.0
    %1353 = vmatpush1.msra.mxu0 0.0
    %1354 = vmatprep.subr.mxu0 0.0
    %1355 = vmatpush1.msra.mxu0 0.0
    %1356 = vmatprep.subr.mxu0 0.0
    %1357 = vmatpush1.msra.mxu0 0.0
    %1358 = vmatprep.subr.mxu0 0.0
    %1359 = vmatpush1.msra.mxu0 0.0
    %1360 = vmatprep.subr.mxu0 0.0
    %1361 = vmatpush1.msra.mxu0 0.0
    %1362 = vmatprep.subr.mxu0 0.0
    %1363 = vmatpush1.msra.mxu0 0.0
    %1364 = vmatprep.subr.mxu0 0.0
    %1365 = vmatpush1.msra.mxu0 0.0
    %1366 = vmatprep.subr.mxu0 0.0
    %1367 = vmatpush1.msra.mxu0 0.0
    %1368 = vmatprep.subr.mxu0 0.0
    %1369 = vmatpush1.msra.mxu0 0.0
    %1370 = vmatprep.subr.mxu0 0.0
    %1371 = vmatpush1.msra.mxu0 0.0
    %1372 = vmatprep.subr.mxu0 0.0
    %1373 = vmatpush1.msra.mxu0 0.0
    %1374 = vmatprep.subr.mxu0 0.0
    %1375 = vmatpush1.msra.mxu0 0.0
    %1376 = vmatprep.subr.mxu0 0.0
    %1377 = vmatpush1.msra.mxu0 0.0
    %1378 = vmatprep.subr.mxu0 0.0
    %1379 = vmatpush1.msra.mxu0 0.0
    %1380 = vmatprep.subr.mxu0 0.0
    %1381 = vmatpush1.msra.mxu0 0.0
    %1382 = vmatprep.subr.mxu0 0.0
    %1383 = vmatpush1.msra.mxu0 0.0
    %1384 = vmatprep.subr.mxu0 0.0
    %1385 = vmatpush1.msra.mxu0 0.0
    %1386 = vmatprep.subr.mxu0 0.0
    %1387 = vmatpush1.msra.mxu0 0.0
    %1388 = vmatprep.subr.mxu0 0.0
    %1389 = vmatpush1.msra.mxu0 0.0
    %1390 = vmatprep.mubr.f32.mxu0 0.0
    %1391 = vmatmul.mubr.f32.gmra.mrb[0].mxu0 %v1321
    %v1392 = vpop.f32.mrb[0].mxu0
    %v1393 = vadd.f32 %v1319, %v1392
    %v1394 = vpop.f32.mrb[0].mxu0
    %1395 = vmatprep.mubr.f32.mxu0 0.0
    %1396 = vmatmul.mubr.f32.gmra.mrb[0].mxu0 %v1324
    %v1397 = vpop.f32.mrb[0].mxu0
    %v1398 = vadd.f32 %v1319, %v1397
    %v1399 = vpop.f32.mrb[0].mxu0
    %1400 = vdwg.mxu0
    %v1401 = vadd.f32 %v1227, %v1393
    %v1402 = vadd.f32 %v1228, %v1398
    %v1403 = vsel %vm191, %v1401, 0.0
    %1404 = vadd.xlane.f32.xlu0 %v1403
    %v1405 = vpop.xlane.xlu0 %1404
    %v1406 = vsel %vm191, %v1402, 0.0
    %1407 = vadd.xlane.f32.xlu0 %v1406
    %v1408 = vpop.xlane.xlu0 %1407
    %v1409 = vmul.f32 %v1405, %v1196
    %v1410 = vmul.f32 %v1408, %v1196
    %v1411 = vsub.f32 %v1401, %v1409
    %v1412 = vsub.f32 %v1402, %v1410
    %v1413 = vmul.f32 %v1411, %v1411
    %v1414 = vmul.f32 %v1412, %v1412
    %v1415 = vsel %vm191, %v1413, 0.0
    %1416 = vadd.xlane.f32.xlu0 %v1415
    %v1417 = vpop.xlane.xlu0 %1416
    %v1418 = vsel %vm191, %v1414, 0.0
    %1419 = vadd.xlane.f32.xlu0 %v1418
    %v1420 = vpop.xlane.xlu0 %1419
    %v1421 = vmul.f32 %v1417, %v1196
    %v1422 = vmul.f32 %v1420, %v1196
    %v1423 = vadd.f32 %v1421, 1e-05
    %v1424 = vadd.f32 %v1422, 1e-05
    %v1425 = vrsqrt.pop %v1423
    %v1426 = vrsqrt.pop %v1424
    %v1427 = vmul.f32 %v1411, %v1425
    %v1428 = vmul.f32 %v1412, %v1426
    %v1429 = vlaneseq
    %v1430 = vshrl.u32 %v1429, 7
    %v1431 = vsub.s32 0, %v1430
    %v1432 = vrot.slane %v185, %v1431
    %v1433 = vmul.f32 %v1427, %v1432
    %v1434 = vmul.f32 %v1428, %v1432
    %v1435 = vlaneseq
    %v1436 = vshrl.u32 %v1435, 7
    %v1437 = vsub.s32 0, %v1436
    %v1438 = vrot.slane %v186, %v1437
    %v1439 = vadd.f32 %v1433, %v1438
    %v1440 = vadd.f32 %v1434, %v1438
    %v1441 = vld [vmem:[#allocation2 + $0x130] sm:$0xff]
    %v1442 = vld [vmem:[#allocation2 + $0x138] sm:$0xff]
    %v1443 = vld [vmem:[#allocation2 + $0x140] sm:$0xff]
    %v1444 = vld [vmem:[#allocation2 + $0x148] sm:$0xff]
    %v1445 = vld [vmem:[#allocation2 + $0x150] sm:$0xff]
    %v1446 = vld [vmem:[#allocation2 + $0x158] sm:$0xff]
    %v1447 = vld [vmem:[#allocation2 + $0x160] sm:$0xff]
    %v1448 = vld [vmem:[#allocation2 + $0x168] sm:$0xff]
    %v1449 = vld [vmem:[#allocation2 + $0x170] sm:$0xff]
    %v1450 = vld [vmem:[#allocation2 + $0x178] sm:$0xff]
    %v1451 = vld [vmem:[#allocation2 + $0x180] sm:$0xff]
    %v1452 = vld [vmem:[#allocation2 + $0x188] sm:$0xff]
    %v1453 = vld [vmem:[#allocation2 + $0x190] sm:$0xff]
    %v1454 = vld [vmem:[#allocation2 + $0x198] sm:$0xff]
    %v1455 = vld [vmem:[#allocation2 + $0x1a0] sm:$0xff]
    %v1456 = vld [vmem:[#allocation2 + $0x1a8] sm:$0xff]
    %v1457 = vld [vmem:[#allocation2 + $0x1b0] sm:$0xff]
    %v1458 = vld [vmem:[#allocation2 + $0x1b8] sm:$0xff]
    %v1459 = vld [vmem:[#allocation2 + $0x1c0] sm:$0xff]
    %v1460 = vld [vmem:[#allocation2 + $0x1c8] sm:$0xff]
    %v1461 = vld [vmem:[#allocation2 + $0x1d0] sm:$0x1]
    %v1462 = vld [vmem:[#allocation2 + $0x1d1] sm:$0x1]
    %v1463 = vld [vmem:[#allocation2 + $0x1d2] sm:$0x1]
    %v1464 = vld [vmem:[#allocation2 + $0x1d3] sm:$0x1]
    %v1465 = vld [vmem:[#allocation2 + $0x1d4] sm:$0x1]
    %v1466 = vld [vmem:[#allocation2 + $0x1d5] sm:$0x1]
    %v1467 = vld [vmem:[#allocation2 + $0x1d6] sm:$0x1]
    %v1468 = vld [vmem:[#allocation2 + $0x1d7] sm:$0x1]
    %v1469 = vlaneseq
    %v1470 = vshrl.u32 %v1469, 7
    %v1471 = vsub.s32 0, %v1470
    %v1472 = vrot.slane %v1461, %v1471
    %v1474 = vsel %vm191, %v1439, 0
    %v1477 = vsel %vm191, %v1440, 0
    %1479 = vmatprep.subr.mxu0 0.0
    %1480 = vmatpush1.msra.mxu0 %v1441
    %1481 = vmatprep.subr.mxu0 0.0
    %1482 = vmatpush1.msra.mxu0 %v1442
    %1483 = vmatprep.subr.mxu0 0.0
    %1484 = vmatpush1.msra.mxu0 %v1443
    %1485 = vmatprep.subr.mxu0 0.0
    %1486 = vmatpush1.msra.mxu0 %v1444
    %1487 = vmatprep.subr.mxu0 0.0
    %1488 = vmatpush1.msra.mxu0 0.0
    %1489 = vmatprep.subr.mxu0 0.0
    %1490 = vmatpush1.msra.mxu0 0.0
    %1491 = vmatprep.subr.mxu0 0.0
    %1492 = vmatpush1.msra.mxu0 0.0
    %1493 = vmatprep.subr.mxu0 0.0
    %1494 = vmatpush1.msra.mxu0 0.0
    %1495 = vmatprep.subr.mxu0 0.0
    %1496 = vmatpush1.msra.mxu0 0.0
    %1497 = vmatprep.subr.mxu0 0.0
    %1498 = vmatpush1.msra.mxu0 0.0
    %1499 = vmatprep.subr.mxu0 0.0
    %1500 = vmatpush1.msra.mxu0 0.0
    %1501 = vmatprep.subr.mxu0 0.0
    %1502 = vmatpush1.msra.mxu0 0.0
    %1503 = vmatprep.subr.mxu0 0.0
    %1504 = vmatpush1.msra.mxu0 0.0
    %1505 = vmatprep.subr.mxu0 0.0
    %1506 = vmatpush1.msra.mxu0 0.0
    %1507 = vmatprep.subr.mxu0 0.0
    %1508 = vmatpush1.msra.mxu0 0.0
    %1509 = vmatprep.subr.mxu0 0.0
    %1510 = vmatpush1.msra.mxu0 0.0
    %1511 = vmatprep.subr.mxu0 0.0
    %1512 = vmatpush1.msra.mxu0 0.0
    %1513 = vmatprep.subr.mxu0 0.0
    %1514 = vmatpush1.msra.mxu0 0.0
    %1515 = vmatprep.subr.mxu0 0.0
    %1516 = vmatpush1.msra.mxu0 0.0
    %1517 = vmatprep.subr.mxu0 0.0
    %1518 = vmatpush1.msra.mxu0 0.0
    %1519 = vmatprep.subr.mxu0 0.0
    %1520 = vmatpush1.msra.mxu0 0.0
    %1521 = vmatprep.subr.mxu0 0.0
    %1522 = vmatpush1.msra.mxu0 0.0
    %1523 = vmatprep.subr.mxu0 0.0
    %1524 = vmatpush1.msra.mxu0 0.0
    %1525 = vmatprep.subr.mxu0 0.0
    %1526 = vmatpush1.msra.mxu0 0.0
    %1527 = vmatprep.subr.mxu0 0.0
    %1528 = vmatpush1.msra.mxu0 0.0
    %1529 = vmatprep.subr.mxu0 0.0
    %1530 = vmatpush1.msra.mxu0 0.0
    %1531 = vmatprep.subr.mxu0 0.0
    %1532 = vmatpush1.msra.mxu0 0.0
    %1533 = vmatprep.subr.mxu0 0.0
    %1534 = vmatpush1.msra.mxu0 0.0
    %1535 = vmatprep.subr.mxu0 0.0
    %1536 = vmatpush1.msra.mxu0 0.0
    %1537 = vmatprep.subr.mxu0 0.0
    %1538 = vmatpush1.msra.mxu0 0.0
    %1539 = vmatprep.subr.mxu0 0.0
    %1540 = vmatpush1.msra.mxu0 0.0
    %1541 = vmatprep.subr.mxu0 0.0
    %1542 = vmatpush1.msra.mxu0 0.0
    %1543 = vmatprep.mubr.f32.mxu0 0.0
    %1544 = vmatmul.mubr.f32.gmra.mrb[0].mxu0 %v1474
    %v1545 = vpop.f32.mrb[0].mxu0
    %v1546 = vadd.f32 %v1472, %v1545
    %v1547 = vpop.f32.mrb[0].mxu0
    %1548 = vmatprep.mubr.f32.mxu0 0.0
    %1549 = vmatmul.mubr.f32.gmra.mrb[0].mxu0 %v1477
    %v1550 = vpop.f32.mrb[0].mxu0
    %v1551 = vadd.f32 %v1472, %v1550
    %v1552 = vpop.f32.mrb[0].mxu0
    %1553 = vdwg.mxu0
    %1556 = vrot.lane.b32.xlu0 %v1546, 120
    %v1557 = vpop.permute.xlu0 %1556
    %1558 = vrot.lane.b32.xlu0 %v1551, 120
    %v1559 = vpop.permute.xlu0 %1558
    %1560 = vrot.lane.b32.xlu0 %v1546, 112
    %v1561 = vpop.permute.xlu0 %1560
    %1562 = vrot.lane.b32.xlu0 %v1551, 112
    %v1563 = vpop.permute.xlu0 %1562
    %1564 = vrot.lane.b32.xlu0 %v1546, 104
    %v1565 = vpop.permute.xlu0 %1564
    %1566 = vrot.lane.b32.xlu0 %v1551, 104
    %v1567 = vpop.permute.xlu0 %1566
    %1568 = vrot.lane.b32.xlu0 %v1546, 96
    %v1569 = vpop.permute.xlu0 %1568
    %1570 = vrot.lane.b32.xlu0 %v1551, 96
    %v1571 = vpop.permute.xlu0 %1570
    %v1572 = vsel %vm144, %v1546, 0
    %v1574 = vsel %vm144, %v1551, 0
    %v1576 = vsel %vm144, %v1569, 0
    %v1578 = vsel %vm144, %v1571, 0
    %1580 = vmatprep.subr.mxu0 0.0
    %1581 = vmatpush1.xpose.msra.mxu0 %v1576
    %1582 = vmatprep.subr.mxu0 0.0
    %1583 = vmatpush1.xpose.msra.mxu0 %v1578
    %1584 = vmatprep.subr.mxu0 0.0
    %1585 = vmatpush1.xpose.msra.mxu0 0.0
    %1586 = vmatprep.subr.mxu0 0.0
    %1587 = vmatpush1.xpose.msra.mxu0 0.0
    %1588 = vmatprep.subr.mxu0 0.0
    %1589 = vmatpush1.xpose.msra.mxu0 0.0
    %1590 = vmatprep.subr.mxu0 0.0
    %1591 = vmatpush1.xpose.msra.mxu0 0.0
    %1592 = vmatprep.subr.mxu0 0.0
    %1593 = vmatpush1.xpose.msra.mxu0 0.0
    %1594 = vmatprep.subr.mxu0 0.0
    %1595 = vmatpush1.xpose.msra.mxu0 0.0
    %1596 = vmatprep.subr.mxu0 0.0
    %1597 = vmatpush1.xpose.msra.mxu0 0.0
    %1598 = vmatprep.subr.mxu0 0.0
    %1599 = vmatpush1.xpose.msra.mxu0 0.0
    %1600 = vmatprep.subr.mxu0 0.0
    %1601 = vmatpush1.xpose.msra.mxu0 0.0
    %1602 = vmatprep.subr.mxu0 0.0
    %1603 = vmatpush1.xpose.msra.mxu0 0.0
    %1604 = vmatprep.subr.mxu0 0.0
    %1605 = vmatpush1.xpose.msra.mxu0 0.0
    %1606 = vmatprep.subr.mxu0 0.0
    %1607 = vmatpush1.xpose.msra.mxu0 0.0
    %1608 = vmatprep.subr.mxu0 0.0
    %1609 = vmatpush1.xpose.msra.mxu0 0.0
    %1610 = vmatprep.subr.mxu0 0.0
    %1611 = vmatpush1.xpose.msra.mxu0 0.0
    %1612 = vmatprep.subr.mxu0 0.0
    %1613 = vmatpush1.xpose.msra.mxu0 0.0
    %1614 = vmatprep.subr.mxu0 0.0
    %1615 = vmatpush1.xpose.msra.mxu0 0.0
    %1616 = vmatprep.subr.mxu0 0.0
    %1617 = vmatpush1.xpose.msra.mxu0 0.0
    %1618 = vmatprep.subr.mxu0 0.0
    %1619 = vmatpush1.xpose.msra.mxu0 0.0
    %1620 = vmatprep.subr.mxu0 0.0
    %1621 = vmatpush1.xpose.msra.mxu0 0.0
    %1622 = vmatprep.subr.mxu0 0.0
    %1623 = vmatpush1.xpose.msra.mxu0 0.0
    %1624 = vmatprep.subr.mxu0 0.0
    %1625 = vmatpush1.xpose.msra.mxu0 0.0
    %1626 = vmatprep.subr.mxu0 0.0
    %1627 = vmatpush1.xpose.msra.mxu0 0.0
    %1628 = vmatprep.subr.mxu0 0.0
    %1629 = vmatpush1.xpose.msra.mxu0 0.0
    %1630 = vmatprep.subr.mxu0 0.0
    %1631 = vmatpush1.xpose.msra.mxu0 0.0
    %1632 = vmatprep.subr.mxu0 0.0
    %1633 = vmatpush1.xpose.msra.mxu0 0.0
    %1634 = vmatprep.subr.mxu0 0.0
    %1635 = vmatpush1.xpose.msra.mxu0 0.0
    %1636 = vmatprep.subr.mxu0 0.0
    %1637 = vmatpush1.xpose.msra.mxu0 0.0
    %1638 = vmatprep.subr.mxu0 0.0
    %1639 = vmatpush1.xpose.msra.mxu0 0.0
    %1640 = vmatprep.subr.mxu0 0.0
    %1641 = vmatpush1.xpose.msra.mxu0 0.0
    %1642 = vmatprep.subr.mxu0 0.0
    %1643 = vmatpush1.xpose.msra.mxu0 0.0
    %1644 = vmatprep.mubr.f32.mxu0 0.0
    %1645 = vmatmul.mubr.f32.gmra.mrb[0].mxu0 %v1572
    %v1646 = vpop.f32.mrb[0].mxu0
    %v1647 = vadd.f32 %v157, %v1646
    %v1648 = vpop.f32.mrb[0].mxu0
    %1649 = vmatprep.mubr.f32.mxu0 0.0
    %1650 = vmatmul.mubr.f32.gmra.mrb[0].mxu0 %v1574
    %v1651 = vpop.f32.mrb[0].mxu0
    %v1652 = vadd.f32 %v158, %v1651
    %v1653 = vpop.f32.mrb[0].mxu0
    %1654 = vdwg.mxu0
    %1655 = vrot.lane.b32.xlu0 %v1557, 96
    %v1656 = vpop.permute.xlu0 %1655
    %1657 = vrot.lane.b32.xlu0 %v1559, 96
    %v1658 = vpop.permute.xlu0 %1657
    %v1659 = vsel %vm144, %v1557, 0
    %v1661 = vsel %vm144, %v1559, 0
    %v1663 = vsel %vm144, %v1656, 0
    %v1665 = vsel %vm144, %v1658, 0
    %1667 = vmatprep.subr.mxu0 0.0
    %1668 = vmatpush1.xpose.msra.mxu0 %v1663
    %1669 = vmatprep.subr.mxu0 0.0
    %1670 = vmatpush1.xpose.msra.mxu0 %v1665
    %1671 = vmatprep.subr.mxu0 0.0
    %1672 = vmatpush1.xpose.msra.mxu0 0.0
    %1673 = vmatprep.subr.mxu0 0.0
    %1674 = vmatpush1.xpose.msra.mxu0 0.0
    %1675 = vmatprep.subr.mxu0 0.0
    %1676 = vmatpush1.xpose.msra.mxu0 0.0
    %1677 = vmatprep.subr.mxu0 0.0
    %1678 = vmatpush1.xpose.msra.mxu0 0.0
    %1679 = vmatprep.subr.mxu0 0.0
    %1680 = vmatpush1.xpose.msra.mxu0 0.0
    %1681 = vmatprep.subr.mxu0 0.0
    %1682 = vmatpush1.xpose.msra.mxu0 0.0
    %1683 = vmatprep.subr.mxu0 0.0
    %1684 = vmatpush1.xpose.msra.mxu0 0.0
    %1685 = vmatprep.subr.mxu0 0.0
    %1686 = vmatpush1.xpose.msra.mxu0 0.0
    %1687 = vmatprep.subr.mxu0 0.0
    %1688 = vmatpush1.xpose.msra.mxu0 0.0
    %1689 = vmatprep.subr.mxu0 0.0
    %1690 = vmatpush1.xpose.msra.mxu0 0.0
    %1691 = vmatprep.subr.mxu0 0.0
    %1692 = vmatpush1.xpose.msra.mxu0 0.0
    %1693 = vmatprep.subr.mxu0 0.0
    %1694 = vmatpush1.xpose.msra.mxu0 0.0
    %1695 = vmatprep.subr.mxu0 0.0
    %1696 = vmatpush1.xpose.msra.mxu0 0.0
    %1697 = vmatprep.subr.mxu0 0.0
    %1698 = vmatpush1.xpose.msra.mxu0 0.0
    %1699 = vmatprep.subr.mxu0 0.0
    %1700 = vmatpush1.xpose.msra.mxu0 0.0
    %1701 = vmatprep.subr.mxu0 0.0
    %1702 = vmatpush1.xpose.msra.mxu0 0.0
    %1703 = vmatprep.subr.mxu0 0.0
    %1704 = vmatpush1.xpose.msra.mxu0 0.0
    %1705 = vmatprep.subr.mxu0 0.0
    %1706 = vmatpush1.xpose.msra.mxu0 0.0
    %1707 = vmatprep.subr.mxu0 0.0
    %1708 = vmatpush1.xpose.msra.mxu0 0.0
    %1709 = vmatprep.subr.mxu0 0.0
    %1710 = vmatpush1.xpose.msra.mxu0 0.0
    %1711 = vmatprep.subr.mxu0 0.0
    %1712 = vmatpush1.xpose.msra.mxu0 0.0
    %1713 = vmatprep.subr.mxu0 0.0
    %1714 = vmatpush1.xpose.msra.mxu0 0.0
    %1715 = vmatprep.subr.mxu0 0.0
    %1716 = vmatpush1.xpose.msra.mxu0 0.0
    %1717 = vmatprep.subr.mxu0 0.0
    %1718 = vmatpush1.xpose.msra.mxu0 0.0
    %1719 = vmatprep.subr.mxu0 0.0
    %1720 = vmatpush1.xpose.msra.mxu0 0.0
    %1721 = vmatprep.subr.mxu0 0.0
    %1722 = vmatpush1.xpose.msra.mxu0 0.0
    %1723 = vmatprep.subr.mxu0 0.0
    %1724 = vmatpush1.xpose.msra.mxu0 0.0
    %1725 = vmatprep.subr.mxu0 0.0
    %1726 = vmatpush1.xpose.msra.mxu0 0.0
    %1727 = vmatprep.subr.mxu0 0.0
    %1728 = vmatpush1.xpose.msra.mxu0 0.0
    %1729 = vmatprep.subr.mxu0 0.0
    %1730 = vmatpush1.xpose.msra.mxu0 0.0
    %1731 = vmatprep.mubr.f32.mxu0 0.0
    %1732 = vmatmul.mubr.f32.gmra.mrb[0].mxu0 %v1659
    %v1733 = vpop.f32.mrb[0].mxu0
    %v1734 = vadd.f32 %v157, %v1733
    %v1735 = vpop.f32.mrb[0].mxu0
    %1736 = vmatprep.mubr.f32.mxu0 0.0
    %1737 = vmatmul.mubr.f32.gmra.mrb[0].mxu0 %v1661
    %v1738 = vpop.f32.mrb[0].mxu0
    %v1739 = vadd.f32 %v158, %v1738
    %v1740 = vpop.f32.mrb[0].mxu0
    %1741 = vdwg.mxu0
    %1742 = vrot.lane.b32.xlu0 %v1561, 96
    %v1743 = vpop.permute.xlu0 %1742
    %1744 = vrot.lane.b32.xlu0 %v1563, 96
    %v1745 = vpop.permute.xlu0 %1744
    %v1746 = vsel %vm144, %v1561, 0
    %v1748 = vsel %vm144, %v1563, 0
    %v1750 = vsel %vm144, %v1743, 0
    %v1752 = vsel %vm144, %v1745, 0
    %1754 = vmatprep.subr.mxu0 0.0
    %1755 = vmatpush1.xpose.msra.mxu0 %v1750
    %1756 = vmatprep.subr.mxu0 0.0
    %1757 = vmatpush1.xpose.msra.mxu0 %v1752
    %1758 = vmatprep.subr.mxu0 0.0
    %1759 = vmatpush1.xpose.msra.mxu0 0.0
    %1760 = vmatprep.subr.mxu0 0.0
    %1761 = vmatpush1.xpose.msra.mxu0 0.0
    %1762 = vmatprep.subr.mxu0 0.0
    %1763 = vmatpush1.xpose.msra.mxu0 0.0
    %1764 = vmatprep.subr.mxu0 0.0
    %1765 = vmatpush1.xpose.msra.mxu0 0.0
    %1766 = vmatprep.subr.mxu0 0.0
    %1767 = vmatpush1.xpose.msra.mxu0 0.0
    %1768 = vmatprep.subr.mxu0 0.0
    %1769 = vmatpush1.xpose.msra.mxu0 0.0
    %1770 = vmatprep.subr.mxu0 0.0
    %1771 = vmatpush1.xpose.msra.mxu0 0.0
    %1772 = vmatprep.subr.mxu0 0.0
    %1773 = vmatpush1.xpose.msra.mxu0 0.0
    %1774 = vmatprep.subr.mxu0 0.0
    %1775 = vmatpush1.xpose.msra.mxu0 0.0
    %1776 = vmatprep.subr.mxu0 0.0
    %1777 = vmatpush1.xpose.msra.mxu0 0.0
    %1778 = vmatprep.subr.mxu0 0.0
    %1779 = vmatpush1.xpose.msra.mxu0 0.0
    %1780 = vmatprep.subr.mxu0 0.0
    %1781 = vmatpush1.xpose.msra.mxu0 0.0
    %1782 = vmatprep.subr.mxu0 0.0
    %1783 = vmatpush1.xpose.msra.mxu0 0.0
    %1784 = vmatprep.subr.mxu0 0.0
    %1785 = vmatpush1.xpose.msra.mxu0 0.0
    %1786 = vmatprep.subr.mxu0 0.0
    %1787 = vmatpush1.xpose.msra.mxu0 0.0
    %1788 = vmatprep.subr.mxu0 0.0
    %1789 = vmatpush1.xpose.msra.mxu0 0.0
    %1790 = vmatprep.subr.mxu0 0.0
    %1791 = vmatpush1.xpose.msra.mxu0 0.0
    %1792 = vmatprep.subr.mxu0 0.0
    %1793 = vmatpush1.xpose.msra.mxu0 0.0
    %1794 = vmatprep.subr.mxu0 0.0
    %1795 = vmatpush1.xpose.msra.mxu0 0.0
    %1796 = vmatprep.subr.mxu0 0.0
    %1797 = vmatpush1.xpose.msra.mxu0 0.0
    %1798 = vmatprep.subr.mxu0 0.0
    %1799 = vmatpush1.xpose.msra.mxu0 0.0
    %1800 = vmatprep.subr.mxu0 0.0
    %1801 = vmatpush1.xpose.msra.mxu0 0.0
    %1802 = vmatprep.subr.mxu0 0.0
    %1803 = vmatpush1.xpose.msra.mxu0 0.0
    %1804 = vmatprep.subr.mxu0 0.0
    %1805 = vmatpush1.xpose.msra.mxu0 0.0
    %1806 = vmatprep.subr.mxu0 0.0
    %1807 = vmatpush1.xpose.msra.mxu0 0.0
    %1808 = vmatprep.subr.mxu0 0.0
    %1809 = vmatpush1.xpose.msra.mxu0 0.0
    %1810 = vmatprep.subr.mxu0 0.0
    %1811 = vmatpush1.xpose.msra.mxu0 0.0
    %1812 = vmatprep.subr.mxu0 0.0
    %1813 = vmatpush1.xpose.msra.mxu0 0.0
    %1814 = vmatprep.subr.mxu0 0.0
    %1815 = vmatpush1.xpose.msra.mxu0 0.0
    %1816 = vmatprep.subr.mxu0 0.0
    %1817 = vmatpush1.xpose.msra.mxu0 0.0
    %1818 = vmatprep.mubr.f32.mxu0 0.0
    %1819 = vmatmul.mubr.f32.gmra.mrb[0].mxu0 %v1746
    %v1820 = vpop.f32.mrb[0].mxu0
    %v1821 = vadd.f32 %v157, %v1820
    %v1822 = vpop.f32.mrb[0].mxu0
    %1823 = vmatprep.mubr.f32.mxu0 0.0
    %1824 = vmatmul.mubr.f32.gmra.mrb[0].mxu0 %v1748
    %v1825 = vpop.f32.mrb[0].mxu0
    %v1826 = vadd.f32 %v158, %v1825
    %v1827 = vpop.f32.mrb[0].mxu0
    %1828 = vdwg.mxu0
    %1829 = vrot.lane.b32.xlu0 %v1565, 96
    %v1830 = vpop.permute.xlu0 %1829
    %1831 = vrot.lane.b32.xlu0 %v1567, 96
    %v1832 = vpop.permute.xlu0 %1831
    %v1833 = vsel %vm144, %v1565, 0
    %v1835 = vsel %vm144, %v1567, 0
    %v1837 = vsel %vm144, %v1830, 0
    %v1839 = vsel %vm144, %v1832, 0
    %1841 = vmatprep.subr.mxu0 0.0
    %1842 = vmatpush1.xpose.msra.mxu0 %v1837
    %1843 = vmatprep.subr.mxu0 0.0
    %1844 = vmatpush1.xpose.msra.mxu0 %v1839
    %1845 = vmatprep.subr.mxu0 0.0
    %1846 = vmatpush1.xpose.msra.mxu0 0.0
    %1847 = vmatprep.subr.mxu0 0.0
    %1848 = vmatpush1.xpose.msra.mxu0 0.0
    %1849 = vmatprep.subr.mxu0 0.0
    %1850 = vmatpush1.xpose.msra.mxu0 0.0
    %1851 = vmatprep.subr.mxu0 0.0
    %1852 = vmatpush1.xpose.msra.mxu0 0.0
    %1853 = vmatprep.subr.mxu0 0.0
    %1854 = vmatpush1.xpose.msra.mxu0 0.0
    %1855 = vmatprep.subr.mxu0 0.0
    %1856 = vmatpush1.xpose.msra.mxu0 0.0
    %1857 = vmatprep.subr.mxu0 0.0
    %1858 = vmatpush1.xpose.msra.mxu0 0.0
    %1859 = vmatprep.subr.mxu0 0.0
    %1860 = vmatpush1.xpose.msra.mxu0 0.0
    %1861 = vmatprep.subr.mxu0 0.0
    %1862 = vmatpush1.xpose.msra.mxu0 0.0
    %1863 = vmatprep.subr.mxu0 0.0
    %1864 = vmatpush1.xpose.msra.mxu0 0.0
    %1865 = vmatprep.subr.mxu0 0.0
    %1866 = vmatpush1.xpose.msra.mxu0 0.0
    %1867 = vmatprep.subr.mxu0 0.0
    %1868 = vmatpush1.xpose.msra.mxu0 0.0
    %1869 = vmatprep.subr.mxu0 0.0
    %1870 = vmatpush1.xpose.msra.mxu0 0.0
    %1871 = vmatprep.subr.mxu0 0.0
    %1872 = vmatpush1.xpose.msra.mxu0 0.0
    %1873 = vmatprep.subr.mxu0 0.0
    %1874 = vmatpush1.xpose.msra.mxu0 0.0
    %1875 = vmatprep.subr.mxu0 0.0
    %1876 = vmatpush1.xpose.msra.mxu0 0.0
    %1877 = vmatprep.subr.mxu0 0.0
    %1878 = vmatpush1.xpose.msra.mxu0 0.0
    %1879 = vmatprep.subr.mxu0 0.0
    %1880 = vmatpush1.xpose.msra.mxu0 0.0
    %1881 = vmatprep.subr.mxu0 0.0
    %1882 = vmatpush1.xpose.msra.mxu0 0.0
    %1883 = vmatprep.subr.mxu0 0.0
    %1884 = vmatpush1.xpose.msra.mxu0 0.0
    %1885 = vmatprep.subr.mxu0 0.0
    %1886 = vmatpush1.xpose.msra.mxu0 0.0
    %1887 = vmatprep.subr.mxu0 0.0
    %1888 = vmatpush1.xpose.msra.mxu0 0.0
    %1889 = vmatprep.subr.mxu0 0.0
    %1890 = vmatpush1.xpose.msra.mxu0 0.0
    %1891 = vmatprep.subr.mxu0 0.0
    %1892 = vmatpush1.xpose.msra.mxu0 0.0
    %1893 = vmatprep.subr.mxu0 0.0
    %1894 = vmatpush1.xpose.msra.mxu0 0.0
    %1895 = vmatprep.subr.mxu0 0.0
    %1896 = vmatpush1.xpose.msra.mxu0 0.0
    %1897 = vmatprep.subr.mxu0 0.0
    %1898 = vmatpush1.xpose.msra.mxu0 0.0
    %1899 = vmatprep.subr.mxu0 0.0
    %1900 = vmatpush1.xpose.msra.mxu0 0.0
    %1901 = vmatprep.subr.mxu0 0.0
    %1902 = vmatpush1.xpose.msra.mxu0 0.0
    %1903 = vmatprep.subr.mxu0 0.0
    %1904 = vmatpush1.xpose.msra.mxu0 0.0
    %1905 = vmatprep.mubr.f32.mxu0 0.0
    %1906 = vmatmul.mubr.f32.gmra.mrb[0].mxu0 %v1833
    %v1907 = vpop.f32.mrb[0].mxu0
    %v1908 = vadd.f32 %v157, %v1907
    %v1909 = vpop.f32.mrb[0].mxu0
    %1910 = vmatprep.mubr.f32.mxu0 0.0
    %1911 = vmatmul.mubr.f32.gmra.mrb[0].mxu0 %v1835
    %v1912 = vpop.f32.mrb[0].mxu0
    %v1913 = vadd.f32 %v158, %v1912
    %v1914 = vpop.f32.mrb[0].mxu0
    %1915 = vdwg.mxu0
    %v1916 = vsel %vm635, %v1647, -inf
    %1917 = vmax.xlane.f32.xlu0 %v1916
    %v1918 = vpop.xlane.xlu0 %1917
    %v1919 = vsel %vm635, %v1652, -inf
    %1920 = vmax.xlane.f32.xlu0 %v1919
    %v1921 = vpop.xlane.xlu0 %1920
    %v1922 = vsel %vm635, %v1734, -inf
    %1923 = vmax.xlane.f32.xlu0 %v1922
    %v1924 = vpop.xlane.xlu0 %1923
    %v1925 = vsel %vm635, %v1739, -inf
    %1926 = vmax.xlane.f32.xlu0 %v1925
    %v1927 = vpop.xlane.xlu0 %1926
    %v1928 = vsel %vm635, %v1821, -inf
    %1929 = vmax.xlane.f32.xlu0 %v1928
    %v1930 = vpop.xlane.xlu0 %1929
    %v1931 = vsel %vm635, %v1826, -inf
    %1932 = vmax.xlane.f32.xlu0 %v1931
    %v1933 = vpop.xlane.xlu0 %1932
    %v1934 = vsel %vm635, %v1908, -inf
    %1935 = vmax.xlane.f32.xlu0 %v1934
    %v1936 = vpop.xlane.xlu0 %1935
    %v1937 = vsel %vm635, %v1913, -inf
    %1938 = vmax.xlane.f32.xlu0 %v1937
    %v1939 = vpop.xlane.xlu0 %1938
    %v1940 = vsub.f32 %v1647, %v1918
    %v1941 = vsub.f32 %v1652, %v1921
    %v1942 = vsub.f32 %v1734, %v1924
    %v1943 = vsub.f32 %v1739, %v1927
    %v1944 = vsub.f32 %v1821, %v1930
    %v1945 = vsub.f32 %v1826, %v1933
    %v1946 = vsub.f32 %v1908, %v1936
    %v1947 = vsub.f32 %v1913, %v1939
    %v1948 = vmul.f32 %v1940, 1.442695
    %v1949 = vpow.pop %v1948
    %v1950 = vmul.f32 %v1941, 1.442695
    %v1951 = vpow.pop %v1950
    %v1952 = vmul.f32 %v1942, 1.442695
    %v1953 = vpow.pop %v1952
    %v1954 = vmul.f32 %v1943, 1.442695
    %v1955 = vpow.pop %v1954
    %v1956 = vmul.f32 %v1944, 1.442695
    %v1957 = vpow.pop %v1956
    %v1958 = vmul.f32 %v1945, 1.442695
    %v1959 = vpow.pop %v1958
    %v1960 = vmul.f32 %v1946, 1.442695
    %v1961 = vpow.pop %v1960
    %v1962 = vmul.f32 %v1947, 1.442695
    %v1963 = vpow.pop %v1962
    %v1964 = vsel %vm635, %v1949, 0.0
    %1965 = vadd.xlane.f32.xlu0 %v1964
    %v1966 = vpop.xlane.xlu0 %1965
    %v1967 = vsel %vm635, %v1951, 0.0
    %1968 = vadd.xlane.f32.xlu0 %v1967
    %v1969 = vpop.xlane.xlu0 %1968
    %v1970 = vsel %vm635, %v1953, 0.0
    %1971 = vadd.xlane.f32.xlu0 %v1970
    %v1972 = vpop.xlane.xlu0 %1971
    %v1973 = vsel %vm635, %v1955, 0.0
    %1974 = vadd.xlane.f32.xlu0 %v1973
    %v1975 = vpop.xlane.xlu0 %1974
    %v1976 = vsel %vm635, %v1957, 0.0
    %1977 = vadd.xlane.f32.xlu0 %v1976
    %v1978 = vpop.xlane.xlu0 %1977
    %v1979 = vsel %vm635, %v1959, 0.0
    %1980 = vadd.xlane.f32.xlu0 %v1979
    %v1981 = vpop.xlane.xlu0 %1980
    %v1982 = vsel %vm635, %v1961, 0.0
    %1983 = vadd.xlane.f32.xlu0 %v1982
    %v1984 = vpop.xlane.xlu0 %1983
    %v1985 = vsel %vm635, %v1963, 0.0
    %1986 = vadd.xlane.f32.xlu0 %v1985
    %v1987 = vpop.xlane.xlu0 %1986
    %v1988 = vrcp.pop %v1966
    %v1989 = vrcp.pop %v1969
    %v1990 = vrcp.pop %v1972
    %v1991 = vrcp.pop %v1975
    %v1992 = vrcp.pop %v1978
    %v1993 = vrcp.pop %v1981
    %v1994 = vrcp.pop %v1984
    %v1995 = vrcp.pop %v1987
    %v1996 = vmul.f32 %v1949, %v1988
    %v1997 = vmul.f32 %v1951, %v1989
    %v1998 = vmul.f32 %v1953, %v1990
    %v1999 = vmul.f32 %v1955, %v1991
    %v2000 = vmul.f32 %v1957, %v1992
    %v2001 = vmul.f32 %v1959, %v1993
    %v2002 = vmul.f32 %v1961, %v1994
    %v2003 = vmul.f32 %v1963, %v1995
    %2004 = vrot.lane.b32.xlu0 %v1546, 64
    %v2005 = vpop.permute.xlu0 %2004
    %2006 = vrot.lane.b32.xlu0 %v1551, 64
    %v2007 = vpop.permute.xlu0 %2006
    %v2011 = vsel %vm635, %v1996, 0
    %v2014 = vsel %vm635, %v1997, 0
    %2016 = vmatprep.subr.mxu0 0.0
    %2017 = vmatpush1.msra.mxu0 %v2005
    %2018 = vmatprep.subr.mxu0 0.0
    %2019 = vmatpush1.msra.mxu0 %v2007
    %2020 = vmatprep.subr.mxu0 0.0
    %2021 = vmatpush1.msra.mxu0 0.0
    %2022 = vmatprep.subr.mxu0 0.0
    %2023 = vmatpush1.msra.mxu0 0.0
    %2024 = vmatprep.subr.mxu0 0.0
    %2025 = vmatpush1.msra.mxu0 0.0
    %2026 = vmatprep.subr.mxu0 0.0
    %2027 = vmatpush1.msra.mxu0 0.0
    %2028 = vmatprep.subr.mxu0 0.0
    %2029 = vmatpush1.msra.mxu0 0.0
    %2030 = vmatprep.subr.mxu0 0.0
    %2031 = vmatpush1.msra.mxu0 0.0
    %2032 = vmatprep.subr.mxu0 0.0
    %2033 = vmatpush1.msra.mxu0 0.0
    %2034 = vmatprep.subr.mxu0 0.0
    %2035 = vmatpush1.msra.mxu0 0.0
    %2036 = vmatprep.subr.mxu0 0.0
    %2037 = vmatpush1.msra.mxu0 0.0
    %2038 = vmatprep.subr.mxu0 0.0
    %2039 = vmatpush1.msra.mxu0 0.0
    %2040 = vmatprep.subr.mxu0 0.0
    %2041 = vmatpush1.msra.mxu0 0.0
    %2042 = vmatprep.subr.mxu0 0.0
    %2043 = vmatpush1.msra.mxu0 0.0
    %2044 = vmatprep.subr.mxu0 0.0
    %2045 = vmatpush1.msra.mxu0 0.0
    %2046 = vmatprep.subr.mxu0 0.0
    %2047 = vmatpush1.msra.mxu0 0.0
    %2048 = vmatprep.subr.mxu0 0.0
    %2049 = vmatpush1.msra.mxu0 0.0
    %2050 = vmatprep.subr.mxu0 0.0
    %2051 = vmatpush1.msra.mxu0 0.0
    %2052 = vmatprep.subr.mxu0 0.0
    %2053 = vmatpush1.msra.mxu0 0.0
    %2054 = vmatprep.subr.mxu0 0.0
    %2055 = vmatpush1.msra.mxu0 0.0
    %2056 = vmatprep.subr.mxu0 0.0
    %2057 = vmatpush1.msra.mxu0 0.0
    %2058 = vmatprep.subr.mxu0 0.0
    %2059 = vmatpush1.msra.mxu0 0.0
    %2060 = vmatprep.subr.mxu0 0.0
    %2061 = vmatpush1.msra.mxu0 0.0
    %2062 = vmatprep.subr.mxu0 0.0
    %2063 = vmatpush1.msra.mxu0 0.0
    %2064 = vmatprep.subr.mxu0 0.0
    %2065 = vmatpush1.msra.mxu0 0.0
    %2066 = vmatprep.subr.mxu0 0.0
    %2067 = vmatpush1.msra.mxu0 0.0
    %2068 = vmatprep.subr.mxu0 0.0
    %2069 = vmatpush1.msra.mxu0 0.0
    %2070 = vmatprep.subr.mxu0 0.0
    %2071 = vmatpush1.msra.mxu0 0.0
    %2072 = vmatprep.subr.mxu0 0.0
    %2073 = vmatpush1.msra.mxu0 0.0
    %2074 = vmatprep.subr.mxu0 0.0
    %2075 = vmatpush1.msra.mxu0 0.0
    %2076 = vmatprep.subr.mxu0 0.0
    %2077 = vmatpush1.msra.mxu0 0.0
    %2078 = vmatprep.subr.mxu0 0.0
    %2079 = vmatpush1.msra.mxu0 0.0
    %2080 = vmatprep.mubr.f32.mxu0 0.0
    %2081 = vmatmul.mubr.f32.gmra.mrb[0].mxu0 %v2011
    %v2082 = vpop.f32.mrb[0].mxu0
    %v2083 = vadd.f32 0.0, %v2082
    %v2084 = vpop.f32.mrb[0].mxu0
    %2085 = vmatprep.mubr.f32.mxu0 0.0
    %2086 = vmatmul.mubr.f32.gmra.mrb[0].mxu0 %v2014
    %v2087 = vpop.f32.mrb[0].mxu0
    %v2088 = vadd.f32 0.0, %v2087
    %v2089 = vpop.f32.mrb[0].mxu0
    %2090 = vdwg.mxu0
    %2091 = vrot.lane.b32.xlu0 %v1557, 64
    %v2092 = vpop.permute.xlu0 %2091
    %2093 = vrot.lane.b32.xlu0 %v1559, 64
    %v2094 = vpop.permute.xlu0 %2093
    %v2098 = vsel %vm635, %v1998, 0
    %v2101 = vsel %vm635, %v1999, 0
    %2103 = vmatprep.subr.mxu0 0.0
    %2104 = vmatpush1.msra.mxu0 %v2092
    %2105 = vmatprep.subr.mxu0 0.0
    %2106 = vmatpush1.msra.mxu0 %v2094
    %2107 = vmatprep.subr.mxu0 0.0
    %2108 = vmatpush1.msra.mxu0 0.0
    %2109 = vmatprep.subr.mxu0 0.0
    %2110 = vmatpush1.msra.mxu0 0.0
    %2111 = vmatprep.subr.mxu0 0.0
    %2112 = vmatpush1.msra.mxu0 0.0
    %2113 = vmatprep.subr.mxu0 0.0
    %2114 = vmatpush1.msra.mxu0 0.0
    %2115 = vmatprep.subr.mxu0 0.0
    %2116 = vmatpush1.msra.mxu0 0.0
    %2117 = vmatprep.subr.mxu0 0.0
    %2118 = vmatpush1.msra.mxu0 0.0
    %2119 = vmatprep.subr.mxu0 0.0
    %2120 = vmatpush1.msra.mxu0 0.0
    %2121 = vmatprep.subr.mxu0 0.0
    %2122 = vmatpush1.msra.mxu0 0.0
    %2123 = vmatprep.subr.mxu0 0.0
    %2124 = vmatpush1.msra.mxu0 0.0
    %2125 = vmatprep.subr.mxu0 0.0
    %2126 = vmatpush1.msra.mxu0 0.0
    %2127 = vmatprep.subr.mxu0 0.0
    %2128 = vmatpush1.msra.mxu0 0.0
    %2129 = vmatprep.subr.mxu0 0.0
    %2130 = vmatpush1.msra.mxu0 0.0
    %2131 = vmatprep.subr.mxu0 0.0
    %2132 = vmatpush1.msra.mxu0 0.0
    %2133 = vmatprep.subr.mxu0 0.0
    %2134 = vmatpush1.msra.mxu0 0.0
    %2135 = vmatprep.subr.mxu0 0.0
    %2136 = vmatpush1.msra.mxu0 0.0
    %2137 = vmatprep.subr.mxu0 0.0
    %2138 = vmatpush1.msra.mxu0 0.0
    %2139 = vmatprep.subr.mxu0 0.0
    %2140 = vmatpush1.msra.mxu0 0.0
    %2141 = vmatprep.subr.mxu0 0.0
    %2142 = vmatpush1.msra.mxu0 0.0
    %2143 = vmatprep.subr.mxu0 0.0
    %2144 = vmatpush1.msra.mxu0 0.0
    %2145 = vmatprep.subr.mxu0 0.0
    %2146 = vmatpush1.msra.mxu0 0.0
    %2147 = vmatprep.subr.mxu0 0.0
    %2148 = vmatpush1.msra.mxu0 0.0
    %2149 = vmatprep.subr.mxu0 0.0
    %2150 = vmatpush1.msra.mxu0 0.0
    %2151 = vmatprep.subr.mxu0 0.0
    %2152 = vmatpush1.msra.mxu0 0.0
    %2153 = vmatprep.subr.mxu0 0.0
    %2154 = vmatpush1.msra.mxu0 0.0
    %2155 = vmatprep.subr.mxu0 0.0
    %2156 = vmatpush1.msra.mxu0 0.0
    %2157 = vmatprep.subr.mxu0 0.0
    %2158 = vmatpush1.msra.mxu0 0.0
    %2159 = vmatprep.subr.mxu0 0.0
    %2160 = vmatpush1.msra.mxu0 0.0
    %2161 = vmatprep.subr.mxu0 0.0
    %2162 = vmatpush1.msra.mxu0 0.0
    %2163 = vmatprep.subr.mxu0 0.0
    %2164 = vmatpush1.msra.mxu0 0.0
    %2165 = vmatprep.subr.mxu0 0.0
    %2166 = vmatpush1.msra.mxu0 0.0
    %2167 = vmatprep.mubr.f32.mxu0 0.0
    %2168 = vmatmul.mubr.f32.gmra.mrb[0].mxu0 %v2098
    %v2169 = vpop.f32.mrb[0].mxu0
    %v2170 = vadd.f32 0.0, %v2169
    %v2171 = vpop.f32.mrb[0].mxu0
    %2172 = vmatprep.mubr.f32.mxu0 0.0
    %2173 = vmatmul.mubr.f32.gmra.mrb[0].mxu0 %v2101
    %v2174 = vpop.f32.mrb[0].mxu0
    %v2175 = vadd.f32 0.0, %v2174
    %v2176 = vpop.f32.mrb[0].mxu0
    %2177 = vdwg.mxu0
    %2178 = vrot.lane.b32.xlu0 %v1561, 64
    %v2179 = vpop.permute.xlu0 %2178
    %2180 = vrot.lane.b32.xlu0 %v1563, 64
    %v2181 = vpop.permute.xlu0 %2180
    %v2185 = vsel %vm635, %v2000, 0
    %v2188 = vsel %vm635, %v2001, 0
    %2190 = vmatprep.subr.mxu0 0.0
    %2191 = vmatpush1.msra.mxu0 %v2179
    %2192 = vmatprep.subr.mxu0 0.0
    %2193 = vmatpush1.msra.mxu0 %v2181
    %2194 = vmatprep.subr.mxu0 0.0
    %2195 = vmatpush1.msra.mxu0 0.0
    %2196 = vmatprep.subr.mxu0 0.0
    %2197 = vmatpush1.msra.mxu0 0.0
    %2198 = vmatprep.subr.mxu0 0.0
    %2199 = vmatpush1.msra.mxu0 0.0
    %2200 = vmatprep.subr.mxu0 0.0
    %2201 = vmatpush1.msra.mxu0 0.0
    %2202 = vmatprep.subr.mxu0 0.0
    %2203 = vmatpush1.msra.mxu0 0.0
    %2204 = vmatprep.subr.mxu0 0.0
    %2205 = vmatpush1.msra.mxu0 0.0
    %2206 = vmatprep.subr.mxu0 0.0
    %2207 = vmatpush1.msra.mxu0 0.0
    %2208 = vmatprep.subr.mxu0 0.0
    %2209 = vmatpush1.msra.mxu0 0.0
    %2210 = vmatprep.subr.mxu0 0.0
    %2211 = vmatpush1.msra.mxu0 0.0
    %2212 = vmatprep.subr.mxu0 0.0
    %2213 = vmatpush1.msra.mxu0 0.0
    %2214 = vmatprep.subr.mxu0 0.0
    %2215 = vmatpush1.msra.mxu0 0.0
    %2216 = vmatprep.subr.mxu0 0.0
    %2217 = vmatpush1.msra.mxu0 0.0
    %2218 = vmatprep.subr.mxu0 0.0
    %2219 = vmatpush1.msra.mxu0 0.0
    %2220 = vmatprep.subr.mxu0 0.0
    %2221 = vmatpush1.msra.mxu0 0.0
    %2222 = vmatprep.subr.mxu0 0.0
    %2223 = vmatpush1.msra.mxu0 0.0
    %2224 = vmatprep.subr.mxu0 0.0
    %2225 = vmatpush1.msra.mxu0 0.0
    %2226 = vmatprep.subr.mxu0 0.0
    %2227 = vmatpush1.msra.mxu0 0.0
    %2228 = vmatprep.subr.mxu0 0.0
    %2229 = vmatpush1.msra.mxu0 0.0
    %2230 = vmatprep.subr.mxu0 0.0
    %2231 = vmatpush1.msra.mxu0 0.0
    %2232 = vmatprep.subr.mxu0 0.0
    %2233 = vmatpush1.msra.mxu0 0.0
    %2234 = vmatprep.subr.mxu0 0.0
    %2235 = vmatpush1.msra.mxu0 0.0
    %2236 = vmatprep.subr.mxu0 0.0
    %2237 = vmatpush1.msra.mxu0 0.0
    %2238 = vmatprep.subr.mxu0 0.0
    %2239 = vmatpush1.msra.mxu0 0.0
    %2240 = vmatprep.subr.mxu0 0.0
    %2241 = vmatpush1.msra.mxu0 0.0
    %2242 = vmatprep.subr.mxu0 0.0
    %2243 = vmatpush1.msra.mxu0 0.0
    %2244 = vmatprep.subr.mxu0 0.0
    %2245 = vmatpush1.msra.mxu0 0.0
    %2246 = vmatprep.subr.mxu0 0.0
    %2247 = vmatpush1.msra.mxu0 0.0
    %2248 = vmatprep.subr.mxu0 0.0
    %2249 = vmatpush1.msra.mxu0 0.0
    %2250 = vmatprep.subr.mxu0 0.0
    %2251 = vmatpush1.msra.mxu0 0.0
    %2252 = vmatprep.subr.mxu0 0.0
    %2253 = vmatpush1.msra.mxu0 0.0
    %2254 = vmatprep.mubr.f32.mxu0 0.0
    %2255 = vmatmul.mubr.f32.gmra.mrb[0].mxu0 %v2185
    %v2256 = vpop.f32.mrb[0].mxu0
    %v2257 = vadd.f32 0.0, %v2256
    %v2258 = vpop.f32.mrb[0].mxu0
    %2259 = vmatprep.mubr.f32.mxu0 0.0
    %2260 = vmatmul.mubr.f32.gmra.mrb[0].mxu0 %v2188
    %v2261 = vpop.f32.mrb[0].mxu0
    %v2262 = vadd.f32 0.0, %v2261
    %v2263 = vpop.f32.mrb[0].mxu0
    %2264 = vdwg.mxu0
    %2265 = vrot.lane.b32.xlu0 %v1565, 64
    %v2266 = vpop.permute.xlu0 %2265
    %2267 = vrot.lane.b32.xlu0 %v1567, 64
    %v2268 = vpop.permute.xlu0 %2267
    %v2272 = vsel %vm635, %v2002, 0
    %v2275 = vsel %vm635, %v2003, 0
    %2277 = vmatprep.subr.mxu0 0.0
    %2278 = vmatpush1.msra.mxu0 %v2266
    %2279 = vmatprep.subr.mxu0 0.0
    %2280 = vmatpush1.msra.mxu0 %v2268
    %2281 = vmatprep.subr.mxu0 0.0
    %2282 = vmatpush1.msra.mxu0 0.0
    %2283 = vmatprep.subr.mxu0 0.0
    %2284 = vmatpush1.msra.mxu0 0.0
    %2285 = vmatprep.subr.mxu0 0.0
    %2286 = vmatpush1.msra.mxu0 0.0
    %2287 = vmatprep.subr.mxu0 0.0
    %2288 = vmatpush1.msra.mxu0 0.0
    %2289 = vmatprep.subr.mxu0 0.0
    %2290 = vmatpush1.msra.mxu0 0.0
    %2291 = vmatprep.subr.mxu0 0.0
    %2292 = vmatpush1.msra.mxu0 0.0
    %2293 = vmatprep.subr.mxu0 0.0
    %2294 = vmatpush1.msra.mxu0 0.0
    %2295 = vmatprep.subr.mxu0 0.0
    %2296 = vmatpush1.msra.mxu0 0.0
    %2297 = vmatprep.subr.mxu0 0.0
    %2298 = vmatpush1.msra.mxu0 0.0
    %2299 = vmatprep.subr.mxu0 0.0
    %2300 = vmatpush1.msra.mxu0 0.0
    %2301 = vmatprep.subr.mxu0 0.0
    %2302 = vmatpush1.msra.mxu0 0.0
    %2303 = vmatprep.subr.mxu0 0.0
    %2304 = vmatpush1.msra.mxu0 0.0
    %2305 = vmatprep.subr.mxu0 0.0
    %2306 = vmatpush1.msra.mxu0 0.0
    %2307 = vmatprep.subr.mxu0 0.0
    %2308 = vmatpush1.msra.mxu0 0.0
    %2309 = vmatprep.subr.mxu0 0.0
    %2310 = vmatpush1.msra.mxu0 0.0
    %2311 = vmatprep.subr.mxu0 0.0
    %2312 = vmatpush1.msra.mxu0 0.0
    %2313 = vmatprep.subr.mxu0 0.0
    %2314 = vmatpush1.msra.mxu0 0.0
    %2315 = vmatprep.subr.mxu0 0.0
    %2316 = vmatpush1.msra.mxu0 0.0
    %2317 = vmatprep.subr.mxu0 0.0
    %2318 = vmatpush1.msra.mxu0 0.0
    %2319 = vmatprep.subr.mxu0 0.0
    %2320 = vmatpush1.msra.mxu0 0.0
    %2321 = vmatprep.subr.mxu0 0.0
    %2322 = vmatpush1.msra.mxu0 0.0
    %2323 = vmatprep.subr.mxu0 0.0
    %2324 = vmatpush1.msra.mxu0 0.0
    %2325 = vmatprep.subr.mxu0 0.0
    %2326 = vmatpush1.msra.mxu0 0.0
    %2327 = vmatprep.subr.mxu0 0.0
    %2328 = vmatpush1.msra.mxu0 0.0
    %2329 = vmatprep.subr.mxu0 0.0
    %2330 = vmatpush1.msra.mxu0 0.0
    %2331 = vmatprep.subr.mxu0 0.0
    %2332 = vmatpush1.msra.mxu0 0.0
    %2333 = vmatprep.subr.mxu0 0.0
    %2334 = vmatpush1.msra.mxu0 0.0
    %2335 = vmatprep.subr.mxu0 0.0
    %2336 = vmatpush1.msra.mxu0 0.0
    %2337 = vmatprep.subr.mxu0 0.0
    %2338 = vmatpush1.msra.mxu0 0.0
    %2339 = vmatprep.subr.mxu0 0.0
    %2340 = vmatpush1.msra.mxu0 0.0
    %2341 = vmatprep.mubr.f32.mxu0 0.0
    %2342 = vmatmul.mubr.f32.gmra.mrb[0].mxu0 %v2272
    %v2343 = vpop.f32.mrb[0].mxu0
    %v2344 = vadd.f32 0.0, %v2343
    %v2345 = vpop.f32.mrb[0].mxu0
    %2346 = vmatprep.mubr.f32.mxu0 0.0
    %2347 = vmatmul.mubr.f32.gmra.mrb[0].mxu0 %v2275
    %v2348 = vpop.f32.mrb[0].mxu0
    %v2349 = vadd.f32 0.0, %v2348
    %v2350 = vpop.f32.mrb[0].mxu0
    %2351 = vdwg.mxu0
    %2354 = vrot.lane.b32.xlu0 %v2170, 8
    %v2355 = vpop.permute.xlu0 %2354
    %2356 = vrot.lane.b32.xlu0 %v2175, 8
    %v2357 = vpop.permute.xlu0 %2356
    %2362 = vrot.lane.b32.xlu0 %v2257, 16
    %v2363 = vpop.permute.xlu0 %2362
    %2364 = vrot.lane.b32.xlu0 %v2262, 16
    %v2365 = vpop.permute.xlu0 %2364
    %2370 = vrot.lane.b32.xlu0 %v2344, 24
    %v2371 = vpop.permute.xlu0 %2370
    %2372 = vrot.lane.b32.xlu0 %v2349, 24
    %v2373 = vpop.permute.xlu0 %2372
    %v2376 = vsel %vm144, %v2083, %v2355
    %v2377 = vsel %vm144, %v2088, %v2357
    %v2378 = vsel %vm635, %v2376, %v2363
    %v2379 = vsel %vm635, %v2377, %v2365
    %v2380 = vsel %vm1100, %v2378, %v2371
    %v2381 = vsel %vm1100, %v2379, %v2373
    %v2382 = vlaneseq
    %v2383 = vshrl.u32 %v2382, 7
    %v2384 = vsub.s32 0, %v2383
    %v2385 = vrot.slane %v1462, %v2384
    %v2387 = vsel %vm191, %v2380, 0
    %v2390 = vsel %vm191, %v2381, 0
    %2392 = vmatprep.subr.mxu0 0.0
    %2393 = vmatpush1.msra.mxu0 %v1445
    %2394 = vmatprep.subr.mxu0 0.0
    %2395 = vmatpush1.msra.mxu0 %v1446
    %2396 = vmatprep.subr.mxu0 0.0
    %2397 = vmatpush1.msra.mxu0 %v1447
    %2398 = vmatprep.subr.mxu0 0.0
    %2399 = vmatpush1.msra.mxu0 %v1448
    %2400 = vmatprep.subr.mxu0 0.0
    %2401 = vmatpush1.msra.mxu0 0.0
    %2402 = vmatprep.subr.mxu0 0.0
    %2403 = vmatpush1.msra.mxu0 0.0
    %2404 = vmatprep.subr.mxu0 0.0
    %2405 = vmatpush1.msra.mxu0 0.0
    %2406 = vmatprep.subr.mxu0 0.0
    %2407 = vmatpush1.msra.mxu0 0.0
    %2408 = vmatprep.subr.mxu0 0.0
    %2409 = vmatpush1.msra.mxu0 0.0
    %2410 = vmatprep.subr.mxu0 0.0
    %2411 = vmatpush1.msra.mxu0 0.0
    %2412 = vmatprep.subr.mxu0 0.0
    %2413 = vmatpush1.msra.mxu0 0.0
    %2414 = vmatprep.subr.mxu0 0.0
    %2415 = vmatpush1.msra.mxu0 0.0
    %2416 = vmatprep.subr.mxu0 0.0
    %2417 = vmatpush1.msra.mxu0 0.0
    %2418 = vmatprep.subr.mxu0 0.0
    %2419 = vmatpush1.msra.mxu0 0.0
    %2420 = vmatprep.subr.mxu0 0.0
    %2421 = vmatpush1.msra.mxu0 0.0
    %2422 = vmatprep.subr.mxu0 0.0
    %2423 = vmatpush1.msra.mxu0 0.0
    %2424 = vmatprep.subr.mxu0 0.0
    %2425 = vmatpush1.msra.mxu0 0.0
    %2426 = vmatprep.subr.mxu0 0.0
    %2427 = vmatpush1.msra.mxu0 0.0
    %2428 = vmatprep.subr.mxu0 0.0
    %2429 = vmatpush1.msra.mxu0 0.0
    %2430 = vmatprep.subr.mxu0 0.0
    %2431 = vmatpush1.msra.mxu0 0.0
    %2432 = vmatprep.subr.mxu0 0.0
    %2433 = vmatpush1.msra.mxu0 0.0
    %2434 = vmatprep.subr.mxu0 0.0
    %2435 = vmatpush1.msra.mxu0 0.0
    %2436 = vmatprep.subr.mxu0 0.0
    %2437 = vmatpush1.msra.mxu0 0.0
    %2438 = vmatprep.subr.mxu0 0.0
    %2439 = vmatpush1.msra.mxu0 0.0
    %2440 = vmatprep.subr.mxu0 0.0
    %2441 = vmatpush1.msra.mxu0 0.0
    %2442 = vmatprep.subr.mxu0 0.0
    %2443 = vmatpush1.msra.mxu0 0.0
    %2444 = vmatprep.subr.mxu0 0.0
    %2445 = vmatpush1.msra.mxu0 0.0
    %2446 = vmatprep.subr.mxu0 0.0
    %2447 = vmatpush1.msra.mxu0 0.0
    %2448 = vmatprep.subr.mxu0 0.0
    %2449 = vmatpush1.msra.mxu0 0.0
    %2450 = vmatprep.subr.mxu0 0.0
    %2451 = vmatpush1.msra.mxu0 0.0
    %2452 = vmatprep.subr.mxu0 0.0
    %2453 = vmatpush1.msra.mxu0 0.0
    %2454 = vmatprep.subr.mxu0 0.0
    %2455 = vmatpush1.msra.mxu0 0.0
    %2456 = vmatprep.mubr.f32.mxu0 0.0
    %2457 = vmatmul.mubr.f32.gmra.mrb[0].mxu0 %v2387
    %v2458 = vpop.f32.mrb[0].mxu0
    %v2459 = vadd.f32 %v2385, %v2458
    %v2460 = vpop.f32.mrb[0].mxu0
    %2461 = vmatprep.mubr.f32.mxu0 0.0
    %2462 = vmatmul.mubr.f32.gmra.mrb[0].mxu0 %v2390
    %v2463 = vpop.f32.mrb[0].mxu0
    %v2464 = vadd.f32 %v2385, %v2463
    %v2465 = vpop.f32.mrb[0].mxu0
    %2466 = vdwg.mxu0
    %v2467 = vadd.f32 %v1439, %v2459
    %v2468 = vadd.f32 %v1440, %v2464
    %v2469 = vsel %vm191, %v2467, 0.0
    %2470 = vadd.xlane.f32.xlu0 %v2469
    %v2471 = vpop.xlane.xlu0 %2470
    %v2472 = vsel %vm191, %v2468, 0.0
    %2473 = vadd.xlane.f32.xlu0 %v2472
    %v2474 = vpop.xlane.xlu0 %2473
    %v2475 = vmul.f32 %v2471, %v1196
    %v2476 = vmul.f32 %v2474, %v1196
    %v2477 = vsub.f32 %v2467, %v2475
    %v2478 = vsub.f32 %v2468, %v2476
    %v2479 = vmul.f32 %v2477, %v2477
    %v2480 = vmul.f32 %v2478, %v2478
    %v2481 = vsel %vm191, %v2479, 0.0
    %2482 = vadd.xlane.f32.xlu0 %v2481
    %v2483 = vpop.xlane.xlu0 %2482
    %v2484 = vsel %vm191, %v2480, 0.0
    %2485 = vadd.xlane.f32.xlu0 %v2484
    %v2486 = vpop.xlane.xlu0 %2485
    %v2487 = vmul.f32 %v2483, %v1196
    %v2488 = vmul.f32 %v2486, %v1196
    %v2489 = vadd.f32 %v2487, 1e-05
    %v2490 = vadd.f32 %v2488, 1e-05
    %v2491 = vrsqrt.pop %v2489
    %v2492 = vrsqrt.pop %v2490
    %v2493 = vmul.f32 %v2477, %v2491
    %v2494 = vmul.f32 %v2478, %v2492
    %v2495 = vlaneseq
    %v2496 = vshrl.u32 %v2495, 7
    %v2497 = vsub.s32 0, %v2496
    %v2498 = vrot.slane %v1463, %v2497
    %v2499 = vmul.f32 %v2493, %v2498
    %v2500 = vmul.f32 %v2494, %v2498
    %v2501 = vlaneseq
    %v2502 = vshrl.u32 %v2501, 7
    %v2503 = vsub.s32 0, %v2502
    %v2504 = vrot.slane %v1464, %v2503
    %v2505 = vadd.f32 %v2499, %v2504
    %v2506 = vadd.f32 %v2500, %v2504
    %v2507 = vlaneseq
    %v2508 = vshrl.u32 %v2507, 7
    %v2509 = vsub.s32 0, %v2508
    %v2510 = vrot.slane %v1465, %v2509
    %v2512 = vsel %vm191, %v2505, 0
    %v2515 = vsel %vm191, %v2506, 0
    %2517 = vmatprep.subr.mxu0 0.0
    %2518 = vmatpush1.msra.mxu0 %v1449
    %2519 = vmatprep.subr.mxu0 0.0
    %2520 = vmatpush1.msra.mxu0 %v1450
    %2521 = vmatprep.subr.mxu0 0.0
    %2522 = vmatpush1.msra.mxu0 %v1451
    %2523 = vmatprep.subr.mxu0 0.0
    %2524 = vmatpush1.msra.mxu0 %v1452
    %2525 = vmatprep.subr.mxu0 0.0
    %2526 = vmatpush1.msra.mxu0 0.0
    %2527 = vmatprep.subr.mxu0 0.0
    %2528 = vmatpush1.msra.mxu0 0.0
    %2529 = vmatprep.subr.mxu0 0.0
    %2530 = vmatpush1.msra.mxu0 0.0
    %2531 = vmatprep.subr.mxu0 0.0
    %2532 = vmatpush1.msra.mxu0 0.0
    %2533 = vmatprep.subr.mxu0 0.0
    %2534 = vmatpush1.msra.mxu0 0.0
    %2535 = vmatprep.subr.mxu0 0.0
    %2536 = vmatpush1.msra.mxu0 0.0
    %2537 = vmatprep.subr.mxu0 0.0
    %2538 = vmatpush1.msra.mxu0 0.0
    %2539 = vmatprep.subr.mxu0 0.0
    %2540 = vmatpush1.msra.mxu0 0.0
    %2541 = vmatprep.subr.mxu0 0.0
    %2542 = vmatpush1.msra.mxu0 0.0
    %2543 = vmatprep.subr.mxu0 0.0
    %2544 = vmatpush1.msra.mxu0 0.0
    %2545 = vmatprep.subr.mxu0 0.0
    %2546 = vmatpush1.msra.mxu0 0.0
    %2547 = vmatprep.subr.mxu0 0.0
    %2548 = vmatpush1.msra.mxu0 0.0
    %2549 = vmatprep.subr.mxu0 0.0
    %2550 = vmatpush1.msra.mxu0 0.0
    %2551 = vmatprep.subr.mxu0 0.0
    %2552 = vmatpush1.msra.mxu0 0.0
    %2553 = vmatprep.subr.mxu0 0.0
    %2554 = vmatpush1.msra.mxu0 0.0
    %2555 = vmatprep.subr.mxu0 0.0
    %2556 = vmatpush1.msra.mxu0 0.0
    %2557 = vmatprep.subr.mxu0 0.0
    %2558 = vmatpush1.msra.mxu0 0.0
    %2559 = vmatprep.subr.mxu0 0.0
    %2560 = vmatpush1.msra.mxu0 0.0
    %2561 = vmatprep.subr.mxu0 0.0
    %2562 = vmatpush1.msra.mxu0 0.0
    %2563 = vmatprep.subr.mxu0 0.0
    %2564 = vmatpush1.msra.mxu0 0.0
    %2565 = vmatprep.subr.mxu0 0.0
    %2566 = vmatpush1.msra.mxu0 0.0
    %2567 = vmatprep.subr.mxu0 0.0
    %2568 = vmatpush1.msra.mxu0 0.0
    %2569 = vmatprep.subr.mxu0 0.0
    %2570 = vmatpush1.msra.mxu0 0.0
    %2571 = vmatprep.subr.mxu0 0.0
    %2572 = vmatpush1.msra.mxu0 0.0
    %2573 = vmatprep.subr.mxu0 0.0
    %2574 = vmatpush1.msra.mxu0 0.0
    %2575 = vmatprep.subr.mxu0 0.0
    %2576 = vmatpush1.msra.mxu0 0.0
    %2577 = vmatprep.subr.mxu0 0.0
    %2578 = vmatpush1.msra.mxu0 0.0
    %2579 = vmatprep.subr.mxu0 0.0
    %2580 = vmatpush1.msra.mxu0 0.0
    %2581 = vmatprep.mubr.f32.mxu0 0.0
    %2582 = vmatmul.mubr.f32.gmra.mrb[0].mxu0 %v2512
    %v2583 = vpop.f32.mrb[0].mxu0
    %v2584 = vadd.f32 %v2510, %v2583
    %v2585 = vpop.f32.mrb[0].mxu0
    %2586 = vmatprep.mubr.f32.mxu0 0.0
    %2587 = vmatmul.mubr.f32.gmra.mrb[0].mxu0 %v2515
    %v2588 = vpop.f32.mrb[0].mxu0
    %v2589 = vadd.f32 %v2510, %v2588
    %v2590 = vpop.f32.mrb[0].mxu0
    %2591 = vdwg.mxu0
    %v2592 = vmax.f32 %v2584, 0.0
    %v2593 = vmax.f32 %v2589, 0.0
    %v2594 = vlaneseq
    %v2595 = vshrl.u32 %v2594, 7
    %v2596 = vsub.s32 0, %v2595
    %v2597 = vrot.slane %v1466, %v2596
    %v2599 = vsel %vm57, %v2592, 0
    %v2602 = vsel %vm57, %v2593, 0
    %2604 = vmatprep.subr.mxu0 0.0
    %2605 = vmatpush1.msra.mxu0 %v1453
    %2606 = vmatprep.subr.mxu0 0.0
    %2607 = vmatpush1.msra.mxu0 %v1454
    %2608 = vmatprep.subr.mxu0 0.0
    %2609 = vmatpush1.msra.mxu0 %v1455
    %2610 = vmatprep.subr.mxu0 0.0
    %2611 = vmatpush1.msra.mxu0 %v1456
    %2612 = vmatprep.subr.mxu0 0.0
    %2613 = vmatpush1.msra.mxu0 %v1457
    %2614 = vmatprep.subr.mxu0 0.0
    %2615 = vmatpush1.msra.mxu0 %v1458
    %2616 = vmatprep.subr.mxu0 0.0
    %2617 = vmatpush1.msra.mxu0 %v1459
    %2618 = vmatprep.subr.mxu0 0.0
    %2619 = vmatpush1.msra.mxu0 %v1460
    %2620 = vmatprep.subr.mxu0 0.0
    %2621 = vmatpush1.msra.mxu0 0.0
    %2622 = vmatprep.subr.mxu0 0.0
    %2623 = vmatpush1.msra.mxu0 0.0
    %2624 = vmatprep.subr.mxu0 0.0
    %2625 = vmatpush1.msra.mxu0 0.0
    %2626 = vmatprep.subr.mxu0 0.0
    %2627 = vmatpush1.msra.mxu0 0.0
    %2628 = vmatprep.subr.mxu0 0.0
    %2629 = vmatpush1.msra.mxu0 0.0
    %2630 = vmatprep.subr.mxu0 0.0
    %2631 = vmatpush1.msra.mxu0 0.0
    %2632 = vmatprep.subr.mxu0 0.0
    %2633 = vmatpush1.msra.mxu0 0.0
    %2634 = vmatprep.subr.mxu0 0.0
    %2635 = vmatpush1.msra.mxu0 0.0
    %2636 = vmatprep.subr.mxu0 0.0
    %2637 = vmatpush1.msra.mxu0 0.0
    %2638 = vmatprep.subr.mxu0 0.0
    %2639 = vmatpush1.msra.mxu0 0.0
    %2640 = vmatprep.subr.mxu0 0.0
    %2641 = vmatpush1.msra.mxu0 0.0
    %2642 = vmatprep.subr.mxu0 0.0
    %2643 = vmatpush1.msra.mxu0 0.0
    %2644 = vmatprep.subr.mxu0 0.0
    %2645 = vmatpush1.msra.mxu0 0.0
    %2646 = vmatprep.subr.mxu0 0.0
    %2647 = vmatpush1.msra.mxu0 0.0
    %2648 = vmatprep.subr.mxu0 0.0
    %2649 = vmatpush1.msra.mxu0 0.0
    %2650 = vmatprep.subr.mxu0 0.0
    %2651 = vmatpush1.msra.mxu0 0.0
    %2652 = vmatprep.subr.mxu0 0.0
    %2653 = vmatpush1.msra.mxu0 0.0
    %2654 = vmatprep.subr.mxu0 0.0
    %2655 = vmatpush1.msra.mxu0 0.0
    %2656 = vmatprep.subr.mxu0 0.0
    %2657 = vmatpush1.msra.mxu0 0.0
    %2658 = vmatprep.subr.mxu0 0.0
    %2659 = vmatpush1.msra.mxu0 0.0
    %2660 = vmatprep.subr.mxu0 0.0
    %2661 = vmatpush1.msra.mxu0 0.0
    %2662 = vmatprep.subr.mxu0 0.0
    %2663 = vmatpush1.msra.mxu0 0.0
    %2664 = vmatprep.subr.mxu0 0.0
    %2665 = vmatpush1.msra.mxu0 0.0
    %2666 = vmatprep.subr.mxu0 0.0
    %2667 = vmatpush1.msra.mxu0 0.0
    %2668 = vmatprep.mubr.f32.mxu0 0.0
    %2669 = vmatmul.mubr.f32.gmra.mrb[0].mxu0 %v2599
    %v2670 = vpop.f32.mrb[0].mxu0
    %v2671 = vadd.f32 %v2597, %v2670
    %v2672 = vpop.f32.mrb[0].mxu0
    %2673 = vmatprep.mubr.f32.mxu0 0.0
    %2674 = vmatmul.mubr.f32.gmra.mrb[0].mxu0 %v2602
    %v2675 = vpop.f32.mrb[0].mxu0
    %v2676 = vadd.f32 %v2597, %v2675
    %v2677 = vpop.f32.mrb[0].mxu0
    %2678 = vdwg.mxu0
    %v2679 = vadd.f32 %v2505, %v2671
    %v2680 = vadd.f32 %v2506, %v2676
    %v2681 = vsel %vm191, %v2679, 0.0
    %2682 = vadd.xlane.f32.xlu0 %v2681
    %v2683 = vpop.xlane.xlu0 %2682
    %v2684 = vsel %vm191, %v2680, 0.0
    %2685 = vadd.xlane.f32.xlu0 %v2684
    %v2686 = vpop.xlane.xlu0 %2685
    %v2687 = vmul.f32 %v2683, %v1196
    %v2688 = vmul.f32 %v2686, %v1196
    %v2689 = vsub.f32 %v2679, %v2687
    %v2690 = vsub.f32 %v2680, %v2688
    %v2691 = vmul.f32 %v2689, %v2689
    %v2692 = vmul.f32 %v2690, %v2690
    %v2693 = vsel %vm191, %v2691, 0.0
    %2694 = vadd.xlane.f32.xlu0 %v2693
    %v2695 = vpop.xlane.xlu0 %2694
    %v2696 = vsel %vm191, %v2692, 0.0
    %2697 = vadd.xlane.f32.xlu0 %v2696
    %v2698 = vpop.xlane.xlu0 %2697
    %v2699 = vmul.f32 %v2695, %v1196
    %v2700 = vmul.f32 %v2698, %v1196
    %v2701 = vadd.f32 %v2699, 1e-05
    %v2702 = vadd.f32 %v2700, 1e-05
    %v2703 = vrsqrt.pop %v2701
    %v2704 = vrsqrt.pop %v2702
    %v2705 = vmul.f32 %v2689, %v2703
    %v2706 = vmul.f32 %v2690, %v2704
    %v2707 = vlaneseq
    %v2708 = vshrl.u32 %v2707, 7
    %v2709 = vsub.s32 0, %v2708
    %v2710 = vrot.slane %v1467, %v2709
    %v2711 = vmul.f32 %v2705, %v2710
    %v2712 = vmul.f32 %v2706, %v2710
    %v2713 = vlaneseq
    %v2714 = vshrl.u32 %v2713, 7
    %v2715 = vsub.s32 0, %v2714
    %v2716 = vrot.slane %v1468, %v2715
    %v2717 = vadd.f32 %v2711, %v2716
    %v2718 = vadd.f32 %v2712, %v2716
    %v2719 = vld [vmem:[#allocation2 + $0x50] sm:$0xff]
    %v2720 = vld [vmem:[#allocation2 + $0x58] sm:$0xff]
    %v2721 = vld [vmem:[#allocation2 + $0x60] sm:$0xff]
    %v2722 = vld [vmem:[#allocation2 + $0x68] sm:$0xff]
    %v2723 = vld [vmem:[#allocation2 + $0x70] sm:$0x1]
    %v2724 = vlaneseq
    %v2725 = vshrl.u32 %v2724, 7
    %v2726 = vsub.s32 0, %v2725
    %v2727 = vrot.slane %v2723, %v2726
    %v2729 = vsel %vm191, %v2717, 0
    %v2732 = vsel %vm191, %v2718, 0
    %2734 = vmatprep.subr.mxu0 0.0
    %2735 = vmatpush1.msra.mxu0 %v2719
    %2736 = vmatprep.subr.mxu0 0.0
    %2737 = vmatpush1.msra.mxu0 %v2720
    %2738 = vmatprep.subr.mxu0 0.0
    %2739 = vmatpush1.msra.mxu0 %v2721
    %2740 = vmatprep.subr.mxu0 0.0
    %2741 = vmatpush1.msra.mxu0 %v2722
    %2742 = vmatprep.subr.mxu0 0.0
    %2743 = vmatpush1.msra.mxu0 0.0
    %2744 = vmatprep.subr.mxu0 0.0
    %2745 = vmatpush1.msra.mxu0 0.0
    %2746 = vmatprep.subr.mxu0 0.0
    %2747 = vmatpush1.msra.mxu0 0.0
    %2748 = vmatprep.subr.mxu0 0.0
    %2749 = vmatpush1.msra.mxu0 0.0
    %2750 = vmatprep.subr.mxu0 0.0
    %2751 = vmatpush1.msra.mxu0 0.0
    %2752 = vmatprep.subr.mxu0 0.0
    %2753 = vmatpush1.msra.mxu0 0.0
    %2754 = vmatprep.subr.mxu0 0.0
    %2755 = vmatpush1.msra.mxu0 0.0
    %2756 = vmatprep.subr.mxu0 0.0
    %2757 = vmatpush1.msra.mxu0 0.0
    %2758 = vmatprep.subr.mxu0 0.0
    %2759 = vmatpush1.msra.mxu0 0.0
    %2760 = vmatprep.subr.mxu0 0.0
    %2761 = vmatpush1.msra.mxu0 0.0
    %2762 = vmatprep.subr.mxu0 0.0
    %2763 = vmatpush1.msra.mxu0 0.0
    %2764 = vmatprep.subr.mxu0 0.0
    %2765 = vmatpush1.msra.mxu0 0.0
    %2766 = vmatprep.subr.mxu0 0.0
    %2767 = vmatpush1.msra.mxu0 0.0
    %2768 = vmatprep.subr.mxu0 0.0
    %2769 = vmatpush1.msra.mxu0 0.0
    %2770 = vmatprep.subr.mxu0 0.0
    %2771 = vmatpush1.msra.mxu0 0.0
    %2772 = vmatprep.subr.mxu0 0.0
    %2773 = vmatpush1.msra.mxu0 0.0
    %2774 = vmatprep.subr.mxu0 0.0
    %2775 = vmatpush1.msra.mxu0 0.0
    %2776 = vmatprep.subr.mxu0 0.0
    %2777 = vmatpush1.msra.mxu0 0.0
    %2778 = vmatprep.subr.mxu0 0.0
    %2779 = vmatpush1.msra.mxu0 0.0
    %2780 = vmatprep.subr.mxu0 0.0
    %2781 = vmatpush1.msra.mxu0 0.0
    %2782 = vmatprep.subr.mxu0 0.0
    %2783 = vmatpush1.msra.mxu0 0.0
    %2784 = vmatprep.subr.mxu0 0.0
    %2785 = vmatpush1.msra.mxu0 0.0
    %2786 = vmatprep.subr.mxu0 0.0
    %2787 = vmatpush1.msra.mxu0 0.0
    %2788 = vmatprep.subr.mxu0 0.0
    %2789 = vmatpush1.msra.mxu0 0.0
    %2790 = vmatprep.subr.mxu0 0.0
    %2791 = vmatpush1.msra.mxu0 0.0
    %2792 = vmatprep.subr.mxu0 0.0
    %2793 = vmatpush1.msra.mxu0 0.0
    %2794 = vmatprep.subr.mxu0 0.0
    %2795 = vmatpush1.msra.mxu0 0.0
    %2796 = vmatprep.subr.mxu0 0.0
    %2797 = vmatpush1.msra.mxu0 0.0
    %2798 = vmatprep.mubr.f32.mxu0 0.0
    %2799 = vmatmul.mubr.f32.gmra.mrb[0].mxu0 %v2729
    %v2800 = vpop.f32.mrb[0].mxu0
    %v2801 = vadd.f32 %v2727, %v2800
    %v2802 = vpop.f32.mrb[0].mxu0
    %2803 = vmatprep.mubr.f32.mxu0 0.0
    %2804 = vmatmul.mubr.f32.gmra.mrb[0].mxu0 %v2732
    %v2805 = vpop.f32.mrb[0].mxu0
    %v2806 = vadd.f32 %v2727, %v2805
    %v2807 = vpop.f32.mrb[0].mxu0
    %2808 = vdwg.mxu0
    %2809 = vst [vmem:[%s4] sm:$0xff] %v2801
    %2810 = vst [vmem:[%s4 + $0x8] sm:$0xff] %v2806
    // Predicated region
    $region22: #{vanilla_transformer_forward.1} parent=1 // pred_check
      _
    $region23: #{vanilla_transformer_forward.1} parent=1 // pred_check_branch
      %2812 = sbr.rel (0) target = $region25
    $region24: #{vanilla_transformer_forward.1} parent=1 // pred_region
      _
    $region25: #{vanilla_transformer_forward.1} parent=1 // pred_fallthru
      _
    // Predicated region
    $region26: #{vanilla_transformer_forward.1} parent=1 // pred_check
      _
    $region27: #{vanilla_transformer_forward.1} parent=1 // pred_check_branch
      %2814 = sbr.rel (0) target = $region29
    $region28: #{vanilla_transformer_forward.1} parent=1 // pred_region
      _
    $region29: #{vanilla_transformer_forward.1} parent=1 // pred_fallthru
      _
    %2815 = vsyncpa [#allocation3], 1

</llo_original>
